<compile_context>
chip_gen: v7x
topology: tpu7x:2x2x1
jax: 0.10.0
libtpu: 0.0.40
codegen_flags: <defaults>
</compile_context>

<pallas_src>
import jax
import jax.numpy as jnp
from jax import lax
from jax.experimental import pallas as pl
from jax.experimental.pallas import tpu as pltpu

_EPS = 1e-8  # PyTorch nn.CosineSimilarity default eps


def _round_up(x, m):
    return ((x + m - 1) // m) * m


def _vmem_budget_bytes():
    """~3/4 of per-core VMEM: ~48 MiB on v7x, ~96 MiB on v5e/v6e."""
    try:
        cap = int(pltpu.get_tpu_info().vmem_capacity_bytes)
    except Exception:
        cap = 64 << 20  # conservative fallback (v7x per-TensorCore size)
    return (cap * 3) // 4


def _auto_block_rows(B, D, itemsize, budget):
    """Pick the row-tile size from D, dtype and the VMEM budget."""
    bytes_per_row = 4 * D * itemsize                 # all four inputs, one row
    # VMEM cap: 4 inputs x 2 pipeline buffers per tile (+ ~4 MiB slack).
    tb_cap = max(8, (budget - (4 << 20)) // (2 * bytes_per_row))
    # Target ~4 MiB of combined input bytes per grid step (amortize the
    # ~0.35 us/step pipeline overhead).
    tb_target = max(8, (4 << 20) // bytes_per_row)
    tb = min(tb_cap, tb_target)
    # Prefer >= 4 grid steps (megacore split on v7x + pipeline overlap) as
    # long as each step still moves >= ~1 MiB of input.
    tb4 = _round_up(pl.cdiv(B, 4), 8)
    if tb4 * bytes_per_row >= (1 << 20):
        tb = min(tb, tb4)
    return _round_up(max(8, min(tb, B)), 8)


def _make_neg_cos_sim_kernel(B, TB, D, use_mxu):
    """Kernel: one (TB, D) row-tile of each input -> partial sum of
    cos(p1, z2) + cos(p2, z1) over the valid rows of this tile, broadcast
    across a lane-dense (1, 128) output row."""
    ragged = (B % TB) != 0

    def kernel(p1_ref, z2_ref, p2_ref, z1_ref, out_ref):
        if ragged:
            row0 = pl.program_id(0) * TB
            rows = lax.broadcasted_iota(jnp.int32, (TB, 1), 0) + row0
            row_mask = rows < B

        if use_mxu:
            # Row sums on the otherwise-idle MXU: (TB, D) @ (D, 128) puts the
            # row sum in every lane; keep lane 0.  HIGHEST keeps f32 accuracy.
            ones = jnp.ones((D, 128), jnp.float32)

            def row_sum(prod):
                s = jnp.dot(prod, ones,
                            precision=lax.Precision.HIGHEST,
                            preferred_element_type=jnp.float32)
                return s[:, :1]
        else:
            def row_sum(prod):
                return jnp.sum(prod, axis=-1, keepdims=True)

        def cos_row_sum(a_ref, b_ref):
            # Upcast once so bf16/f16 inputs accumulate in f32 (free: DMA-bound).
            a = a_ref[...].astype(jnp.float32)
            b = b_ref[...].astype(jnp.float32)
            dot = row_sum(a * b)
            sa = row_sum(a * a)
            sb = row_sum(b * b)
            # ATen: dot / sqrt(clamp(||a||^2 * ||b||^2, eps^2)); rsqrt -> EUP.
            cos = dot * lax.rsqrt(jnp.maximum(sa * sb, _EPS * _EPS))
            if ragged:
                # Rows past B in the tail tile hold undefined data; zero them
                # (select, so even NaN/inf garbage cannot propagate).
                cos = jnp.where(row_mask, cos, 0.0)
            return jnp.sum(cos)

        partial = cos_row_sum(p1_ref, z2_ref) + cos_row_sum(p2_ref, z1_ref)
        out_ref[...] = jnp.full(out_ref.shape, partial, dtype=out_ref.dtype)

    return kernel


def negative_cosine_similarity(p1, p2, z1, z2, *, block_rows=None):
    """Pallas wrapper. Inputs: (B, D) arrays, features on last axis (dim=1).
    Returns a scalar float32 loss = -(cos(p1,z2).mean()+cos(p2,z1).mean())/2."""
    assert p1.shape == p2.shape == z1.shape == z2.shape
    assert p1.ndim == 2
    B, D = p1.shape
    itemsize = p1.dtype.itemsize
    budget = _vmem_budget_bytes()

    if block_rows is None:
        TB = _auto_block_rows(B, D, itemsize, budget)
    else:
        TB = _round_up(max(8, min(block_rows, B)), 8)
    num_blocks = pl.cdiv(B, TB)

    # MXU row-reduce only when D is small & lane-aligned; at large D the
    # kernel is purely HBM-bandwidth bound and XLU reductions are fine.
    use_mxu = (D <= 512) and (D % 128 == 0)

    needed = 2 * 4 * TB * D * itemsize          # double-buffered input tiles
    vmem_limit = int(min(budget, max(16 << 20, needed + (4 << 20))))

    in_spec = pl.BlockSpec((TB, D), lambda i: (i, 0))
    out_spec = pl.BlockSpec((1, 128), lambda i: (i, 0))

    kernel = _make_neg_cos_sim_kernel(B, TB, D, use_mxu)
    partials = pl.pallas_call(
        kernel,
        grid=(num_blocks,),
        in_specs=[in_spec, in_spec, in_spec, in_spec],
        out_specs=out_spec,
        out_shape=jax.ShapeDtypeStruct((num_blocks, 128), jnp.float32),
        compiler_params=pltpu.CompilerParams(
            dimension_semantics=("parallel",),
            vmem_limit_bytes=vmem_limit,
        ),
    )(p1, z2, p2, z1)

    # Every output row holds the same partial sum broadcast over 128 lanes.
    total = jnp.sum(partials[:, 0])
    return -total / (2.0 * B)


def _reference(p1, p2, z1, z2):
    """Pure-JAX reference (ATen cosine_similarity formula)."""
    def cos(a, b):
        dot = jnp.sum(a * b, axis=1)
        sa = jnp.sum(a * a, axis=1)
        sb = jnp.sum(b * b, axis=1)
        return dot / jnp.sqrt(jnp.maximum(sa * sb, _EPS * _EPS))
    return -(cos(p1, z2).mean() + cos(p2, z1).mean()) * 0.5


if __name__ == "__main__":
    key = jax.random.PRNGKey(0)
    k1, k2, k3, k4 = jax.random.split(key, 4)
    # B deliberately not a multiple of 8*anything-nice to exercise masking.
    B, D = 56, 256
    p1 = jax.random.normal(k1, (B, D), dtype=jnp.float32)
    p2 = jax.random.normal(k2, (B, D), dtype=jnp.float32)
    z1 = jax.random.normal(k3, (B, D), dtype=jnp.float32)
    z2 = jax.random.normal(k4, (B, D), dtype=jnp.float32)

    ref = _reference(p1, p2, z1, z2)

    # 1) Auto-tiled path (single full-rows block at this tiny size).
    loss_auto = jax.block_until_ready(
        negative_cosine_similarity(p1, p2, z1, z2))
    # 2) Forced small tile -> 4 grid steps with a ragged (masked) tail tile.
    loss_tiled = jax.block_until_ready(
        negative_cosine_similarity(p1, p2, z1, z2, block_rows=16))

    assert jnp.allclose(loss_auto, ref, atol=1e-4, rtol=1e-4), (loss_auto, ref)
    assert jnp.allclose(loss_tiled, ref, atol=1e-4, rtol=1e-4), (loss_tiled, ref)
    print("KERNEL_OK")
</pallas_src>

<mosaic_0001>
module attributes {stable_mosaic.version = 11 : i64} {
  func.func @kernel(%arg0: i32, %arg1: memref<56x256xf32, #tpu.memory_space<vmem>>, %arg2: memref<56x256xf32, #tpu.memory_space<vmem>>, %arg3: memref<56x256xf32, #tpu.memory_space<vmem>>, %arg4: memref<56x256xf32, #tpu.memory_space<vmem>>, %arg5: memref<1x128xf32, #tpu.memory_space<vmem>>) attributes {dimension_semantics = [#tpu.dimension_semantics<parallel>], iteration_bounds = array<i64: 1>, scalar_prefetch = 0 : i64, scratch_operands = 0 : i64, tpu.core_type = #tpu.core_type<tc>, window_params = [{transform_indices = @transform_0, window_bounds = array<i64: 56, 256>}, {transform_indices = @transform_1, window_bounds = array<i64: 56, 256>}, {transform_indices = @transform_2, window_bounds = array<i64: 56, 256>}, {transform_indices = @transform_3, window_bounds = array<i64: 56, 256>}, {transform_indices = @transform_4, window_bounds = array<i64: 1, 128>}]} {
    %cst = arith.constant 1.000000e+00 : f32
    %0 = vector.broadcast %cst : f32 to vector<256x128xf32>
    %c0 = arith.constant 0 : index
    %c0_0 = arith.constant 0 : index
    %1 = vector.load %arg1[%c0, %c0_0] : memref<56x256xf32, #tpu.memory_space<vmem>>, vector<56x256xf32>
    %c0_1 = arith.constant 0 : index
    %c0_2 = arith.constant 0 : index
    %2 = vector.load %arg2[%c0_1, %c0_2] : memref<56x256xf32, #tpu.memory_space<vmem>>, vector<56x256xf32>
    %3 = arith.mulf %1, %2 : vector<56x256xf32>
    %cst_3 = arith.constant dense<0.000000e+00> : vector<56x128xf32>
    %4 = tpu.matmul %3, %0, %cst_3 {dimension_numbers = #tpu.dot_dimension_numbers<[1], [0], [0], [1], [0, 0, 1, 1], [], []>, precision = #tpu.contract_precision<fp32>} : vector<56x256xf32>, vector<256x128xf32>, vector<56x128xf32> -> vector<56x128xf32>
    %5 = vector.extract_strided_slice %4 {offsets = [0, 0], sizes = [56, 1], strides = [1, 1]} : vector<56x128xf32> to vector<56x1xf32>
    %6 = arith.mulf %1, %1 : vector<56x256xf32>
    %cst_4 = arith.constant dense<0.000000e+00> : vector<56x128xf32>
    %7 = tpu.matmul %6, %0, %cst_4 {dimension_numbers = #tpu.dot_dimension_numbers<[1], [0], [0], [1], [0, 0, 1, 1], [], []>, precision = #tpu.contract_precision<fp32>} : vector<56x256xf32>, vector<256x128xf32>, vector<56x128xf32> -> vector<56x128xf32>
    %8 = vector.extract_strided_slice %7 {offsets = [0, 0], sizes = [56, 1], strides = [1, 1]} : vector<56x128xf32> to vector<56x1xf32>
    %9 = arith.mulf %2, %2 : vector<56x256xf32>
    %cst_5 = arith.constant dense<0.000000e+00> : vector<56x128xf32>
    %10 = tpu.matmul %9, %0, %cst_5 {dimension_numbers = #tpu.dot_dimension_numbers<[1], [0], [0], [1], [0, 0, 1, 1], [], []>, precision = #tpu.contract_precision<fp32>} : vector<56x256xf32>, vector<256x128xf32>, vector<56x128xf32> -> vector<56x128xf32>
    %11 = vector.extract_strided_slice %10 {offsets = [0, 0], sizes = [56, 1], strides = [1, 1]} : vector<56x128xf32> to vector<56x1xf32>
    %12 = arith.mulf %8, %11 : vector<56x1xf32>
    %cst_6 = arith.constant 1.000000e-16 : f32
    %13 = vector.broadcast %cst_6 : f32 to vector<56x1xf32>
    %14 = arith.maximumf %12, %13 : vector<56x1xf32>
    %15 = math.rsqrt %14 : vector<56x1xf32>
    %16 = arith.mulf %5, %15 : vector<56x1xf32>
    %17 = vector.shape_cast %16 : vector<56x1xf32> to vector<1x56x1xf32>
    %cst_7 = arith.constant dense<0.000000e+00> : vector<1xf32>
    %18 = vector.multi_reduction <add>, %17, %cst_7 [1, 2] : vector<1x56x1xf32> to vector<1xf32>
    %19 = vector.shape_cast %18 : vector<1xf32> to vector<1x1x1xf32>
    %20 = vector.extract %19[0, 0, 0] : f32 from vector<1x1x1xf32>
    %c0_8 = arith.constant 0 : index
    %c0_9 = arith.constant 0 : index
    %21 = vector.load %arg3[%c0_8, %c0_9] : memref<56x256xf32, #tpu.memory_space<vmem>>, vector<56x256xf32>
    %c0_10 = arith.constant 0 : index
    %c0_11 = arith.constant 0 : index
    %22 = vector.load %arg4[%c0_10, %c0_11] : memref<56x256xf32, #tpu.memory_space<vmem>>, vector<56x256xf32>
    %23 = arith.mulf %21, %22 : vector<56x256xf32>
    %cst_12 = arith.constant dense<0.000000e+00> : vector<56x128xf32>
    %24 = tpu.matmul %23, %0, %cst_12 {dimension_numbers = #tpu.dot_dimension_numbers<[1], [0], [0], [1], [0, 0, 1, 1], [], []>, precision = #tpu.contract_precision<fp32>} : vector<56x256xf32>, vector<256x128xf32>, vector<56x128xf32> -> vector<56x128xf32>
    %25 = vector.extract_strided_slice %24 {offsets = [0, 0], sizes = [56, 1], strides = [1, 1]} : vector<56x128xf32> to vector<56x1xf32>
    %26 = arith.mulf %21, %21 : vector<56x256xf32>
    %cst_13 = arith.constant dense<0.000000e+00> : vector<56x128xf32>
    %27 = tpu.matmul %26, %0, %cst_13 {dimension_numbers = #tpu.dot_dimension_numbers<[1], [0], [0], [1], [0, 0, 1, 1], [], []>, precision = #tpu.contract_precision<fp32>} : vector<56x256xf32>, vector<256x128xf32>, vector<56x128xf32> -> vector<56x128xf32>
    %28 = vector.extract_strided_slice %27 {offsets = [0, 0], sizes = [56, 1], strides = [1, 1]} : vector<56x128xf32> to vector<56x1xf32>
    %29 = arith.mulf %22, %22 : vector<56x256xf32>
    %cst_14 = arith.constant dense<0.000000e+00> : vector<56x128xf32>
    %30 = tpu.matmul %29, %0, %cst_14 {dimension_numbers = #tpu.dot_dimension_numbers<[1], [0], [0], [1], [0, 0, 1, 1], [], []>, precision = #tpu.contract_precision<fp32>} : vector<56x256xf32>, vector<256x128xf32>, vector<56x128xf32> -> vector<56x128xf32>
    %31 = vector.extract_strided_slice %30 {offsets = [0, 0], sizes = [56, 1], strides = [1, 1]} : vector<56x128xf32> to vector<56x1xf32>
    %32 = arith.mulf %28, %31 : vector<56x1xf32>
    %cst_15 = arith.constant 1.000000e-16 : f32
    %33 = vector.broadcast %cst_15 : f32 to vector<56x1xf32>
    %34 = arith.maximumf %32, %33 : vector<56x1xf32>
    %35 = math.rsqrt %34 : vector<56x1xf32>
    %36 = arith.mulf %25, %35 : vector<56x1xf32>
    %37 = vector.shape_cast %36 : vector<56x1xf32> to vector<1x56x1xf32>
    %cst_16 = arith.constant dense<0.000000e+00> : vector<1xf32>
    %38 = vector.multi_reduction <add>, %37, %cst_16 [1, 2] : vector<1x56x1xf32> to vector<1xf32>
    %39 = vector.shape_cast %38 : vector<1xf32> to vector<1x1x1xf32>
    %40 = vector.extract %39[0, 0, 0] : f32 from vector<1x1x1xf32>
    %41 = arith.addf %20, %40 : f32
    %42 = vector.broadcast %41 : f32 to vector<1x128xf32>
    %c0_17 = arith.constant 0 : index
    %c0_18 = arith.constant 0 : index
    %43 = vector.load %arg5[%c0_17, %c0_18] : memref<1x128xf32, #tpu.memory_space<vmem>>, vector<1x128xf32>
    tpu.vector_store %arg5[%c0_17, %c0_18], %42 {strides = array<i32>} : memref<1x128xf32, #tpu.memory_space<vmem>>, vector<1x128xf32>,
    return
  }
  func.func @transform_0(%arg0: i32) -> (i32, i32) {
    %c0_i32 = arith.constant 0 : i32
    %c0_i32_0 = arith.constant 0 : i32
    return %arg0, %c0_i32 : i32, i32
  }
  func.func @transform_1(%arg0: i32) -> (i32, i32) {
    %c0_i32 = arith.constant 0 : i32
    %c0_i32_0 = arith.constant 0 : i32
    return %arg0, %c0_i32 : i32, i32
  }
  func.func @transform_2(%arg0: i32) -> (i32, i32) {
    %c0_i32 = arith.constant 0 : i32
    %c0_i32_0 = arith.constant 0 : i32
    return %arg0, %c0_i32 : i32, i32
  }
  func.func @transform_3(%arg0: i32) -> (i32, i32) {
    %c0_i32 = arith.constant 0 : i32
    %c0_i32_0 = arith.constant 0 : i32
    return %arg0, %c0_i32 : i32, i32
  }
  func.func @transform_4(%arg0: i32) -> (i32, i32) {
    %c0_i32 = arith.constant 0 : i32
    %c0_i32_0 = arith.constant 0 : i32
    return %arg0, %c0_i32 : i32, i32
  }
}

</mosaic_0001>

<llo_original>
// kernel: tpu_custom_call.1
$region0: #{tpu_custom_call.1}
  #allocation0 [shape = 'u32[]', space=smem, size = 0x4, offset = 0x4, fixed_abs, tag = 'smem constant byte address 0x4 - core index']
  #allocation1 [shape = 'u32[144,128]{1,0:T(1,128)}', space=vmem, size = 0x12000, scoped, tag = 'internal scratch']
  %s0 = inlined_call_operand.hbm [shape: f32[56,256], index: 0, kind: input, shape index: {}]
  %s1 = inlined_call_operand.hbm [shape: f32[56,256], index: 1, kind: input, shape index: {}]
  %s2 = inlined_call_operand.hbm [shape: f32[56,256], index: 2, kind: input, shape index: {}]
  %s3 = inlined_call_operand.hbm [shape: f32[56,256], index: 3, kind: input, shape index: {}]
  %s4 = inlined_call_operand.hbm [shape: f32[1,128], index: 4, kind: output, shape index: {}]
  %s5 = sld [smem:[#allocation0]]
  $region42: #{tpu_custom_call.1} parent=0
    _
  %s7 = ssub.s32 1, %s5
  %s8 = scalar_select 0, %s7, %s5
  $region1: #{tpu_custom_call.1} parent=0
    #allocation2 [shape = 'u8[57344]{0}', space=vmem, size = 0xe000, scoped, tag = 'input window, operand 0, single buffered']
    #allocation3 [shape = 's32[1]{0}', space=sflag, size = 0x4, scoped, tag = 'scoped memory for tpu_custom_call.1']
    #allocation4 [shape = 's32[1]{0}', space=sflag, size = 0x4, scoped, tag = 'scoped memory for tpu_custom_call.1']
    #allocation5 [shape = 'u8[57344]{0}', space=vmem, size = 0xe000, scoped, tag = 'input window, operand 1, single buffered']
    #allocation6 [shape = 's32[1]{0}', space=sflag, size = 0x4, scoped, tag = 'scoped memory for tpu_custom_call.1']
    #allocation7 [shape = 'u8[57344]{0}', space=vmem, size = 0xe000, scoped, tag = 'input window, operand 2, single buffered']
    #allocation8 [shape = 'u8[57344]{0}', space=vmem, size = 0xe000, scoped, tag = 'input window, operand 3, single buffered']
    #allocation9 [shape = 's32[1]{0}', space=sflag, size = 0x4, scoped, tag = 'scoped memory for tpu_custom_call.1']
    #allocation10 [shape = 'u8[512]{0}', space=vmem, size = 0x400, scoped, tag = 'output window, operand 0, single buffered']
    %9 = vsyncpa [#allocation3], 0
    %10 = vsyncpa [#allocation6], 0
    %11 = vsyncpa [#allocation9], 0
    %12 = vsyncpa [#allocation4], 0
    // Predicated region
    $region2: #{tpu_custom_call.1} parent=1 // pred_check
      _
    $region3: #{tpu_custom_call.1} parent=1 // pred_check_branch
      %14 = sbr.rel (0) target = $region5
    $region4: #{tpu_custom_call.1} parent=1 // pred_region
      %s16 = ssub.s32 1792, 1792
      %17 = vsyncadd [#allocation3], %s16
      %s18 = sshll.u32 [#allocation2], 4
      %s19 = int_to_ptr.vmem [resolvable:$true] %s18
      %24 = dma.hbm_to_vmem [thread:$0]  %s0, 1792, %s19, [#allocation3], 256, 256, 16
    $region5: #{tpu_custom_call.1} parent=1 // pred_fallthru
      _
    // Predicated region
    $region6: #{tpu_custom_call.1} parent=1 // pred_check
      _
    $region7: #{tpu_custom_call.1} parent=1 // pred_check_branch
      %26 = sbr.rel (0) target = $region9
    $region8: #{tpu_custom_call.1} parent=1 // pred_region
      %s28 = ssub.s32 1792, 1792
      %29 = vsyncadd [#allocation6], %s28
      %s30 = sshll.u32 [#allocation5], 4
      %s31 = int_to_ptr.vmem [resolvable:$true] %s30
      %36 = dma.hbm_to_vmem [thread:$0]  %s1, 1792, %s31, [#allocation6], 256, 256, 16
    $region9: #{tpu_custom_call.1} parent=1 // pred_fallthru
      _
    // Predicated region
    $region10: #{tpu_custom_call.1} parent=1 // pred_check
      _
    $region11: #{tpu_custom_call.1} parent=1 // pred_check_branch
      %38 = sbr.rel (0) target = $region13
    $region12: #{tpu_custom_call.1} parent=1 // pred_region
      %s40 = ssub.s32 1792, 1792
      %41 = vsyncadd [#allocation6], %s40
      %s42 = sshll.u32 [#allocation7], 4
      %s43 = int_to_ptr.vmem [resolvable:$true] %s42
      %48 = dma.hbm_to_vmem [thread:$0]  %s2, 1792, %s43, [#allocation6], 256, 256, 16
    $region13: #{tpu_custom_call.1} parent=1 // pred_fallthru
      _
    // Predicated region
    $region14: #{tpu_custom_call.1} parent=1 // pred_check
      _
    $region15: #{tpu_custom_call.1} parent=1 // pred_check_branch
      %50 = sbr.rel (0) target = $region17
    $region16: #{tpu_custom_call.1} parent=1 // pred_region
      %s52 = ssub.s32 1792, 1792
      %53 = vsyncadd [#allocation9], %s52
      %s54 = sshll.u32 [#allocation8], 4
      %s55 = int_to_ptr.vmem [resolvable:$true] %s54
      %60 = dma.hbm_to_vmem [thread:$0]  %s3, 1792, %s55, [#allocation9], 256, 256, 16
    $region17: #{tpu_custom_call.1} parent=1 // pred_fallthru
      _
    // Predicated region
    $region18: #{tpu_custom_call.1} parent=1 // pred_check
      _
    $region19: #{tpu_custom_call.1} parent=1 // pred_check_branch
      %62 = sbr.rel (0) target = $region21
    $region20: #{tpu_custom_call.1} parent=1 // pred_region
      %63 = dma.done [#allocation3], 1792
    $region21: #{tpu_custom_call.1} parent=1 // pred_fallthru
      _
    // Predicated region
    $region22: #{tpu_custom_call.1} parent=1 // pred_check
      _
    $region23: #{tpu_custom_call.1} parent=1 // pred_check_branch
      %65 = sbr.rel (0) target = $region25
    $region24: #{tpu_custom_call.1} parent=1 // pred_region
      %66 = dma.done [#allocation6], 1792
    $region25: #{tpu_custom_call.1} parent=1 // pred_fallthru
      _
    // Predicated region
    $region26: #{tpu_custom_call.1} parent=1 // pred_check
      _
    $region27: #{tpu_custom_call.1} parent=1 // pred_check_branch
      %68 = sbr.rel (0) target = $region29
    $region28: #{tpu_custom_call.1} parent=1 // pred_region
      %69 = dma.done [#allocation6], 1792
    $region29: #{tpu_custom_call.1} parent=1 // pred_fallthru
      _
    // Predicated region
    $region30: #{tpu_custom_call.1} parent=1 // pred_check
      _
    $region31: #{tpu_custom_call.1} parent=1 // pred_check_branch
      %71 = sbr.rel (0) target = $region33
    $region32: #{tpu_custom_call.1} parent=1 // pred_region
      %72 = dma.done [#allocation9], 1792
    $region33: #{tpu_custom_call.1} parent=1 // pred_fallthru
      _
    %v73 = vld [vmem:[#allocation2] sm:$0xff]
    %v74 = vld [vmem:[#allocation2 + $0x8] sm:$0xff]
    %v75 = vld [vmem:[#allocation2 + $0x10] sm:$0xff]
    %v76 = vld [vmem:[#allocation2 + $0x18] sm:$0xff]
    %v77 = vld [vmem:[#allocation2 + $0x20] sm:$0xff]
    %v78 = vld [vmem:[#allocation2 + $0x28] sm:$0xff]
    %v79 = vld [vmem:[#allocation2 + $0x30] sm:$0xff]
    %v80 = vld [vmem:[#allocation2 + $0x38] sm:$0xff]
    %v81 = vld [vmem:[#allocation2 + $0x40] sm:$0xff]
    %v82 = vld [vmem:[#allocation2 + $0x48] sm:$0xff]
    %v83 = vld [vmem:[#allocation2 + $0x50] sm:$0xff]
    %v84 = vld [vmem:[#allocation2 + $0x58] sm:$0xff]
    %v85 = vld [vmem:[#allocation2 + $0x60] sm:$0xff]
    %v86 = vld [vmem:[#allocation2 + $0x68] sm:$0xff]
    %v87 = vld [vmem:[#allocation5] sm:$0xff]
    %v88 = vld [vmem:[#allocation5 + $0x8] sm:$0xff]
    %v89 = vld [vmem:[#allocation5 + $0x10] sm:$0xff]
    %v90 = vld [vmem:[#allocation5 + $0x18] sm:$0xff]
    %v91 = vld [vmem:[#allocation5 + $0x20] sm:$0xff]
    %v92 = vld [vmem:[#allocation5 + $0x28] sm:$0xff]
    %v93 = vld [vmem:[#allocation5 + $0x30] sm:$0xff]
    %v94 = vld [vmem:[#allocation5 + $0x38] sm:$0xff]
    %v95 = vld [vmem:[#allocation5 + $0x40] sm:$0xff]
    %v96 = vld [vmem:[#allocation5 + $0x48] sm:$0xff]
    %v97 = vld [vmem:[#allocation5 + $0x50] sm:$0xff]
    %v98 = vld [vmem:[#allocation5 + $0x58] sm:$0xff]
    %v99 = vld [vmem:[#allocation5 + $0x60] sm:$0xff]
    %v100 = vld [vmem:[#allocation5 + $0x68] sm:$0xff]
    %v101 = vmul.f32 %v73, %v87
    %v102 = vmul.f32 %v74, %v88
    %v103 = vmul.f32 %v75, %v89
    %v104 = vmul.f32 %v76, %v90
    %v105 = vmul.f32 %v77, %v91
    %v106 = vmul.f32 %v78, %v92
    %v107 = vmul.f32 %v79, %v93
    %v108 = vmul.f32 %v80, %v94
    %v109 = vmul.f32 %v81, %v95
    %v110 = vmul.f32 %v82, %v96
    %v111 = vmul.f32 %v83, %v97
    %v112 = vmul.f32 %v84, %v98
    %v113 = vmul.f32 %v85, %v99
    %v114 = vmul.f32 %v86, %v100
    %115 = vmatprep.subr.mxu0 0.0
    %116 = vmatpush1.msra.mxu0 1.0
    %117 = vmatprep.subr.mxu0 0.0
    %118 = vmatpush1.msra.mxu0 1.0
    %119 = vmatprep.subr.mxu0 0.0
    %120 = vmatpush1.msra.mxu0 1.0
    %121 = vmatprep.subr.mxu0 0.0
    %122 = vmatpush1.msra.mxu0 1.0
    %123 = vmatprep.subr.mxu0 0.0
    %124 = vmatpush1.msra.mxu0 1.0
    %125 = vmatprep.subr.mxu0 0.0
    %126 = vmatpush1.msra.mxu0 1.0
    %127 = vmatprep.subr.mxu0 0.0
    %128 = vmatpush1.msra.mxu0 1.0
    %129 = vmatprep.subr.mxu0 0.0
    %130 = vmatpush1.msra.mxu0 1.0
    %131 = vmatprep.subr.mxu0 0.0
    %132 = vmatpush1.msra.mxu0 1.0
    %133 = vmatprep.subr.mxu0 0.0
    %134 = vmatpush1.msra.mxu0 1.0
    %135 = vmatprep.subr.mxu0 0.0
    %136 = vmatpush1.msra.mxu0 1.0
    %137 = vmatprep.subr.mxu0 0.0
    %138 = vmatpush1.msra.mxu0 1.0
    %139 = vmatprep.subr.mxu0 0.0
    %140 = vmatpush1.msra.mxu0 1.0
    %141 = vmatprep.subr.mxu0 0.0
    %142 = vmatpush1.msra.mxu0 1.0
    %143 = vmatprep.subr.mxu0 0.0
    %144 = vmatpush1.msra.mxu0 1.0
    %145 = vmatprep.subr.mxu0 0.0
    %146 = vmatpush1.msra.mxu0 1.0
    %147 = vmatprep.subr.mxu0 0.0
    %148 = vmatpush1.msra.mxu0 1.0
    %149 = vmatprep.subr.mxu0 0.0
    %150 = vmatpush1.msra.mxu0 1.0
    %151 = vmatprep.subr.mxu0 0.0
    %152 = vmatpush1.msra.mxu0 1.0
    %153 = vmatprep.subr.mxu0 0.0
    %154 = vmatpush1.msra.mxu0 1.0
    %155 = vmatprep.subr.mxu0 0.0
    %156 = vmatpush1.msra.mxu0 1.0
    %157 = vmatprep.subr.mxu0 0.0
    %158 = vmatpush1.msra.mxu0 1.0
    %159 = vmatprep.subr.mxu0 0.0
    %160 = vmatpush1.msra.mxu0 1.0
    %161 = vmatprep.subr.mxu0 0.0
    %162 = vmatpush1.msra.mxu0 1.0
    %163 = vmatprep.subr.mxu0 0.0
    %164 = vmatpush1.msra.mxu0 1.0
    %165 = vmatprep.subr.mxu0 0.0
    %166 = vmatpush1.msra.mxu0 1.0
    %167 = vmatprep.subr.mxu0 0.0
    %168 = vmatpush1.msra.mxu0 1.0
    %169 = vmatprep.subr.mxu0 0.0
    %170 = vmatpush1.msra.mxu0 1.0
    %171 = vmatprep.subr.mxu0 0.0
    %172 = vmatpush1.msra.mxu0 1.0
    %173 = vmatprep.subr.mxu0 0.0
    %174 = vmatpush1.msra.mxu0 1.0
    %175 = vmatprep.subr.mxu0 0.0
    %176 = vmatpush1.msra.mxu0 1.0
    %177 = vmatprep.subr.mxu0 0.0
    %178 = vmatpush1.msra.mxu0 1.0
    %v179 = vand.u32 %v102, 4294901760
    %v180 = vsub.f32 %v102, %v179
    %v181 = vand.u32 %v180, 4294901760
    %v182 = vsub.f32 %v180, %v181
    %v183 = vand.u32 %v182, 4294901760
    %184 = vmatprep.mubr.f32.mxu0 %v183
    %v185 = vand.u32 %v101, 4294901760
    %v186 = vsub.f32 %v101, %v185
    %v187 = vand.u32 %v186, 4294901760
    %v188 = vsub.f32 %v186, %v187
    %v189 = vand.u32 %v188, 4294901760
    %190 = vmatmul.mubr.f32.gmra.mrb[0].mxu0 %v189
    %v191 = vpop.f32.mrb[0].mxu0
    %v192 = vadd.f32 0.0, %v191
    %v193 = vpop.f32.mrb[0].mxu0
    %v194 = vand.u32 %v104, 4294901760
    %v195 = vsub.f32 %v104, %v194
    %v196 = vand.u32 %v195, 4294901760
    %v197 = vsub.f32 %v195, %v196
    %v198 = vand.u32 %v197, 4294901760
    %199 = vmatprep.mubr.f32.mxu0 %v198
    %v200 = vand.u32 %v103, 4294901760
    %v201 = vsub.f32 %v103, %v200
    %v202 = vand.u32 %v201, 4294901760
    %v203 = vsub.f32 %v201, %v202
    %v204 = vand.u32 %v203, 4294901760
    %205 = vmatmul.mubr.f32.gmra.mrb[0].mxu0 %v204
    %v206 = vpop.f32.mrb[0].mxu0
    %v207 = vadd.f32 0.0, %v206
    %v208 = vpop.f32.mrb[0].mxu0
    %v209 = vand.u32 %v106, 4294901760
    %v210 = vsub.f32 %v106, %v209
    %v211 = vand.u32 %v210, 4294901760
    %v212 = vsub.f32 %v210, %v211
    %v213 = vand.u32 %v212, 4294901760
    %214 = vmatprep.mubr.f32.mxu0 %v213
    %v215 = vand.u32 %v105, 4294901760
    %v216 = vsub.f32 %v105, %v215
    %v217 = vand.u32 %v216, 4294901760
    %v218 = vsub.f32 %v216, %v217
    %v219 = vand.u32 %v218, 4294901760
    %220 = vmatmul.mubr.f32.gmra.mrb[0].mxu0 %v219
    %v221 = vpop.f32.mrb[0].mxu0
    %v222 = vadd.f32 0.0, %v221
    %v223 = vpop.f32.mrb[0].mxu0
    %v224 = vand.u32 %v108, 4294901760
    %v225 = vsub.f32 %v108, %v224
    %v226 = vand.u32 %v225, 4294901760
    %v227 = vsub.f32 %v225, %v226
    %v228 = vand.u32 %v227, 4294901760
    %229 = vmatprep.mubr.f32.mxu0 %v228
    %v230 = vand.u32 %v107, 4294901760
    %v231 = vsub.f32 %v107, %v230
    %v232 = vand.u32 %v231, 4294901760
    %v233 = vsub.f32 %v231, %v232
    %v234 = vand.u32 %v233, 4294901760
    %235 = vmatmul.mubr.f32.gmra.mrb[0].mxu0 %v234
    %v236 = vpop.f32.mrb[0].mxu0
    %v237 = vadd.f32 0.0, %v236
    %v238 = vpop.f32.mrb[0].mxu0
    %v239 = vand.u32 %v110, 4294901760
    %v240 = vsub.f32 %v110, %v239
    %v241 = vand.u32 %v240, 4294901760
    %v242 = vsub.f32 %v240, %v241
    %v243 = vand.u32 %v242, 4294901760
    %244 = vmatprep.mubr.f32.mxu0 %v243
    %v245 = vand.u32 %v109, 4294901760
    %v246 = vsub.f32 %v109, %v245
    %v247 = vand.u32 %v246, 4294901760
    %v248 = vsub.f32 %v246, %v247
    %v249 = vand.u32 %v248, 4294901760
    %250 = vmatmul.mubr.f32.gmra.mrb[0].mxu0 %v249
    %v251 = vpop.f32.mrb[0].mxu0
    %v252 = vadd.f32 0.0, %v251
    %v253 = vpop.f32.mrb[0].mxu0
    %v254 = vand.u32 %v112, 4294901760
    %v255 = vsub.f32 %v112, %v254
    %v256 = vand.u32 %v255, 4294901760
    %v257 = vsub.f32 %v255, %v256
    %v258 = vand.u32 %v257, 4294901760
    %259 = vmatprep.mubr.f32.mxu0 %v258
    %v260 = vand.u32 %v111, 4294901760
    %v261 = vsub.f32 %v111, %v260
    %v262 = vand.u32 %v261, 4294901760
    %v263 = vsub.f32 %v261, %v262
    %v264 = vand.u32 %v263, 4294901760
    %265 = vmatmul.mubr.f32.gmra.mrb[0].mxu0 %v264
    %v266 = vpop.f32.mrb[0].mxu0
    %v267 = vadd.f32 0.0, %v266
    %v268 = vpop.f32.mrb[0].mxu0
    %v269 = vand.u32 %v114, 4294901760
    %v270 = vsub.f32 %v114, %v269
    %v271 = vand.u32 %v270, 4294901760
    %v272 = vsub.f32 %v270, %v271
    %v273 = vand.u32 %v272, 4294901760
    %274 = vmatprep.mubr.f32.mxu0 %v273
    %v275 = vand.u32 %v113, 4294901760
    %v276 = vsub.f32 %v113, %v275
    %v277 = vand.u32 %v276, 4294901760
    %v278 = vsub.f32 %v276, %v277
    %v279 = vand.u32 %v278, 4294901760
    %280 = vmatmul.mubr.f32.gmra.mrb[0].mxu0 %v279
    %v281 = vpop.f32.mrb[0].mxu0
    %v282 = vadd.f32 0.0, %v281
    %v283 = vpop.f32.mrb[0].mxu0
    %284 = vdwg.mxu0
    %285 = vmatprep.subr.mxu0 0.0
    %286 = vmatpush1.msra.mxu0 0.0
    %287 = vmatprep.subr.mxu0 0.0
    %288 = vmatpush1.msra.mxu0 0.0
    %289 = vmatprep.subr.mxu0 0.0
    %290 = vmatpush1.msra.mxu0 0.0
    %291 = vmatprep.subr.mxu0 0.0
    %292 = vmatpush1.msra.mxu0 0.0
    %293 = vmatprep.subr.mxu0 0.0
    %294 = vmatpush1.msra.mxu0 0.0
    %295 = vmatprep.subr.mxu0 0.0
    %296 = vmatpush1.msra.mxu0 0.0
    %297 = vmatprep.subr.mxu0 0.0
    %298 = vmatpush1.msra.mxu0 0.0
    %299 = vmatprep.subr.mxu0 0.0
    %300 = vmatpush1.msra.mxu0 0.0
    %301 = vmatprep.subr.mxu0 0.0
    %302 = vmatpush1.msra.mxu0 0.0
    %303 = vmatprep.subr.mxu0 0.0
    %304 = vmatpush1.msra.mxu0 0.0
    %305 = vmatprep.subr.mxu0 0.0
    %306 = vmatpush1.msra.mxu0 0.0
    %307 = vmatprep.subr.mxu0 0.0
    %308 = vmatpush1.msra.mxu0 0.0
    %309 = vmatprep.subr.mxu0 0.0
    %310 = vmatpush1.msra.mxu0 0.0
    %311 = vmatprep.subr.mxu0 0.0
    %312 = vmatpush1.msra.mxu0 0.0
    %313 = vmatprep.subr.mxu0 0.0
    %314 = vmatpush1.msra.mxu0 0.0
    %315 = vmatprep.subr.mxu0 0.0
    %316 = vmatpush1.msra.mxu0 0.0
    %317 = vmatprep.subr.mxu0 0.0
    %318 = vmatpush1.msra.mxu0 0.0
    %319 = vmatprep.subr.mxu0 0.0
    %320 = vmatpush1.msra.mxu0 0.0
    %321 = vmatprep.subr.mxu0 0.0
    %322 = vmatpush1.msra.mxu0 0.0
    %323 = vmatprep.subr.mxu0 0.0
    %324 = vmatpush1.msra.mxu0 0.0
    %325 = vmatprep.subr.mxu0 0.0
    %326 = vmatpush1.msra.mxu0 0.0
    %327 = vmatprep.subr.mxu0 0.0
    %328 = vmatpush1.msra.mxu0 0.0
    %329 = vmatprep.subr.mxu0 0.0
    %330 = vmatpush1.msra.mxu0 0.0
    %331 = vmatprep.subr.mxu0 0.0
    %332 = vmatpush1.msra.mxu0 0.0
    %333 = vmatprep.subr.mxu0 0.0
    %334 = vmatpush1.msra.mxu0 0.0
    %335 = vmatprep.subr.mxu0 0.0
    %336 = vmatpush1.msra.mxu0 0.0
    %337 = vmatprep.subr.mxu0 0.0
    %338 = vmatpush1.msra.mxu0 0.0
    %339 = vmatprep.subr.mxu0 0.0
    %340 = vmatpush1.msra.mxu0 0.0
    %341 = vmatprep.subr.mxu0 0.0
    %342 = vmatpush1.msra.mxu0 0.0
    %343 = vmatprep.subr.mxu0 0.0
    %344 = vmatpush1.msra.mxu0 0.0
    %345 = vmatprep.subr.mxu0 0.0
    %346 = vmatpush1.msra.mxu0 0.0
    %347 = vmatprep.subr.mxu0 0.0
    %348 = vmatpush1.msra.mxu0 0.0
    %v349 = vand.u32 %v102, 4294901760
    %350 = vmatprep.mubr.f32.mxu0 %v349
    %v351 = vand.u32 %v101, 4294901760
    %352 = vmatmul.mubr.f32.gmra.mrb[0].mxu0 %v351
    %v353 = vpop.f32.mrb[0].mxu0
    %v354 = vadd.f32 %v192, %v353
    %v355 = vpop.f32.mrb[0].mxu0
    %v356 = vand.u32 %v104, 4294901760
    %357 = vmatprep.mubr.f32.mxu0 %v356
    %v358 = vand.u32 %v103, 4294901760
    %359 = vmatmul.mubr.f32.gmra.mrb[0].mxu0 %v358
    %v360 = vpop.f32.mrb[0].mxu0
    %v361 = vadd.f32 %v207, %v360
    %v362 = vpop.f32.mrb[0].mxu0
    %v363 = vand.u32 %v106, 4294901760
    %364 = vmatprep.mubr.f32.mxu0 %v363
    %v365 = vand.u32 %v105, 4294901760
    %366 = vmatmul.mubr.f32.gmra.mrb[0].mxu0 %v365
    %v367 = vpop.f32.mrb[0].mxu0
    %v368 = vadd.f32 %v222, %v367
    %v369 = vpop.f32.mrb[0].mxu0
    %v370 = vand.u32 %v108, 4294901760
    %371 = vmatprep.mubr.f32.mxu0 %v370
    %v372 = vand.u32 %v107, 4294901760
    %373 = vmatmul.mubr.f32.gmra.mrb[0].mxu0 %v372
    %v374 = vpop.f32.mrb[0].mxu0
    %v375 = vadd.f32 %v237, %v374
    %v376 = vpop.f32.mrb[0].mxu0
    %v377 = vand.u32 %v110, 4294901760
    %378 = vmatprep.mubr.f32.mxu0 %v377
    %v379 = vand.u32 %v109, 4294901760
    %380 = vmatmul.mubr.f32.gmra.mrb[0].mxu0 %v379
    %v381 = vpop.f32.mrb[0].mxu0
    %v382 = vadd.f32 %v252, %v381
    %v383 = vpop.f32.mrb[0].mxu0
    %v384 = vand.u32 %v112, 4294901760
    %385 = vmatprep.mubr.f32.mxu0 %v384
    %v386 = vand.u32 %v111, 4294901760
    %387 = vmatmul.mubr.f32.gmra.mrb[0].mxu0 %v386
    %v388 = vpop.f32.mrb[0].mxu0
    %v389 = vadd.f32 %v267, %v388
    %v390 = vpop.f32.mrb[0].mxu0
    %v391 = vand.u32 %v114, 4294901760
    %392 = vmatprep.mubr.f32.mxu0 %v391
    %v393 = vand.u32 %v113, 4294901760
    %394 = vmatmul.mubr.f32.gmra.mrb[0].mxu0 %v393
    %v395 = vpop.f32.mrb[0].mxu0
    %v396 = vadd.f32 %v282, %v395
    %v397 = vpop.f32.mrb[0].mxu0
    %398 = vdwg.mxu0
    %399 = vmatprep.subr.mxu0 0.0
    %400 = vmatpush1.msra.mxu0 0.0
    %401 = vmatprep.subr.mxu0 0.0
    %402 = vmatpush1.msra.mxu0 0.0
    %403 = vmatprep.subr.mxu0 0.0
    %404 = vmatpush1.msra.mxu0 0.0
    %405 = vmatprep.subr.mxu0 0.0
    %406 = vmatpush1.msra.mxu0 0.0
    %407 = vmatprep.subr.mxu0 0.0
    %408 = vmatpush1.msra.mxu0 0.0
    %409 = vmatprep.subr.mxu0 0.0
    %410 = vmatpush1.msra.mxu0 0.0
    %411 = vmatprep.subr.mxu0 0.0
    %412 = vmatpush1.msra.mxu0 0.0
    %413 = vmatprep.subr.mxu0 0.0
    %414 = vmatpush1.msra.mxu0 0.0
    %415 = vmatprep.subr.mxu0 0.0
    %416 = vmatpush1.msra.mxu0 0.0
    %417 = vmatprep.subr.mxu0 0.0
    %418 = vmatpush1.msra.mxu0 0.0
    %419 = vmatprep.subr.mxu0 0.0
    %420 = vmatpush1.msra.mxu0 0.0
    %421 = vmatprep.subr.mxu0 0.0
    %422 = vmatpush1.msra.mxu0 0.0
    %423 = vmatprep.subr.mxu0 0.0
    %424 = vmatpush1.msra.mxu0 0.0
    %425 = vmatprep.subr.mxu0 0.0
    %426 = vmatpush1.msra.mxu0 0.0
    %427 = vmatprep.subr.mxu0 0.0
    %428 = vmatpush1.msra.mxu0 0.0
    %429 = vmatprep.subr.mxu0 0.0
    %430 = vmatpush1.msra.mxu0 0.0
    %431 = vmatprep.subr.mxu0 0.0
    %432 = vmatpush1.msra.mxu0 0.0
    %433 = vmatprep.subr.mxu0 0.0
    %434 = vmatpush1.msra.mxu0 0.0
    %435 = vmatprep.subr.mxu0 0.0
    %436 = vmatpush1.msra.mxu0 0.0
    %437 = vmatprep.subr.mxu0 0.0
    %438 = vmatpush1.msra.mxu0 0.0
    %439 = vmatprep.subr.mxu0 0.0
    %440 = vmatpush1.msra.mxu0 0.0
    %441 = vmatprep.subr.mxu0 0.0
    %442 = vmatpush1.msra.mxu0 0.0
    %443 = vmatprep.subr.mxu0 0.0
    %444 = vmatpush1.msra.mxu0 0.0
    %445 = vmatprep.subr.mxu0 0.0
    %446 = vmatpush1.msra.mxu0 0.0
    %447 = vmatprep.subr.mxu0 0.0
    %448 = vmatpush1.msra.mxu0 0.0
    %449 = vmatprep.subr.mxu0 0.0
    %450 = vmatpush1.msra.mxu0 0.0
    %451 = vmatprep.subr.mxu0 0.0
    %452 = vmatpush1.msra.mxu0 0.0
    %453 = vmatprep.subr.mxu0 0.0
    %454 = vmatpush1.msra.mxu0 0.0
    %455 = vmatprep.subr.mxu0 0.0
    %456 = vmatpush1.msra.mxu0 0.0
    %457 = vmatprep.subr.mxu0 0.0
    %458 = vmatpush1.msra.mxu0 0.0
    %459 = vmatprep.subr.mxu0 0.0
    %460 = vmatpush1.msra.mxu0 0.0
    %461 = vmatprep.subr.mxu0 0.0
    %462 = vmatpush1.msra.mxu0 0.0
    %v463 = vand.u32 %v102, 4294901760
    %v464 = vsub.f32 %v102, %v463
    %465 = vmatprep.mubr.f32.mxu0 %v464
    %v466 = vand.u32 %v101, 4294901760
    %v467 = vsub.f32 %v101, %v466
    %468 = vmatmul.mubr.f32.gmra.mrb[0].mxu0 %v467
    %v469 = vpop.f32.mrb[0].mxu0
    %v470 = vadd.f32 %v354, %v469
    %v471 = vpop.f32.mrb[0].mxu0
    %v472 = vand.u32 %v104, 4294901760
    %v473 = vsub.f32 %v104, %v472
    %474 = vmatprep.mubr.f32.mxu0 %v473
    %v475 = vand.u32 %v103, 4294901760
    %v476 = vsub.f32 %v103, %v475
    %477 = vmatmul.mubr.f32.gmra.mrb[0].mxu0 %v476
    %v478 = vpop.f32.mrb[0].mxu0
    %v479 = vadd.f32 %v361, %v478
    %v480 = vpop.f32.mrb[0].mxu0
    %v481 = vand.u32 %v106, 4294901760
    %v482 = vsub.f32 %v106, %v481
    %483 = vmatprep.mubr.f32.mxu0 %v482
    %v484 = vand.u32 %v105, 4294901760
    %v485 = vsub.f32 %v105, %v484
    %486 = vmatmul.mubr.f32.gmra.mrb[0].mxu0 %v485
    %v487 = vpop.f32.mrb[0].mxu0
    %v488 = vadd.f32 %v368, %v487
    %v489 = vpop.f32.mrb[0].mxu0
    %v490 = vand.u32 %v108, 4294901760
    %v491 = vsub.f32 %v108, %v490
    %492 = vmatprep.mubr.f32.mxu0 %v491
    %v493 = vand.u32 %v107, 4294901760
    %v494 = vsub.f32 %v107, %v493
    %495 = vmatmul.mubr.f32.gmra.mrb[0].mxu0 %v494
    %v496 = vpop.f32.mrb[0].mxu0
    %v497 = vadd.f32 %v375, %v496
    %v498 = vpop.f32.mrb[0].mxu0
    %v499 = vand.u32 %v110, 4294901760
    %v500 = vsub.f32 %v110, %v499
    %501 = vmatprep.mubr.f32.mxu0 %v500
    %v502 = vand.u32 %v109, 4294901760
    %v503 = vsub.f32 %v109, %v502
    %504 = vmatmul.mubr.f32.gmra.mrb[0].mxu0 %v503
    %v505 = vpop.f32.mrb[0].mxu0
    %v506 = vadd.f32 %v382, %v505
    %v507 = vpop.f32.mrb[0].mxu0
    %v508 = vand.u32 %v112, 4294901760
    %v509 = vsub.f32 %v112, %v508
    %510 = vmatprep.mubr.f32.mxu0 %v509
    %v511 = vand.u32 %v111, 4294901760
    %v512 = vsub.f32 %v111, %v511
    %513 = vmatmul.mubr.f32.gmra.mrb[0].mxu0 %v512
    %v514 = vpop.f32.mrb[0].mxu0
    %v515 = vadd.f32 %v389, %v514
    %v516 = vpop.f32.mrb[0].mxu0
    %v517 = vand.u32 %v114, 4294901760
    %v518 = vsub.f32 %v114, %v517
    %519 = vmatprep.mubr.f32.mxu0 %v518
    %v520 = vand.u32 %v113, 4294901760
    %v521 = vsub.f32 %v113, %v520
    %522 = vmatmul.mubr.f32.gmra.mrb[0].mxu0 %v521
    %v523 = vpop.f32.mrb[0].mxu0
    %v524 = vadd.f32 %v396, %v523
    %v525 = vpop.f32.mrb[0].mxu0
    %526 = vdwg.mxu0
    %527 = vmatprep.subr.mxu0 0.0
    %528 = vmatpush1.msra.mxu0 1.0
    %529 = vmatprep.subr.mxu0 0.0
    %530 = vmatpush1.msra.mxu0 1.0
    %531 = vmatprep.subr.mxu0 0.0
    %532 = vmatpush1.msra.mxu0 1.0
    %533 = vmatprep.subr.mxu0 0.0
    %534 = vmatpush1.msra.mxu0 1.0
    %535 = vmatprep.subr.mxu0 0.0
    %536 = vmatpush1.msra.mxu0 1.0
    %537 = vmatprep.subr.mxu0 0.0
    %538 = vmatpush1.msra.mxu0 1.0
    %539 = vmatprep.subr.mxu0 0.0
    %540 = vmatpush1.msra.mxu0 1.0
    %541 = vmatprep.subr.mxu0 0.0
    %542 = vmatpush1.msra.mxu0 1.0
    %543 = vmatprep.subr.mxu0 0.0
    %544 = vmatpush1.msra.mxu0 1.0
    %545 = vmatprep.subr.mxu0 0.0
    %546 = vmatpush1.msra.mxu0 1.0
    %547 = vmatprep.subr.mxu0 0.0
    %548 = vmatpush1.msra.mxu0 1.0
    %549 = vmatprep.subr.mxu0 0.0
    %550 = vmatpush1.msra.mxu0 1.0
    %551 = vmatprep.subr.mxu0 0.0
    %552 = vmatpush1.msra.mxu0 1.0
    %553 = vmatprep.subr.mxu0 0.0
    %554 = vmatpush1.msra.mxu0 1.0
    %555 = vmatprep.subr.mxu0 0.0
    %556 = vmatpush1.msra.mxu0 1.0
    %557 = vmatprep.subr.mxu0 0.0
    %558 = vmatpush1.msra.mxu0 1.0
    %559 = vmatprep.subr.mxu0 0.0
    %560 = vmatpush1.msra.mxu0 1.0
    %561 = vmatprep.subr.mxu0 0.0
    %562 = vmatpush1.msra.mxu0 1.0
    %563 = vmatprep.subr.mxu0 0.0
    %564 = vmatpush1.msra.mxu0 1.0
    %565 = vmatprep.subr.mxu0 0.0
    %566 = vmatpush1.msra.mxu0 1.0
    %567 = vmatprep.subr.mxu0 0.0
    %568 = vmatpush1.msra.mxu0 1.0
    %569 = vmatprep.subr.mxu0 0.0
    %570 = vmatpush1.msra.mxu0 1.0
    %571 = vmatprep.subr.mxu0 0.0
    %572 = vmatpush1.msra.mxu0 1.0
    %573 = vmatprep.subr.mxu0 0.0
    %574 = vmatpush1.msra.mxu0 1.0
    %575 = vmatprep.subr.mxu0 0.0
    %576 = vmatpush1.msra.mxu0 1.0
    %577 = vmatprep.subr.mxu0 0.0
    %578 = vmatpush1.msra.mxu0 1.0
    %579 = vmatprep.subr.mxu0 0.0
    %580 = vmatpush1.msra.mxu0 1.0
    %581 = vmatprep.subr.mxu0 0.0
    %582 = vmatpush1.msra.mxu0 1.0
    %583 = vmatprep.subr.mxu0 0.0
    %584 = vmatpush1.msra.mxu0 1.0
    %585 = vmatprep.subr.mxu0 0.0
    %586 = vmatpush1.msra.mxu0 1.0
    %587 = vmatprep.subr.mxu0 0.0
    %588 = vmatpush1.msra.mxu0 1.0
    %589 = vmatprep.subr.mxu0 0.0
    %590 = vmatpush1.msra.mxu0 1.0
    %v591 = vand.u32 %v102, 4294901760
    %v592 = vsub.f32 %v102, %v591
    %v593 = vand.u32 %v592, 4294901760
    %594 = vmatprep.mubr.f32.mxu0 %v593
    %v595 = vand.u32 %v101, 4294901760
    %v596 = vsub.f32 %v101, %v595
    %v597 = vand.u32 %v596, 4294901760
    %598 = vmatmul.mubr.f32.gmra.mrb[0].mxu0 %v597
    %v599 = vpop.f32.mrb[0].mxu0
    %v600 = vadd.f32 %v470, %v599
    %v601 = vpop.f32.mrb[0].mxu0
    %v602 = vand.u32 %v104, 4294901760
    %v603 = vsub.f32 %v104, %v602
    %v604 = vand.u32 %v603, 4294901760
    %605 = vmatprep.mubr.f32.mxu0 %v604
    %v606 = vand.u32 %v103, 4294901760
    %v607 = vsub.f32 %v103, %v606
    %v608 = vand.u32 %v607, 4294901760
    %609 = vmatmul.mubr.f32.gmra.mrb[0].mxu0 %v608
    %v610 = vpop.f32.mrb[0].mxu0
    %v611 = vadd.f32 %v479, %v610
    %v612 = vpop.f32.mrb[0].mxu0
    %v613 = vand.u32 %v106, 4294901760
    %v614 = vsub.f32 %v106, %v613
    %v615 = vand.u32 %v614, 4294901760
    %616 = vmatprep.mubr.f32.mxu0 %v615
    %v617 = vand.u32 %v105, 4294901760
    %v618 = vsub.f32 %v105, %v617
    %v619 = vand.u32 %v618, 4294901760
    %620 = vmatmul.mubr.f32.gmra.mrb[0].mxu0 %v619
    %v621 = vpop.f32.mrb[0].mxu0
    %v622 = vadd.f32 %v488, %v621
    %v623 = vpop.f32.mrb[0].mxu0
    %v624 = vand.u32 %v108, 4294901760
    %v625 = vsub.f32 %v108, %v624
    %v626 = vand.u32 %v625, 4294901760
    %627 = vmatprep.mubr.f32.mxu0 %v626
    %v628 = vand.u32 %v107, 4294901760
    %v629 = vsub.f32 %v107, %v628
    %v630 = vand.u32 %v629, 4294901760
    %631 = vmatmul.mubr.f32.gmra.mrb[0].mxu0 %v630
    %v632 = vpop.f32.mrb[0].mxu0
    %v633 = vadd.f32 %v497, %v632
    %v634 = vpop.f32.mrb[0].mxu0
    %v635 = vand.u32 %v110, 4294901760
    %v636 = vsub.f32 %v110, %v635
    %v637 = vand.u32 %v636, 4294901760
    %638 = vmatprep.mubr.f32.mxu0 %v637
    %v639 = vand.u32 %v109, 4294901760
    %v640 = vsub.f32 %v109, %v639
    %v641 = vand.u32 %v640, 4294901760
    %642 = vmatmul.mubr.f32.gmra.mrb[0].mxu0 %v641
    %v643 = vpop.f32.mrb[0].mxu0
    %v644 = vadd.f32 %v506, %v643
    %v645 = vpop.f32.mrb[0].mxu0
    %v646 = vand.u32 %v112, 4294901760
    %v647 = vsub.f32 %v112, %v646
    %v648 = vand.u32 %v647, 4294901760
    %649 = vmatprep.mubr.f32.mxu0 %v648
    %v650 = vand.u32 %v111, 4294901760
    %v651 = vsub.f32 %v111, %v650
    %v652 = vand.u32 %v651, 4294901760
    %653 = vmatmul.mubr.f32.gmra.mrb[0].mxu0 %v652
    %v654 = vpop.f32.mrb[0].mxu0
    %v655 = vadd.f32 %v515, %v654
    %v656 = vpop.f32.mrb[0].mxu0
    %v657 = vand.u32 %v114, 4294901760
    %v658 = vsub.f32 %v114, %v657
    %v659 = vand.u32 %v658, 4294901760
    %660 = vmatprep.mubr.f32.mxu0 %v659
    %v661 = vand.u32 %v113, 4294901760
    %v662 = vsub.f32 %v113, %v661
    %v663 = vand.u32 %v662, 4294901760
    %664 = vmatmul.mubr.f32.gmra.mrb[0].mxu0 %v663
    %v665 = vpop.f32.mrb[0].mxu0
    %v666 = vadd.f32 %v524, %v665
    %v667 = vpop.f32.mrb[0].mxu0
    %668 = vdwg.mxu0
    %669 = vmatprep.subr.mxu0 0.0
    %670 = vmatpush1.msra.mxu0 0.0
    %671 = vmatprep.subr.mxu0 0.0
    %672 = vmatpush1.msra.mxu0 0.0
    %673 = vmatprep.subr.mxu0 0.0
    %674 = vmatpush1.msra.mxu0 0.0
    %675 = vmatprep.subr.mxu0 0.0
    %676 = vmatpush1.msra.mxu0 0.0
    %677 = vmatprep.subr.mxu0 0.0
    %678 = vmatpush1.msra.mxu0 0.0
    %679 = vmatprep.subr.mxu0 0.0
    %680 = vmatpush1.msra.mxu0 0.0
    %681 = vmatprep.subr.mxu0 0.0
    %682 = vmatpush1.msra.mxu0 0.0
    %683 = vmatprep.subr.mxu0 0.0
    %684 = vmatpush1.msra.mxu0 0.0
    %685 = vmatprep.subr.mxu0 0.0
    %686 = vmatpush1.msra.mxu0 0.0
    %687 = vmatprep.subr.mxu0 0.0
    %688 = vmatpush1.msra.mxu0 0.0
    %689 = vmatprep.subr.mxu0 0.0
    %690 = vmatpush1.msra.mxu0 0.0
    %691 = vmatprep.subr.mxu0 0.0
    %692 = vmatpush1.msra.mxu0 0.0
    %693 = vmatprep.subr.mxu0 0.0
    %694 = vmatpush1.msra.mxu0 0.0
    %695 = vmatprep.subr.mxu0 0.0
    %696 = vmatpush1.msra.mxu0 0.0
    %697 = vmatprep.subr.mxu0 0.0
    %698 = vmatpush1.msra.mxu0 0.0
    %699 = vmatprep.subr.mxu0 0.0
    %700 = vmatpush1.msra.mxu0 0.0
    %701 = vmatprep.subr.mxu0 0.0
    %702 = vmatpush1.msra.mxu0 0.0
    %703 = vmatprep.subr.mxu0 0.0
    %704 = vmatpush1.msra.mxu0 0.0
    %705 = vmatprep.subr.mxu0 0.0
    %706 = vmatpush1.msra.mxu0 0.0
    %707 = vmatprep.subr.mxu0 0.0
    %708 = vmatpush1.msra.mxu0 0.0
    %709 = vmatprep.subr.mxu0 0.0
    %710 = vmatpush1.msra.mxu0 0.0
    %711 = vmatprep.subr.mxu0 0.0
    %712 = vmatpush1.msra.mxu0 0.0
    %713 = vmatprep.subr.mxu0 0.0
    %714 = vmatpush1.msra.mxu0 0.0
    %715 = vmatprep.subr.mxu0 0.0
    %716 = vmatpush1.msra.mxu0 0.0
    %717 = vmatprep.subr.mxu0 0.0
    %718 = vmatpush1.msra.mxu0 0.0
    %719 = vmatprep.subr.mxu0 0.0
    %720 = vmatpush1.msra.mxu0 0.0
    %721 = vmatprep.subr.mxu0 0.0
    %722 = vmatpush1.msra.mxu0 0.0
    %723 = vmatprep.subr.mxu0 0.0
    %724 = vmatpush1.msra.mxu0 0.0
    %725 = vmatprep.subr.mxu0 0.0
    %726 = vmatpush1.msra.mxu0 0.0
    %727 = vmatprep.subr.mxu0 0.0
    %728 = vmatpush1.msra.mxu0 0.0
    %729 = vmatprep.subr.mxu0 0.0
    %730 = vmatpush1.msra.mxu0 0.0
    %731 = vmatprep.subr.mxu0 0.0
    %732 = vmatpush1.msra.mxu0 0.0
    %v733 = vand.u32 %v102, 4294901760
    %734 = vmatprep.mubr.f32.mxu0 %v733
    %v735 = vand.u32 %v101, 4294901760
    %736 = vmatmul.mubr.f32.gmra.mrb[0].mxu0 %v735
    %v737 = vpop.f32.mrb[0].mxu0
    %v738 = vadd.f32 %v600, %v737
    %v739 = vpop.f32.mrb[0].mxu0
    %v740 = vand.u32 %v104, 4294901760
    %741 = vmatprep.mubr.f32.mxu0 %v740
    %v742 = vand.u32 %v103, 4294901760
    %743 = vmatmul.mubr.f32.gmra.mrb[0].mxu0 %v742
    %v744 = vpop.f32.mrb[0].mxu0
    %v745 = vadd.f32 %v611, %v744
    %v746 = vpop.f32.mrb[0].mxu0
    %v747 = vand.u32 %v106, 4294901760
    %748 = vmatprep.mubr.f32.mxu0 %v747
    %v749 = vand.u32 %v105, 4294901760
    %750 = vmatmul.mubr.f32.gmra.mrb[0].mxu0 %v749
    %v751 = vpop.f32.mrb[0].mxu0
    %v752 = vadd.f32 %v622, %v751
    %v753 = vpop.f32.mrb[0].mxu0
    %v754 = vand.u32 %v108, 4294901760
    %755 = vmatprep.mubr.f32.mxu0 %v754
    %v756 = vand.u32 %v107, 4294901760
    %757 = vmatmul.mubr.f32.gmra.mrb[0].mxu0 %v756
    %v758 = vpop.f32.mrb[0].mxu0
    %v759 = vadd.f32 %v633, %v758
    %v760 = vpop.f32.mrb[0].mxu0
    %v761 = vand.u32 %v110, 4294901760
    %762 = vmatprep.mubr.f32.mxu0 %v761
    %v763 = vand.u32 %v109, 4294901760
    %764 = vmatmul.mubr.f32.gmra.mrb[0].mxu0 %v763
    %v765 = vpop.f32.mrb[0].mxu0
    %v766 = vadd.f32 %v644, %v765
    %v767 = vpop.f32.mrb[0].mxu0
    %v768 = vand.u32 %v112, 4294901760
    %769 = vmatprep.mubr.f32.mxu0 %v768
    %v770 = vand.u32 %v111, 4294901760
    %771 = vmatmul.mubr.f32.gmra.mrb[0].mxu0 %v770
    %v772 = vpop.f32.mrb[0].mxu0
    %v773 = vadd.f32 %v655, %v772
    %v774 = vpop.f32.mrb[0].mxu0
    %v775 = vand.u32 %v114, 4294901760
    %776 = vmatprep.mubr.f32.mxu0 %v775
    %v777 = vand.u32 %v113, 4294901760
    %778 = vmatmul.mubr.f32.gmra.mrb[0].mxu0 %v777
    %v779 = vpop.f32.mrb[0].mxu0
    %v780 = vadd.f32 %v666, %v779
    %v781 = vpop.f32.mrb[0].mxu0
    %782 = vdwg.mxu0
    %783 = vmatprep.subr.mxu0 0.0
    %784 = vmatpush1.msra.mxu0 1.0
    %785 = vmatprep.subr.mxu0 0.0
    %786 = vmatpush1.msra.mxu0 1.0
    %787 = vmatprep.subr.mxu0 0.0
    %788 = vmatpush1.msra.mxu0 1.0
    %789 = vmatprep.subr.mxu0 0.0
    %790 = vmatpush1.msra.mxu0 1.0
    %791 = vmatprep.subr.mxu0 0.0
    %792 = vmatpush1.msra.mxu0 1.0
    %793 = vmatprep.subr.mxu0 0.0
    %794 = vmatpush1.msra.mxu0 1.0
    %795 = vmatprep.subr.mxu0 0.0
    %796 = vmatpush1.msra.mxu0 1.0
    %797 = vmatprep.subr.mxu0 0.0
    %798 = vmatpush1.msra.mxu0 1.0
    %799 = vmatprep.subr.mxu0 0.0
    %800 = vmatpush1.msra.mxu0 1.0
    %801 = vmatprep.subr.mxu0 0.0
    %802 = vmatpush1.msra.mxu0 1.0
    %803 = vmatprep.subr.mxu0 0.0
    %804 = vmatpush1.msra.mxu0 1.0
    %805 = vmatprep.subr.mxu0 0.0
    %806 = vmatpush1.msra.mxu0 1.0
    %807 = vmatprep.subr.mxu0 0.0
    %808 = vmatpush1.msra.mxu0 1.0
    %809 = vmatprep.subr.mxu0 0.0
    %810 = vmatpush1.msra.mxu0 1.0
    %811 = vmatprep.subr.mxu0 0.0
    %812 = vmatpush1.msra.mxu0 1.0
    %813 = vmatprep.subr.mxu0 0.0
    %814 = vmatpush1.msra.mxu0 1.0
    %815 = vmatprep.subr.mxu0 0.0
    %816 = vmatpush1.msra.mxu0 1.0
    %817 = vmatprep.subr.mxu0 0.0
    %818 = vmatpush1.msra.mxu0 1.0
    %819 = vmatprep.subr.mxu0 0.0
    %820 = vmatpush1.msra.mxu0 1.0
    %821 = vmatprep.subr.mxu0 0.0
    %822 = vmatpush1.msra.mxu0 1.0
    %823 = vmatprep.subr.mxu0 0.0
    %824 = vmatpush1.msra.mxu0 1.0
    %825 = vmatprep.subr.mxu0 0.0
    %826 = vmatpush1.msra.mxu0 1.0
    %827 = vmatprep.subr.mxu0 0.0
    %828 = vmatpush1.msra.mxu0 1.0
    %829 = vmatprep.subr.mxu0 0.0
    %830 = vmatpush1.msra.mxu0 1.0
    %831 = vmatprep.subr.mxu0 0.0
    %832 = vmatpush1.msra.mxu0 1.0
    %833 = vmatprep.subr.mxu0 0.0
    %834 = vmatpush1.msra.mxu0 1.0
    %835 = vmatprep.subr.mxu0 0.0
    %836 = vmatpush1.msra.mxu0 1.0
    %837 = vmatprep.subr.mxu0 0.0
    %838 = vmatpush1.msra.mxu0 1.0
    %839 = vmatprep.subr.mxu0 0.0
    %840 = vmatpush1.msra.mxu0 1.0
    %841 = vmatprep.subr.mxu0 0.0
    %842 = vmatpush1.msra.mxu0 1.0
    %843 = vmatprep.subr.mxu0 0.0
    %844 = vmatpush1.msra.mxu0 1.0
    %845 = vmatprep.subr.mxu0 0.0
    %846 = vmatpush1.msra.mxu0 1.0
    %v847 = vand.u32 %v102, 4294901760
    %848 = vmatprep.mubr.f32.mxu0 %v847
    %v849 = vand.u32 %v101, 4294901760
    %850 = vmatmul.mubr.f32.gmra.mrb[0].mxu0 %v849
    %v851 = vpop.f32.mrb[0].mxu0
    %v852 = vadd.f32 %v738, %v851
    %v853 = vpop.f32.mrb[0].mxu0
    %v854 = vand.u32 %v104, 4294901760
    %855 = vmatprep.mubr.f32.mxu0 %v854
    %v856 = vand.u32 %v103, 4294901760
    %857 = vmatmul.mubr.f32.gmra.mrb[0].mxu0 %v856
    %v858 = vpop.f32.mrb[0].mxu0
    %v859 = vadd.f32 %v745, %v858
    %v860 = vpop.f32.mrb[0].mxu0
    %v861 = vand.u32 %v106, 4294901760
    %862 = vmatprep.mubr.f32.mxu0 %v861
    %v863 = vand.u32 %v105, 4294901760
    %864 = vmatmul.mubr.f32.gmra.mrb[0].mxu0 %v863
    %v865 = vpop.f32.mrb[0].mxu0
    %v866 = vadd.f32 %v752, %v865
    %v867 = vpop.f32.mrb[0].mxu0
    %v868 = vand.u32 %v108, 4294901760
    %869 = vmatprep.mubr.f32.mxu0 %v868
    %v870 = vand.u32 %v107, 4294901760
    %871 = vmatmul.mubr.f32.gmra.mrb[0].mxu0 %v870
    %v872 = vpop.f32.mrb[0].mxu0
    %v873 = vadd.f32 %v759, %v872
    %v874 = vpop.f32.mrb[0].mxu0
    %v875 = vand.u32 %v110, 4294901760
    %876 = vmatprep.mubr.f32.mxu0 %v875
    %v877 = vand.u32 %v109, 4294901760
    %878 = vmatmul.mubr.f32.gmra.mrb[0].mxu0 %v877
    %v879 = vpop.f32.mrb[0].mxu0
    %v880 = vadd.f32 %v766, %v879
    %v881 = vpop.f32.mrb[0].mxu0
    %v882 = vand.u32 %v112, 4294901760
    %883 = vmatprep.mubr.f32.mxu0 %v882
    %v884 = vand.u32 %v111, 4294901760
    %885 = vmatmul.mubr.f32.gmra.mrb[0].mxu0 %v884
    %v886 = vpop.f32.mrb[0].mxu0
    %v887 = vadd.f32 %v773, %v886
    %v888 = vpop.f32.mrb[0].mxu0
    %v889 = vand.u32 %v114, 4294901760
    %890 = vmatprep.mubr.f32.mxu0 %v889
    %v891 = vand.u32 %v113, 4294901760
    %892 = vmatmul.mubr.f32.gmra.mrb[0].mxu0 %v891
    %v893 = vpop.f32.mrb[0].mxu0
    %v894 = vadd.f32 %v780, %v893
    %v895 = vpop.f32.mrb[0].mxu0
    %896 = vdwg.mxu0
    %v897 = vmul.f32 %v73, %v73
    %v898 = vmul.f32 %v74, %v74
    %v899 = vmul.f32 %v75, %v75
    %v900 = vmul.f32 %v76, %v76
    %v901 = vmul.f32 %v77, %v77
    %v902 = vmul.f32 %v78, %v78
    %v903 = vmul.f32 %v79, %v79
    %v904 = vmul.f32 %v80, %v80
    %v905 = vmul.f32 %v81, %v81
    %v906 = vmul.f32 %v82, %v82
    %v907 = vmul.f32 %v83, %v83
    %v908 = vmul.f32 %v84, %v84
    %v909 = vmul.f32 %v85, %v85
    %v910 = vmul.f32 %v86, %v86
    %911 = vmatprep.subr.mxu0 0.0
    %912 = vmatpush1.msra.mxu0 1.0
    %913 = vmatprep.subr.mxu0 0.0
    %914 = vmatpush1.msra.mxu0 1.0
    %915 = vmatprep.subr.mxu0 0.0
    %916 = vmatpush1.msra.mxu0 1.0
    %917 = vmatprep.subr.mxu0 0.0
    %918 = vmatpush1.msra.mxu0 1.0
    %919 = vmatprep.subr.mxu0 0.0
    %920 = vmatpush1.msra.mxu0 1.0
    %921 = vmatprep.subr.mxu0 0.0
    %922 = vmatpush1.msra.mxu0 1.0
    %923 = vmatprep.subr.mxu0 0.0
    %924 = vmatpush1.msra.mxu0 1.0
    %925 = vmatprep.subr.mxu0 0.0
    %926 = vmatpush1.msra.mxu0 1.0
    %927 = vmatprep.subr.mxu0 0.0
    %928 = vmatpush1.msra.mxu0 1.0
    %929 = vmatprep.subr.mxu0 0.0
    %930 = vmatpush1.msra.mxu0 1.0
    %931 = vmatprep.subr.mxu0 0.0
    %932 = vmatpush1.msra.mxu0 1.0
    %933 = vmatprep.subr.mxu0 0.0
    %934 = vmatpush1.msra.mxu0 1.0
    %935 = vmatprep.subr.mxu0 0.0
    %936 = vmatpush1.msra.mxu0 1.0
    %937 = vmatprep.subr.mxu0 0.0
    %938 = vmatpush1.msra.mxu0 1.0
    %939 = vmatprep.subr.mxu0 0.0
    %940 = vmatpush1.msra.mxu0 1.0
    %941 = vmatprep.subr.mxu0 0.0
    %942 = vmatpush1.msra.mxu0 1.0
    %943 = vmatprep.subr.mxu0 0.0
    %944 = vmatpush1.msra.mxu0 1.0
    %945 = vmatprep.subr.mxu0 0.0
    %946 = vmatpush1.msra.mxu0 1.0
    %947 = vmatprep.subr.mxu0 0.0
    %948 = vmatpush1.msra.mxu0 1.0
    %949 = vmatprep.subr.mxu0 0.0
    %950 = vmatpush1.msra.mxu0 1.0
    %951 = vmatprep.subr.mxu0 0.0
    %952 = vmatpush1.msra.mxu0 1.0
    %953 = vmatprep.subr.mxu0 0.0
    %954 = vmatpush1.msra.mxu0 1.0
    %955 = vmatprep.subr.mxu0 0.0
    %956 = vmatpush1.msra.mxu0 1.0
    %957 = vmatprep.subr.mxu0 0.0
    %958 = vmatpush1.msra.mxu0 1.0
    %959 = vmatprep.subr.mxu0 0.0
    %960 = vmatpush1.msra.mxu0 1.0
    %961 = vmatprep.subr.mxu0 0.0
    %962 = vmatpush1.msra.mxu0 1.0
    %963 = vmatprep.subr.mxu0 0.0
    %964 = vmatpush1.msra.mxu0 1.0
    %965 = vmatprep.subr.mxu0 0.0
    %966 = vmatpush1.msra.mxu0 1.0
    %967 = vmatprep.subr.mxu0 0.0
    %968 = vmatpush1.msra.mxu0 1.0
    %969 = vmatprep.subr.mxu0 0.0
    %970 = vmatpush1.msra.mxu0 1.0
    %971 = vmatprep.subr.mxu0 0.0
    %972 = vmatpush1.msra.mxu0 1.0
    %973 = vmatprep.subr.mxu0 0.0
    %974 = vmatpush1.msra.mxu0 1.0
    %v975 = vand.u32 %v898, 4294901760
    %v976 = vsub.f32 %v898, %v975
    %v977 = vand.u32 %v976, 4294901760
    %v978 = vsub.f32 %v976, %v977
    %v979 = vand.u32 %v978, 4294901760
    %980 = vmatprep.mubr.f32.mxu0 %v979
    %v981 = vand.u32 %v897, 4294901760
    %v982 = vsub.f32 %v897, %v981
    %v983 = vand.u32 %v982, 4294901760
    %v984 = vsub.f32 %v982, %v983
    %v985 = vand.u32 %v984, 4294901760
    %986 = vmatmul.mubr.f32.gmra.mrb[0].mxu0 %v985
    %v987 = vpop.f32.mrb[0].mxu0
    %v988 = vadd.f32 0.0, %v987
    %v989 = vpop.f32.mrb[0].mxu0
    %v990 = vand.u32 %v900, 4294901760
    %v991 = vsub.f32 %v900, %v990
    %v992 = vand.u32 %v991, 4294901760
    %v993 = vsub.f32 %v991, %v992
    %v994 = vand.u32 %v993, 4294901760
    %995 = vmatprep.mubr.f32.mxu0 %v994
    %v996 = vand.u32 %v899, 4294901760
    %v997 = vsub.f32 %v899, %v996
    %v998 = vand.u32 %v997, 4294901760
    %v999 = vsub.f32 %v997, %v998
    %v1000 = vand.u32 %v999, 4294901760
    %1001 = vmatmul.mubr.f32.gmra.mrb[0].mxu0 %v1000
    %v1002 = vpop.f32.mrb[0].mxu0
    %v1003 = vadd.f32 0.0, %v1002
    %v1004 = vpop.f32.mrb[0].mxu0
    %v1005 = vand.u32 %v902, 4294901760
    %v1006 = vsub.f32 %v902, %v1005
    %v1007 = vand.u32 %v1006, 4294901760
    %v1008 = vsub.f32 %v1006, %v1007
    %v1009 = vand.u32 %v1008, 4294901760
    %1010 = vmatprep.mubr.f32.mxu0 %v1009
    %v1011 = vand.u32 %v901, 4294901760
    %v1012 = vsub.f32 %v901, %v1011
    %v1013 = vand.u32 %v1012, 4294901760
    %v1014 = vsub.f32 %v1012, %v1013
    %v1015 = vand.u32 %v1014, 4294901760
    %1016 = vmatmul.mubr.f32.gmra.mrb[0].mxu0 %v1015
    %v1017 = vpop.f32.mrb[0].mxu0
    %v1018 = vadd.f32 0.0, %v1017
    %v1019 = vpop.f32.mrb[0].mxu0
    %v1020 = vand.u32 %v904, 4294901760
    %v1021 = vsub.f32 %v904, %v1020
    %v1022 = vand.u32 %v1021, 4294901760
    %v1023 = vsub.f32 %v1021, %v1022
    %v1024 = vand.u32 %v1023, 4294901760
    %1025 = vmatprep.mubr.f32.mxu0 %v1024
    %v1026 = vand.u32 %v903, 4294901760
    %v1027 = vsub.f32 %v903, %v1026
    %v1028 = vand.u32 %v1027, 4294901760
    %v1029 = vsub.f32 %v1027, %v1028
    %v1030 = vand.u32 %v1029, 4294901760
    %1031 = vmatmul.mubr.f32.gmra.mrb[0].mxu0 %v1030
    %v1032 = vpop.f32.mrb[0].mxu0
    %v1033 = vadd.f32 0.0, %v1032
    %v1034 = vpop.f32.mrb[0].mxu0
    %v1035 = vand.u32 %v906, 4294901760
    %v1036 = vsub.f32 %v906, %v1035
    %v1037 = vand.u32 %v1036, 4294901760
    %v1038 = vsub.f32 %v1036, %v1037
    %v1039 = vand.u32 %v1038, 4294901760
    %1040 = vmatprep.mubr.f32.mxu0 %v1039
    %v1041 = vand.u32 %v905, 4294901760
    %v1042 = vsub.f32 %v905, %v1041
    %v1043 = vand.u32 %v1042, 4294901760
    %v1044 = vsub.f32 %v1042, %v1043
    %v1045 = vand.u32 %v1044, 4294901760
    %1046 = vmatmul.mubr.f32.gmra.mrb[0].mxu0 %v1045
    %v1047 = vpop.f32.mrb[0].mxu0
    %v1048 = vadd.f32 0.0, %v1047
    %v1049 = vpop.f32.mrb[0].mxu0
    %v1050 = vand.u32 %v908, 4294901760
    %v1051 = vsub.f32 %v908, %v1050
    %v1052 = vand.u32 %v1051, 4294901760
    %v1053 = vsub.f32 %v1051, %v1052
    %v1054 = vand.u32 %v1053, 4294901760
    %1055 = vmatprep.mubr.f32.mxu0 %v1054
    %v1056 = vand.u32 %v907, 4294901760
    %v1057 = vsub.f32 %v907, %v1056
    %v1058 = vand.u32 %v1057, 4294901760
    %v1059 = vsub.f32 %v1057, %v1058
    %v1060 = vand.u32 %v1059, 4294901760
    %1061 = vmatmul.mubr.f32.gmra.mrb[0].mxu0 %v1060
    %v1062 = vpop.f32.mrb[0].mxu0
    %v1063 = vadd.f32 0.0, %v1062
    %v1064 = vpop.f32.mrb[0].mxu0
    %v1065 = vand.u32 %v910, 4294901760
    %v1066 = vsub.f32 %v910, %v1065
    %v1067 = vand.u32 %v1066, 4294901760
    %v1068 = vsub.f32 %v1066, %v1067
    %v1069 = vand.u32 %v1068, 4294901760
    %1070 = vmatprep.mubr.f32.mxu0 %v1069
    %v1071 = vand.u32 %v909, 4294901760
    %v1072 = vsub.f32 %v909, %v1071
    %v1073 = vand.u32 %v1072, 4294901760
    %v1074 = vsub.f32 %v1072, %v1073
    %v1075 = vand.u32 %v1074, 4294901760
    %1076 = vmatmul.mubr.f32.gmra.mrb[0].mxu0 %v1075
    %v1077 = vpop.f32.mrb[0].mxu0
    %v1078 = vadd.f32 0.0, %v1077
    %v1079 = vpop.f32.mrb[0].mxu0
    %1080 = vdwg.mxu0
    %1081 = vmatprep.subr.mxu0 0.0
    %1082 = vmatpush1.msra.mxu0 0.0
    %1083 = vmatprep.subr.mxu0 0.0
    %1084 = vmatpush1.msra.mxu0 0.0
    %1085 = vmatprep.subr.mxu0 0.0
    %1086 = vmatpush1.msra.mxu0 0.0
    %1087 = vmatprep.subr.mxu0 0.0
    %1088 = vmatpush1.msra.mxu0 0.0
    %1089 = vmatprep.subr.mxu0 0.0
    %1090 = vmatpush1.msra.mxu0 0.0
    %1091 = vmatprep.subr.mxu0 0.0
    %1092 = vmatpush1.msra.mxu0 0.0
    %1093 = vmatprep.subr.mxu0 0.0
    %1094 = vmatpush1.msra.mxu0 0.0
    %1095 = vmatprep.subr.mxu0 0.0
    %1096 = vmatpush1.msra.mxu0 0.0
    %1097 = vmatprep.subr.mxu0 0.0
    %1098 = vmatpush1.msra.mxu0 0.0
    %1099 = vmatprep.subr.mxu0 0.0
    %1100 = vmatpush1.msra.mxu0 0.0
    %1101 = vmatprep.subr.mxu0 0.0
    %1102 = vmatpush1.msra.mxu0 0.0
    %1103 = vmatprep.subr.mxu0 0.0
    %1104 = vmatpush1.msra.mxu0 0.0
    %1105 = vmatprep.subr.mxu0 0.0
    %1106 = vmatpush1.msra.mxu0 0.0
    %1107 = vmatprep.subr.mxu0 0.0
    %1108 = vmatpush1.msra.mxu0 0.0
    %1109 = vmatprep.subr.mxu0 0.0
    %1110 = vmatpush1.msra.mxu0 0.0
    %1111 = vmatprep.subr.mxu0 0.0
    %1112 = vmatpush1.msra.mxu0 0.0
    %1113 = vmatprep.subr.mxu0 0.0
    %1114 = vmatpush1.msra.mxu0 0.0
    %1115 = vmatprep.subr.mxu0 0.0
    %1116 = vmatpush1.msra.mxu0 0.0
    %1117 = vmatprep.subr.mxu0 0.0
    %1118 = vmatpush1.msra.mxu0 0.0
    %1119 = vmatprep.subr.mxu0 0.0
    %1120 = vmatpush1.msra.mxu0 0.0
    %1121 = vmatprep.subr.mxu0 0.0
    %1122 = vmatpush1.msra.mxu0 0.0
    %1123 = vmatprep.subr.mxu0 0.0
    %1124 = vmatpush1.msra.mxu0 0.0
    %1125 = vmatprep.subr.mxu0 0.0
    %1126 = vmatpush1.msra.mxu0 0.0
    %1127 = vmatprep.subr.mxu0 0.0
    %1128 = vmatpush1.msra.mxu0 0.0
    %1129 = vmatprep.subr.mxu0 0.0
    %1130 = vmatpush1.msra.mxu0 0.0
    %1131 = vmatprep.subr.mxu0 0.0
    %1132 = vmatpush1.msra.mxu0 0.0
    %1133 = vmatprep.subr.mxu0 0.0
    %1134 = vmatpush1.msra.mxu0 0.0
    %1135 = vmatprep.subr.mxu0 0.0
    %1136 = vmatpush1.msra.mxu0 0.0
    %1137 = vmatprep.subr.mxu0 0.0
    %1138 = vmatpush1.msra.mxu0 0.0
    %1139 = vmatprep.subr.mxu0 0.0
    %1140 = vmatpush1.msra.mxu0 0.0
    %1141 = vmatprep.subr.mxu0 0.0
    %1142 = vmatpush1.msra.mxu0 0.0
    %1143 = vmatprep.subr.mxu0 0.0
    %1144 = vmatpush1.msra.mxu0 0.0
    %v1145 = vand.u32 %v898, 4294901760
    %1146 = vmatprep.mubr.f32.mxu0 %v1145
    %v1147 = vand.u32 %v897, 4294901760
    %1148 = vmatmul.mubr.f32.gmra.mrb[0].mxu0 %v1147
    %v1149 = vpop.f32.mrb[0].mxu0
    %v1150 = vadd.f32 %v988, %v1149
    %v1151 = vpop.f32.mrb[0].mxu0
    %v1152 = vand.u32 %v900, 4294901760
    %1153 = vmatprep.mubr.f32.mxu0 %v1152
    %v1154 = vand.u32 %v899, 4294901760
    %1155 = vmatmul.mubr.f32.gmra.mrb[0].mxu0 %v1154
    %v1156 = vpop.f32.mrb[0].mxu0
    %v1157 = vadd.f32 %v1003, %v1156
    %v1158 = vpop.f32.mrb[0].mxu0
    %v1159 = vand.u32 %v902, 4294901760
    %1160 = vmatprep.mubr.f32.mxu0 %v1159
    %v1161 = vand.u32 %v901, 4294901760
    %1162 = vmatmul.mubr.f32.gmra.mrb[0].mxu0 %v1161
    %v1163 = vpop.f32.mrb[0].mxu0
    %v1164 = vadd.f32 %v1018, %v1163
    %v1165 = vpop.f32.mrb[0].mxu0
    %v1166 = vand.u32 %v904, 4294901760
    %1167 = vmatprep.mubr.f32.mxu0 %v1166
    %v1168 = vand.u32 %v903, 4294901760
    %1169 = vmatmul.mubr.f32.gmra.mrb[0].mxu0 %v1168
    %v1170 = vpop.f32.mrb[0].mxu0
    %v1171 = vadd.f32 %v1033, %v1170
    %v1172 = vpop.f32.mrb[0].mxu0
    %v1173 = vand.u32 %v906, 4294901760
    %1174 = vmatprep.mubr.f32.mxu0 %v1173
    %v1175 = vand.u32 %v905, 4294901760
    %1176 = vmatmul.mubr.f32.gmra.mrb[0].mxu0 %v1175
    %v1177 = vpop.f32.mrb[0].mxu0
    %v1178 = vadd.f32 %v1048, %v1177
    %v1179 = vpop.f32.mrb[0].mxu0
    %v1180 = vand.u32 %v908, 4294901760
    %1181 = vmatprep.mubr.f32.mxu0 %v1180
    %v1182 = vand.u32 %v907, 4294901760
    %1183 = vmatmul.mubr.f32.gmra.mrb[0].mxu0 %v1182
    %v1184 = vpop.f32.mrb[0].mxu0
    %v1185 = vadd.f32 %v1063, %v1184
    %v1186 = vpop.f32.mrb[0].mxu0
    %v1187 = vand.u32 %v910, 4294901760
    %1188 = vmatprep.mubr.f32.mxu0 %v1187
    %v1189 = vand.u32 %v909, 4294901760
    %1190 = vmatmul.mubr.f32.gmra.mrb[0].mxu0 %v1189
    %v1191 = vpop.f32.mrb[0].mxu0
    %v1192 = vadd.f32 %v1078, %v1191
    %v1193 = vpop.f32.mrb[0].mxu0
    %1194 = vdwg.mxu0
    %1195 = vmatprep.subr.mxu0 0.0
    %1196 = vmatpush1.msra.mxu0 0.0
    %1197 = vmatprep.subr.mxu0 0.0
    %1198 = vmatpush1.msra.mxu0 0.0
    %1199 = vmatprep.subr.mxu0 0.0
    %1200 = vmatpush1.msra.mxu0 0.0
    %1201 = vmatprep.subr.mxu0 0.0
    %1202 = vmatpush1.msra.mxu0 0.0
    %1203 = vmatprep.subr.mxu0 0.0
    %1204 = vmatpush1.msra.mxu0 0.0
    %1205 = vmatprep.subr.mxu0 0.0
    %1206 = vmatpush1.msra.mxu0 0.0
    %1207 = vmatprep.subr.mxu0 0.0
    %1208 = vmatpush1.msra.mxu0 0.0
    %1209 = vmatprep.subr.mxu0 0.0
    %1210 = vmatpush1.msra.mxu0 0.0
    %1211 = vmatprep.subr.mxu0 0.0
    %1212 = vmatpush1.msra.mxu0 0.0
    %1213 = vmatprep.subr.mxu0 0.0
    %1214 = vmatpush1.msra.mxu0 0.0
    %1215 = vmatprep.subr.mxu0 0.0
    %1216 = vmatpush1.msra.mxu0 0.0
    %1217 = vmatprep.subr.mxu0 0.0
    %1218 = vmatpush1.msra.mxu0 0.0
    %1219 = vmatprep.subr.mxu0 0.0
    %1220 = vmatpush1.msra.mxu0 0.0
    %1221 = vmatprep.subr.mxu0 0.0
    %1222 = vmatpush1.msra.mxu0 0.0
    %1223 = vmatprep.subr.mxu0 0.0
    %1224 = vmatpush1.msra.mxu0 0.0
    %1225 = vmatprep.subr.mxu0 0.0
    %1226 = vmatpush1.msra.mxu0 0.0
    %1227 = vmatprep.subr.mxu0 0.0
    %1228 = vmatpush1.msra.mxu0 0.0
    %1229 = vmatprep.subr.mxu0 0.0
    %1230 = vmatpush1.msra.mxu0 0.0
    %1231 = vmatprep.subr.mxu0 0.0
    %1232 = vmatpush1.msra.mxu0 0.0
    %1233 = vmatprep.subr.mxu0 0.0
    %1234 = vmatpush1.msra.mxu0 0.0
    %1235 = vmatprep.subr.mxu0 0.0
    %1236 = vmatpush1.msra.mxu0 0.0
    %1237 = vmatprep.subr.mxu0 0.0
    %1238 = vmatpush1.msra.mxu0 0.0
    %1239 = vmatprep.subr.mxu0 0.0
    %1240 = vmatpush1.msra.mxu0 0.0
    %1241 = vmatprep.subr.mxu0 0.0
    %1242 = vmatpush1.msra.mxu0 0.0
    %1243 = vmatprep.subr.mxu0 0.0
    %1244 = vmatpush1.msra.mxu0 0.0
    %1245 = vmatprep.subr.mxu0 0.0
    %1246 = vmatpush1.msra.mxu0 0.0
    %1247 = vmatprep.subr.mxu0 0.0
    %1248 = vmatpush1.msra.mxu0 0.0
    %1249 = vmatprep.subr.mxu0 0.0
    %1250 = vmatpush1.msra.mxu0 0.0
    %1251 = vmatprep.subr.mxu0 0.0
    %1252 = vmatpush1.msra.mxu0 0.0
    %1253 = vmatprep.subr.mxu0 0.0
    %1254 = vmatpush1.msra.mxu0 0.0
    %1255 = vmatprep.subr.mxu0 0.0
    %1256 = vmatpush1.msra.mxu0 0.0
    %1257 = vmatprep.subr.mxu0 0.0
    %1258 = vmatpush1.msra.mxu0 0.0
    %v1259 = vand.u32 %v898, 4294901760
    %v1260 = vsub.f32 %v898, %v1259
    %1261 = vmatprep.mubr.f32.mxu0 %v1260
    %v1262 = vand.u32 %v897, 4294901760
    %v1263 = vsub.f32 %v897, %v1262
    %1264 = vmatmul.mubr.f32.gmra.mrb[0].mxu0 %v1263
    %v1265 = vpop.f32.mrb[0].mxu0
    %v1266 = vadd.f32 %v1150, %v1265
    %v1267 = vpop.f32.mrb[0].mxu0
    %v1268 = vand.u32 %v900, 4294901760
    %v1269 = vsub.f32 %v900, %v1268
    %1270 = vmatprep.mubr.f32.mxu0 %v1269
    %v1271 = vand.u32 %v899, 4294901760
    %v1272 = vsub.f32 %v899, %v1271
    %1273 = vmatmul.mubr.f32.gmra.mrb[0].mxu0 %v1272
    %v1274 = vpop.f32.mrb[0].mxu0
    %v1275 = vadd.f32 %v1157, %v1274
    %v1276 = vpop.f32.mrb[0].mxu0
    %v1277 = vand.u32 %v902, 4294901760
    %v1278 = vsub.f32 %v902, %v1277
    %1279 = vmatprep.mubr.f32.mxu0 %v1278
    %v1280 = vand.u32 %v901, 4294901760
    %v1281 = vsub.f32 %v901, %v1280
    %1282 = vmatmul.mubr.f32.gmra.mrb[0].mxu0 %v1281
    %v1283 = vpop.f32.mrb[0].mxu0
    %v1284 = vadd.f32 %v1164, %v1283
    %v1285 = vpop.f32.mrb[0].mxu0
    %v1286 = vand.u32 %v904, 4294901760
    %v1287 = vsub.f32 %v904, %v1286
    %1288 = vmatprep.mubr.f32.mxu0 %v1287
    %v1289 = vand.u32 %v903, 4294901760
    %v1290 = vsub.f32 %v903, %v1289
    %1291 = vmatmul.mubr.f32.gmra.mrb[0].mxu0 %v1290
    %v1292 = vpop.f32.mrb[0].mxu0
    %v1293 = vadd.f32 %v1171, %v1292
    %v1294 = vpop.f32.mrb[0].mxu0
    %v1295 = vand.u32 %v906, 4294901760
    %v1296 = vsub.f32 %v906, %v1295
    %1297 = vmatprep.mubr.f32.mxu0 %v1296
    %v1298 = vand.u32 %v905, 4294901760
    %v1299 = vsub.f32 %v905, %v1298
    %1300 = vmatmul.mubr.f32.gmra.mrb[0].mxu0 %v1299
    %v1301 = vpop.f32.mrb[0].mxu0
    %v1302 = vadd.f32 %v1178, %v1301
    %v1303 = vpop.f32.mrb[0].mxu0
    %v1304 = vand.u32 %v908, 4294901760
    %v1305 = vsub.f32 %v908, %v1304
    %1306 = vmatprep.mubr.f32.mxu0 %v1305
    %v1307 = vand.u32 %v907, 4294901760
    %v1308 = vsub.f32 %v907, %v1307
    %1309 = vmatmul.mubr.f32.gmra.mrb[0].mxu0 %v1308
    %v1310 = vpop.f32.mrb[0].mxu0
    %v1311 = vadd.f32 %v1185, %v1310
    %v1312 = vpop.f32.mrb[0].mxu0
    %v1313 = vand.u32 %v910, 4294901760
    %v1314 = vsub.f32 %v910, %v1313
    %1315 = vmatprep.mubr.f32.mxu0 %v1314
    %v1316 = vand.u32 %v909, 4294901760
    %v1317 = vsub.f32 %v909, %v1316
    %1318 = vmatmul.mubr.f32.gmra.mrb[0].mxu0 %v1317
    %v1319 = vpop.f32.mrb[0].mxu0
    %v1320 = vadd.f32 %v1192, %v1319
    %v1321 = vpop.f32.mrb[0].mxu0
    %1322 = vdwg.mxu0
    %1323 = vmatprep.subr.mxu0 0.0
    %1324 = vmatpush1.msra.mxu0 1.0
    %1325 = vmatprep.subr.mxu0 0.0
    %1326 = vmatpush1.msra.mxu0 1.0
    %1327 = vmatprep.subr.mxu0 0.0
    %1328 = vmatpush1.msra.mxu0 1.0
    %1329 = vmatprep.subr.mxu0 0.0
    %1330 = vmatpush1.msra.mxu0 1.0
    %1331 = vmatprep.subr.mxu0 0.0
    %1332 = vmatpush1.msra.mxu0 1.0
    %1333 = vmatprep.subr.mxu0 0.0
    %1334 = vmatpush1.msra.mxu0 1.0
    %1335 = vmatprep.subr.mxu0 0.0
    %1336 = vmatpush1.msra.mxu0 1.0
    %1337 = vmatprep.subr.mxu0 0.0
    %1338 = vmatpush1.msra.mxu0 1.0
    %1339 = vmatprep.subr.mxu0 0.0
    %1340 = vmatpush1.msra.mxu0 1.0
    %1341 = vmatprep.subr.mxu0 0.0
    %1342 = vmatpush1.msra.mxu0 1.0
    %1343 = vmatprep.subr.mxu0 0.0
    %1344 = vmatpush1.msra.mxu0 1.0
    %1345 = vmatprep.subr.mxu0 0.0
    %1346 = vmatpush1.msra.mxu0 1.0
    %1347 = vmatprep.subr.mxu0 0.0
    %1348 = vmatpush1.msra.mxu0 1.0
    %1349 = vmatprep.subr.mxu0 0.0
    %1350 = vmatpush1.msra.mxu0 1.0
    %1351 = vmatprep.subr.mxu0 0.0
    %1352 = vmatpush1.msra.mxu0 1.0
    %1353 = vmatprep.subr.mxu0 0.0
    %1354 = vmatpush1.msra.mxu0 1.0
    %1355 = vmatprep.subr.mxu0 0.0
    %1356 = vmatpush1.msra.mxu0 1.0
    %1357 = vmatprep.subr.mxu0 0.0
    %1358 = vmatpush1.msra.mxu0 1.0
    %1359 = vmatprep.subr.mxu0 0.0
    %1360 = vmatpush1.msra.mxu0 1.0
    %1361 = vmatprep.subr.mxu0 0.0
    %1362 = vmatpush1.msra.mxu0 1.0
    %1363 = vmatprep.subr.mxu0 0.0
    %1364 = vmatpush1.msra.mxu0 1.0
    %1365 = vmatprep.subr.mxu0 0.0
    %1366 = vmatpush1.msra.mxu0 1.0
    %1367 = vmatprep.subr.mxu0 0.0
    %1368 = vmatpush1.msra.mxu0 1.0
    %1369 = vmatprep.subr.mxu0 0.0
    %1370 = vmatpush1.msra.mxu0 1.0
    %1371 = vmatprep.subr.mxu0 0.0
    %1372 = vmatpush1.msra.mxu0 1.0
    %1373 = vmatprep.subr.mxu0 0.0
    %1374 = vmatpush1.msra.mxu0 1.0
    %1375 = vmatprep.subr.mxu0 0.0
    %1376 = vmatpush1.msra.mxu0 1.0
    %1377 = vmatprep.subr.mxu0 0.0
    %1378 = vmatpush1.msra.mxu0 1.0
    %1379 = vmatprep.subr.mxu0 0.0
    %1380 = vmatpush1.msra.mxu0 1.0
    %1381 = vmatprep.subr.mxu0 0.0
    %1382 = vmatpush1.msra.mxu0 1.0
    %1383 = vmatprep.subr.mxu0 0.0
    %1384 = vmatpush1.msra.mxu0 1.0
    %1385 = vmatprep.subr.mxu0 0.0
    %1386 = vmatpush1.msra.mxu0 1.0
    %v1387 = vand.u32 %v898, 4294901760
    %v1388 = vsub.f32 %v898, %v1387
    %v1389 = vand.u32 %v1388, 4294901760
    %1390 = vmatprep.mubr.f32.mxu0 %v1389
    %v1391 = vand.u32 %v897, 4294901760
    %v1392 = vsub.f32 %v897, %v1391
    %v1393 = vand.u32 %v1392, 4294901760
    %1394 = vmatmul.mubr.f32.gmra.mrb[0].mxu0 %v1393
    %v1395 = vpop.f32.mrb[0].mxu0
    %v1396 = vadd.f32 %v1266, %v1395
    %v1397 = vpop.f32.mrb[0].mxu0
    %v1398 = vand.u32 %v900, 4294901760
    %v1399 = vsub.f32 %v900, %v1398
    %v1400 = vand.u32 %v1399, 4294901760
    %1401 = vmatprep.mubr.f32.mxu0 %v1400
    %v1402 = vand.u32 %v899, 4294901760
    %v1403 = vsub.f32 %v899, %v1402
    %v1404 = vand.u32 %v1403, 4294901760
    %1405 = vmatmul.mubr.f32.gmra.mrb[0].mxu0 %v1404
    %v1406 = vpop.f32.mrb[0].mxu0
    %v1407 = vadd.f32 %v1275, %v1406
    %v1408 = vpop.f32.mrb[0].mxu0
    %v1409 = vand.u32 %v902, 4294901760
    %v1410 = vsub.f32 %v902, %v1409
    %v1411 = vand.u32 %v1410, 4294901760
    %1412 = vmatprep.mubr.f32.mxu0 %v1411
    %v1413 = vand.u32 %v901, 4294901760
    %v1414 = vsub.f32 %v901, %v1413
    %v1415 = vand.u32 %v1414, 4294901760
    %1416 = vmatmul.mubr.f32.gmra.mrb[0].mxu0 %v1415
    %v1417 = vpop.f32.mrb[0].mxu0
    %v1418 = vadd.f32 %v1284, %v1417
    %v1419 = vpop.f32.mrb[0].mxu0
    %v1420 = vand.u32 %v904, 4294901760
    %v1421 = vsub.f32 %v904, %v1420
    %v1422 = vand.u32 %v1421, 4294901760
    %1423 = vmatprep.mubr.f32.mxu0 %v1422
    %v1424 = vand.u32 %v903, 4294901760
    %v1425 = vsub.f32 %v903, %v1424
    %v1426 = vand.u32 %v1425, 4294901760
    %1427 = vmatmul.mubr.f32.gmra.mrb[0].mxu0 %v1426
    %v1428 = vpop.f32.mrb[0].mxu0
    %v1429 = vadd.f32 %v1293, %v1428
    %v1430 = vpop.f32.mrb[0].mxu0
    %v1431 = vand.u32 %v906, 4294901760
    %v1432 = vsub.f32 %v906, %v1431
    %v1433 = vand.u32 %v1432, 4294901760
    %1434 = vmatprep.mubr.f32.mxu0 %v1433
    %v1435 = vand.u32 %v905, 4294901760
    %v1436 = vsub.f32 %v905, %v1435
    %v1437 = vand.u32 %v1436, 4294901760
    %1438 = vmatmul.mubr.f32.gmra.mrb[0].mxu0 %v1437
    %v1439 = vpop.f32.mrb[0].mxu0
    %v1440 = vadd.f32 %v1302, %v1439
    %v1441 = vpop.f32.mrb[0].mxu0
    %v1442 = vand.u32 %v908, 4294901760
    %v1443 = vsub.f32 %v908, %v1442
    %v1444 = vand.u32 %v1443, 4294901760
    %1445 = vmatprep.mubr.f32.mxu0 %v1444
    %v1446 = vand.u32 %v907, 4294901760
    %v1447 = vsub.f32 %v907, %v1446
    %v1448 = vand.u32 %v1447, 4294901760
    %1449 = vmatmul.mubr.f32.gmra.mrb[0].mxu0 %v1448
    %v1450 = vpop.f32.mrb[0].mxu0
    %v1451 = vadd.f32 %v1311, %v1450
    %v1452 = vpop.f32.mrb[0].mxu0
    %v1453 = vand.u32 %v910, 4294901760
    %v1454 = vsub.f32 %v910, %v1453
    %v1455 = vand.u32 %v1454, 4294901760
    %1456 = vmatprep.mubr.f32.mxu0 %v1455
    %v1457 = vand.u32 %v909, 4294901760
    %v1458 = vsub.f32 %v909, %v1457
    %v1459 = vand.u32 %v1458, 4294901760
    %1460 = vmatmul.mubr.f32.gmra.mrb[0].mxu0 %v1459
    %v1461 = vpop.f32.mrb[0].mxu0
    %v1462 = vadd.f32 %v1320, %v1461
    %v1463 = vpop.f32.mrb[0].mxu0
    %1464 = vdwg.mxu0
    %1465 = vmatprep.subr.mxu0 0.0
    %1466 = vmatpush1.msra.mxu0 0.0
    %1467 = vmatprep.subr.mxu0 0.0
    %1468 = vmatpush1.msra.mxu0 0.0
    %1469 = vmatprep.subr.mxu0 0.0
    %1470 = vmatpush1.msra.mxu0 0.0
    %1471 = vmatprep.subr.mxu0 0.0
    %1472 = vmatpush1.msra.mxu0 0.0
    %1473 = vmatprep.subr.mxu0 0.0
    %1474 = vmatpush1.msra.mxu0 0.0
    %1475 = vmatprep.subr.mxu0 0.0
    %1476 = vmatpush1.msra.mxu0 0.0
    %1477 = vmatprep.subr.mxu0 0.0
    %1478 = vmatpush1.msra.mxu0 0.0
    %1479 = vmatprep.subr.mxu0 0.0
    %1480 = vmatpush1.msra.mxu0 0.0
    %1481 = vmatprep.subr.mxu0 0.0
    %1482 = vmatpush1.msra.mxu0 0.0
    %1483 = vmatprep.subr.mxu0 0.0
    %1484 = vmatpush1.msra.mxu0 0.0
    %1485 = vmatprep.subr.mxu0 0.0
    %1486 = vmatpush1.msra.mxu0 0.0
    %1487 = vmatprep.subr.mxu0 0.0
    %1488 = vmatpush1.msra.mxu0 0.0
    %1489 = vmatprep.subr.mxu0 0.0
    %1490 = vmatpush1.msra.mxu0 0.0
    %1491 = vmatprep.subr.mxu0 0.0
    %1492 = vmatpush1.msra.mxu0 0.0
    %1493 = vmatprep.subr.mxu0 0.0
    %1494 = vmatpush1.msra.mxu0 0.0
    %1495 = vmatprep.subr.mxu0 0.0
    %1496 = vmatpush1.msra.mxu0 0.0
    %1497 = vmatprep.subr.mxu0 0.0
    %1498 = vmatpush1.msra.mxu0 0.0
    %1499 = vmatprep.subr.mxu0 0.0
    %1500 = vmatpush1.msra.mxu0 0.0
    %1501 = vmatprep.subr.mxu0 0.0
    %1502 = vmatpush1.msra.mxu0 0.0
    %1503 = vmatprep.subr.mxu0 0.0
    %1504 = vmatpush1.msra.mxu0 0.0
    %1505 = vmatprep.subr.mxu0 0.0
    %1506 = vmatpush1.msra.mxu0 0.0
    %1507 = vmatprep.subr.mxu0 0.0
    %1508 = vmatpush1.msra.mxu0 0.0
    %1509 = vmatprep.subr.mxu0 0.0
    %1510 = vmatpush1.msra.mxu0 0.0
    %1511 = vmatprep.subr.mxu0 0.0
    %1512 = vmatpush1.msra.mxu0 0.0
    %1513 = vmatprep.subr.mxu0 0.0
    %1514 = vmatpush1.msra.mxu0 0.0
    %1515 = vmatprep.subr.mxu0 0.0
    %1516 = vmatpush1.msra.mxu0 0.0
    %1517 = vmatprep.subr.mxu0 0.0
    %1518 = vmatpush1.msra.mxu0 0.0
    %1519 = vmatprep.subr.mxu0 0.0
    %1520 = vmatpush1.msra.mxu0 0.0
    %1521 = vmatprep.subr.mxu0 0.0
    %1522 = vmatpush1.msra.mxu0 0.0
    %1523 = vmatprep.subr.mxu0 0.0
    %1524 = vmatpush1.msra.mxu0 0.0
    %1525 = vmatprep.subr.mxu0 0.0
    %1526 = vmatpush1.msra.mxu0 0.0
    %1527 = vmatprep.subr.mxu0 0.0
    %1528 = vmatpush1.msra.mxu0 0.0
    %v1529 = vand.u32 %v898, 4294901760
    %1530 = vmatprep.mubr.f32.mxu0 %v1529
    %v1531 = vand.u32 %v897, 4294901760
    %1532 = vmatmul.mubr.f32.gmra.mrb[0].mxu0 %v1531
    %v1533 = vpop.f32.mrb[0].mxu0
    %v1534 = vadd.f32 %v1396, %v1533
    %v1535 = vpop.f32.mrb[0].mxu0
    %v1536 = vand.u32 %v900, 4294901760
    %1537 = vmatprep.mubr.f32.mxu0 %v1536
    %v1538 = vand.u32 %v899, 4294901760
    %1539 = vmatmul.mubr.f32.gmra.mrb[0].mxu0 %v1538
    %v1540 = vpop.f32.mrb[0].mxu0
    %v1541 = vadd.f32 %v1407, %v1540
    %v1542 = vpop.f32.mrb[0].mxu0
    %v1543 = vand.u32 %v902, 4294901760
    %1544 = vmatprep.mubr.f32.mxu0 %v1543
    %v1545 = vand.u32 %v901, 4294901760
    %1546 = vmatmul.mubr.f32.gmra.mrb[0].mxu0 %v1545
    %v1547 = vpop.f32.mrb[0].mxu0
    %v1548 = vadd.f32 %v1418, %v1547
    %v1549 = vpop.f32.mrb[0].mxu0
    %v1550 = vand.u32 %v904, 4294901760
    %1551 = vmatprep.mubr.f32.mxu0 %v1550
    %v1552 = vand.u32 %v903, 4294901760
    %1553 = vmatmul.mubr.f32.gmra.mrb[0].mxu0 %v1552
    %v1554 = vpop.f32.mrb[0].mxu0
    %v1555 = vadd.f32 %v1429, %v1554
    %v1556 = vpop.f32.mrb[0].mxu0
    %v1557 = vand.u32 %v906, 4294901760
    %1558 = vmatprep.mubr.f32.mxu0 %v1557
    %v1559 = vand.u32 %v905, 4294901760
    %1560 = vmatmul.mubr.f32.gmra.mrb[0].mxu0 %v1559
    %v1561 = vpop.f32.mrb[0].mxu0
    %v1562 = vadd.f32 %v1440, %v1561
    %v1563 = vpop.f32.mrb[0].mxu0
    %v1564 = vand.u32 %v908, 4294901760
    %1565 = vmatprep.mubr.f32.mxu0 %v1564
    %v1566 = vand.u32 %v907, 4294901760
    %1567 = vmatmul.mubr.f32.gmra.mrb[0].mxu0 %v1566
    %v1568 = vpop.f32.mrb[0].mxu0
    %v1569 = vadd.f32 %v1451, %v1568
    %v1570 = vpop.f32.mrb[0].mxu0
    %v1571 = vand.u32 %v910, 4294901760
    %1572 = vmatprep.mubr.f32.mxu0 %v1571
    %v1573 = vand.u32 %v909, 4294901760
    %1574 = vmatmul.mubr.f32.gmra.mrb[0].mxu0 %v1573
    %v1575 = vpop.f32.mrb[0].mxu0
    %v1576 = vadd.f32 %v1462, %v1575
    %v1577 = vpop.f32.mrb[0].mxu0
    %1578 = vdwg.mxu0
    %1579 = vmatprep.subr.mxu0 0.0
    %1580 = vmatpush1.msra.mxu0 1.0
    %1581 = vmatprep.subr.mxu0 0.0
    %1582 = vmatpush1.msra.mxu0 1.0
    %1583 = vmatprep.subr.mxu0 0.0
    %1584 = vmatpush1.msra.mxu0 1.0
    %1585 = vmatprep.subr.mxu0 0.0
    %1586 = vmatpush1.msra.mxu0 1.0
    %1587 = vmatprep.subr.mxu0 0.0
    %1588 = vmatpush1.msra.mxu0 1.0
    %1589 = vmatprep.subr.mxu0 0.0
    %1590 = vmatpush1.msra.mxu0 1.0
    %1591 = vmatprep.subr.mxu0 0.0
    %1592 = vmatpush1.msra.mxu0 1.0
    %1593 = vmatprep.subr.mxu0 0.0
    %1594 = vmatpush1.msra.mxu0 1.0
    %1595 = vmatprep.subr.mxu0 0.0
    %1596 = vmatpush1.msra.mxu0 1.0
    %1597 = vmatprep.subr.mxu0 0.0
    %1598 = vmatpush1.msra.mxu0 1.0
    %1599 = vmatprep.subr.mxu0 0.0
    %1600 = vmatpush1.msra.mxu0 1.0
    %1601 = vmatprep.subr.mxu0 0.0
    %1602 = vmatpush1.msra.mxu0 1.0
    %1603 = vmatprep.subr.mxu0 0.0
    %1604 = vmatpush1.msra.mxu0 1.0
    %1605 = vmatprep.subr.mxu0 0.0
    %1606 = vmatpush1.msra.mxu0 1.0
    %1607 = vmatprep.subr.mxu0 0.0
    %1608 = vmatpush1.msra.mxu0 1.0
    %1609 = vmatprep.subr.mxu0 0.0
    %1610 = vmatpush1.msra.mxu0 1.0
    %1611 = vmatprep.subr.mxu0 0.0
    %1612 = vmatpush1.msra.mxu0 1.0
    %1613 = vmatprep.subr.mxu0 0.0
    %1614 = vmatpush1.msra.mxu0 1.0
    %1615 = vmatprep.subr.mxu0 0.0
    %1616 = vmatpush1.msra.mxu0 1.0
    %1617 = vmatprep.subr.mxu0 0.0
    %1618 = vmatpush1.msra.mxu0 1.0
    %1619 = vmatprep.subr.mxu0 0.0
    %1620 = vmatpush1.msra.mxu0 1.0
    %1621 = vmatprep.subr.mxu0 0.0
    %1622 = vmatpush1.msra.mxu0 1.0
    %1623 = vmatprep.subr.mxu0 0.0
    %1624 = vmatpush1.msra.mxu0 1.0
    %1625 = vmatprep.subr.mxu0 0.0
    %1626 = vmatpush1.msra.mxu0 1.0
    %1627 = vmatprep.subr.mxu0 0.0
    %1628 = vmatpush1.msra.mxu0 1.0
    %1629 = vmatprep.subr.mxu0 0.0
    %1630 = vmatpush1.msra.mxu0 1.0
    %1631 = vmatprep.subr.mxu0 0.0
    %1632 = vmatpush1.msra.mxu0 1.0
    %1633 = vmatprep.subr.mxu0 0.0
    %1634 = vmatpush1.msra.mxu0 1.0
    %1635 = vmatprep.subr.mxu0 0.0
    %1636 = vmatpush1.msra.mxu0 1.0
    %1637 = vmatprep.subr.mxu0 0.0
    %1638 = vmatpush1.msra.mxu0 1.0
    %1639 = vmatprep.subr.mxu0 0.0
    %1640 = vmatpush1.msra.mxu0 1.0
    %1641 = vmatprep.subr.mxu0 0.0
    %1642 = vmatpush1.msra.mxu0 1.0
    %v1643 = vand.u32 %v898, 4294901760
    %1644 = vmatprep.mubr.f32.mxu0 %v1643
    %v1645 = vand.u32 %v897, 4294901760
    %1646 = vmatmul.mubr.f32.gmra.mrb[0].mxu0 %v1645
    %v1647 = vpop.f32.mrb[0].mxu0
    %v1648 = vadd.f32 %v1534, %v1647
    %v1649 = vpop.f32.mrb[0].mxu0
    %v1650 = vand.u32 %v900, 4294901760
    %1651 = vmatprep.mubr.f32.mxu0 %v1650
    %v1652 = vand.u32 %v899, 4294901760
    %1653 = vmatmul.mubr.f32.gmra.mrb[0].mxu0 %v1652
    %v1654 = vpop.f32.mrb[0].mxu0
    %v1655 = vadd.f32 %v1541, %v1654
    %v1656 = vpop.f32.mrb[0].mxu0
    %v1657 = vand.u32 %v902, 4294901760
    %1658 = vmatprep.mubr.f32.mxu0 %v1657
    %v1659 = vand.u32 %v901, 4294901760
    %1660 = vmatmul.mubr.f32.gmra.mrb[0].mxu0 %v1659
    %v1661 = vpop.f32.mrb[0].mxu0
    %v1662 = vadd.f32 %v1548, %v1661
    %v1663 = vpop.f32.mrb[0].mxu0
    %v1664 = vand.u32 %v904, 4294901760
    %1665 = vmatprep.mubr.f32.mxu0 %v1664
    %v1666 = vand.u32 %v903, 4294901760
    %1667 = vmatmul.mubr.f32.gmra.mrb[0].mxu0 %v1666
    %v1668 = vpop.f32.mrb[0].mxu0
    %v1669 = vadd.f32 %v1555, %v1668
    %v1670 = vpop.f32.mrb[0].mxu0
    %v1671 = vand.u32 %v906, 4294901760
    %1672 = vmatprep.mubr.f32.mxu0 %v1671
    %v1673 = vand.u32 %v905, 4294901760
    %1674 = vmatmul.mubr.f32.gmra.mrb[0].mxu0 %v1673
    %v1675 = vpop.f32.mrb[0].mxu0
    %v1676 = vadd.f32 %v1562, %v1675
    %v1677 = vpop.f32.mrb[0].mxu0
    %v1678 = vand.u32 %v908, 4294901760
    %1679 = vmatprep.mubr.f32.mxu0 %v1678
    %v1680 = vand.u32 %v907, 4294901760
    %1681 = vmatmul.mubr.f32.gmra.mrb[0].mxu0 %v1680
    %v1682 = vpop.f32.mrb[0].mxu0
    %v1683 = vadd.f32 %v1569, %v1682
    %v1684 = vpop.f32.mrb[0].mxu0
    %v1685 = vand.u32 %v910, 4294901760
    %1686 = vmatprep.mubr.f32.mxu0 %v1685
    %v1687 = vand.u32 %v909, 4294901760
    %1688 = vmatmul.mubr.f32.gmra.mrb[0].mxu0 %v1687
    %v1689 = vpop.f32.mrb[0].mxu0
    %v1690 = vadd.f32 %v1576, %v1689
    %v1691 = vpop.f32.mrb[0].mxu0
    %1692 = vdwg.mxu0
    %v1693 = vmul.f32 %v87, %v87
    %v1694 = vmul.f32 %v88, %v88
    %v1695 = vmul.f32 %v89, %v89
    %v1696 = vmul.f32 %v90, %v90
    %v1697 = vmul.f32 %v91, %v91
    %v1698 = vmul.f32 %v92, %v92
    %v1699 = vmul.f32 %v93, %v93
    %v1700 = vmul.f32 %v94, %v94
    %v1701 = vmul.f32 %v95, %v95
    %v1702 = vmul.f32 %v96, %v96
    %v1703 = vmul.f32 %v97, %v97
    %v1704 = vmul.f32 %v98, %v98
    %v1705 = vmul.f32 %v99, %v99
    %v1706 = vmul.f32 %v100, %v100
    %1707 = vmatprep.subr.mxu0 0.0
    %1708 = vmatpush1.msra.mxu0 1.0
    %1709 = vmatprep.subr.mxu0 0.0
    %1710 = vmatpush1.msra.mxu0 1.0
    %1711 = vmatprep.subr.mxu0 0.0
    %1712 = vmatpush1.msra.mxu0 1.0
    %1713 = vmatprep.subr.mxu0 0.0
    %1714 = vmatpush1.msra.mxu0 1.0
    %1715 = vmatprep.subr.mxu0 0.0
    %1716 = vmatpush1.msra.mxu0 1.0
    %1717 = vmatprep.subr.mxu0 0.0
    %1718 = vmatpush1.msra.mxu0 1.0
    %1719 = vmatprep.subr.mxu0 0.0
    %1720 = vmatpush1.msra.mxu0 1.0
    %1721 = vmatprep.subr.mxu0 0.0
    %1722 = vmatpush1.msra.mxu0 1.0
    %1723 = vmatprep.subr.mxu0 0.0
    %1724 = vmatpush1.msra.mxu0 1.0
    %1725 = vmatprep.subr.mxu0 0.0
    %1726 = vmatpush1.msra.mxu0 1.0
    %1727 = vmatprep.subr.mxu0 0.0
    %1728 = vmatpush1.msra.mxu0 1.0
    %1729 = vmatprep.subr.mxu0 0.0
    %1730 = vmatpush1.msra.mxu0 1.0
    %1731 = vmatprep.subr.mxu0 0.0
    %1732 = vmatpush1.msra.mxu0 1.0
    %1733 = vmatprep.subr.mxu0 0.0
    %1734 = vmatpush1.msra.mxu0 1.0
    %1735 = vmatprep.subr.mxu0 0.0
    %1736 = vmatpush1.msra.mxu0 1.0
    %1737 = vmatprep.subr.mxu0 0.0
    %1738 = vmatpush1.msra.mxu0 1.0
    %1739 = vmatprep.subr.mxu0 0.0
    %1740 = vmatpush1.msra.mxu0 1.0
    %1741 = vmatprep.subr.mxu0 0.0
    %1742 = vmatpush1.msra.mxu0 1.0
    %1743 = vmatprep.subr.mxu0 0.0
    %1744 = vmatpush1.msra.mxu0 1.0
    %1745 = vmatprep.subr.mxu0 0.0
    %1746 = vmatpush1.msra.mxu0 1.0
    %1747 = vmatprep.subr.mxu0 0.0
    %1748 = vmatpush1.msra.mxu0 1.0
    %1749 = vmatprep.subr.mxu0 0.0
    %1750 = vmatpush1.msra.mxu0 1.0
    %1751 = vmatprep.subr.mxu0 0.0
    %1752 = vmatpush1.msra.mxu0 1.0
    %1753 = vmatprep.subr.mxu0 0.0
    %1754 = vmatpush1.msra.mxu0 1.0
    %1755 = vmatprep.subr.mxu0 0.0
    %1756 = vmatpush1.msra.mxu0 1.0
    %1757 = vmatprep.subr.mxu0 0.0
    %1758 = vmatpush1.msra.mxu0 1.0
    %1759 = vmatprep.subr.mxu0 0.0
    %1760 = vmatpush1.msra.mxu0 1.0
    %1761 = vmatprep.subr.mxu0 0.0
    %1762 = vmatpush1.msra.mxu0 1.0
    %1763 = vmatprep.subr.mxu0 0.0
    %1764 = vmatpush1.msra.mxu0 1.0
    %1765 = vmatprep.subr.mxu0 0.0
    %1766 = vmatpush1.msra.mxu0 1.0
    %1767 = vmatprep.subr.mxu0 0.0
    %1768 = vmatpush1.msra.mxu0 1.0
    %1769 = vmatprep.subr.mxu0 0.0
    %1770 = vmatpush1.msra.mxu0 1.0
    %v1771 = vand.u32 %v1694, 4294901760
    %v1772 = vsub.f32 %v1694, %v1771
    %v1773 = vand.u32 %v1772, 4294901760
    %v1774 = vsub.f32 %v1772, %v1773
    %v1775 = vand.u32 %v1774, 4294901760
    %1776 = vmatprep.mubr.f32.mxu0 %v1775
    %v1777 = vand.u32 %v1693, 4294901760
    %v1778 = vsub.f32 %v1693, %v1777
    %v1779 = vand.u32 %v1778, 4294901760
    %v1780 = vsub.f32 %v1778, %v1779
    %v1781 = vand.u32 %v1780, 4294901760
    %1782 = vmatmul.mubr.f32.gmra.mrb[0].mxu0 %v1781
    %v1783 = vpop.f32.mrb[0].mxu0
    %v1784 = vadd.f32 0.0, %v1783
    %v1785 = vpop.f32.mrb[0].mxu0
    %v1786 = vand.u32 %v1696, 4294901760
    %v1787 = vsub.f32 %v1696, %v1786
    %v1788 = vand.u32 %v1787, 4294901760
    %v1789 = vsub.f32 %v1787, %v1788
    %v1790 = vand.u32 %v1789, 4294901760
    %1791 = vmatprep.mubr.f32.mxu0 %v1790
    %v1792 = vand.u32 %v1695, 4294901760
    %v1793 = vsub.f32 %v1695, %v1792
    %v1794 = vand.u32 %v1793, 4294901760
    %v1795 = vsub.f32 %v1793, %v1794
    %v1796 = vand.u32 %v1795, 4294901760
    %1797 = vmatmul.mubr.f32.gmra.mrb[0].mxu0 %v1796
    %v1798 = vpop.f32.mrb[0].mxu0
    %v1799 = vadd.f32 0.0, %v1798
    %v1800 = vpop.f32.mrb[0].mxu0
    %v1801 = vand.u32 %v1698, 4294901760
    %v1802 = vsub.f32 %v1698, %v1801
    %v1803 = vand.u32 %v1802, 4294901760
    %v1804 = vsub.f32 %v1802, %v1803
    %v1805 = vand.u32 %v1804, 4294901760
    %1806 = vmatprep.mubr.f32.mxu0 %v1805
    %v1807 = vand.u32 %v1697, 4294901760
    %v1808 = vsub.f32 %v1697, %v1807
    %v1809 = vand.u32 %v1808, 4294901760
    %v1810 = vsub.f32 %v1808, %v1809
    %v1811 = vand.u32 %v1810, 4294901760
    %1812 = vmatmul.mubr.f32.gmra.mrb[0].mxu0 %v1811
    %v1813 = vpop.f32.mrb[0].mxu0
    %v1814 = vadd.f32 0.0, %v1813
    %v1815 = vpop.f32.mrb[0].mxu0
    %v1816 = vand.u32 %v1700, 4294901760
    %v1817 = vsub.f32 %v1700, %v1816
    %v1818 = vand.u32 %v1817, 4294901760
    %v1819 = vsub.f32 %v1817, %v1818
    %v1820 = vand.u32 %v1819, 4294901760
    %1821 = vmatprep.mubr.f32.mxu0 %v1820
    %v1822 = vand.u32 %v1699, 4294901760
    %v1823 = vsub.f32 %v1699, %v1822
    %v1824 = vand.u32 %v1823, 4294901760
    %v1825 = vsub.f32 %v1823, %v1824
    %v1826 = vand.u32 %v1825, 4294901760
    %1827 = vmatmul.mubr.f32.gmra.mrb[0].mxu0 %v1826
    %v1828 = vpop.f32.mrb[0].mxu0
    %v1829 = vadd.f32 0.0, %v1828
    %v1830 = vpop.f32.mrb[0].mxu0
    %v1831 = vand.u32 %v1702, 4294901760
    %v1832 = vsub.f32 %v1702, %v1831
    %v1833 = vand.u32 %v1832, 4294901760
    %v1834 = vsub.f32 %v1832, %v1833
    %v1835 = vand.u32 %v1834, 4294901760
    %1836 = vmatprep.mubr.f32.mxu0 %v1835
    %v1837 = vand.u32 %v1701, 4294901760
    %v1838 = vsub.f32 %v1701, %v1837
    %v1839 = vand.u32 %v1838, 4294901760
    %v1840 = vsub.f32 %v1838, %v1839
    %v1841 = vand.u32 %v1840, 4294901760
    %1842 = vmatmul.mubr.f32.gmra.mrb[0].mxu0 %v1841
    %v1843 = vpop.f32.mrb[0].mxu0
    %v1844 = vadd.f32 0.0, %v1843
    %v1845 = vpop.f32.mrb[0].mxu0
    %v1846 = vand.u32 %v1704, 4294901760
    %v1847 = vsub.f32 %v1704, %v1846
    %v1848 = vand.u32 %v1847, 4294901760
    %v1849 = vsub.f32 %v1847, %v1848
    %v1850 = vand.u32 %v1849, 4294901760
    %1851 = vmatprep.mubr.f32.mxu0 %v1850
    %v1852 = vand.u32 %v1703, 4294901760
    %v1853 = vsub.f32 %v1703, %v1852
    %v1854 = vand.u32 %v1853, 4294901760
    %v1855 = vsub.f32 %v1853, %v1854
    %v1856 = vand.u32 %v1855, 4294901760
    %1857 = vmatmul.mubr.f32.gmra.mrb[0].mxu0 %v1856
    %v1858 = vpop.f32.mrb[0].mxu0
    %v1859 = vadd.f32 0.0, %v1858
    %v1860 = vpop.f32.mrb[0].mxu0
    %v1861 = vand.u32 %v1706, 4294901760
    %v1862 = vsub.f32 %v1706, %v1861
    %v1863 = vand.u32 %v1862, 4294901760
    %v1864 = vsub.f32 %v1862, %v1863
    %v1865 = vand.u32 %v1864, 4294901760
    %1866 = vmatprep.mubr.f32.mxu0 %v1865
    %v1867 = vand.u32 %v1705, 4294901760
    %v1868 = vsub.f32 %v1705, %v1867
    %v1869 = vand.u32 %v1868, 4294901760
    %v1870 = vsub.f32 %v1868, %v1869
    %v1871 = vand.u32 %v1870, 4294901760
    %1872 = vmatmul.mubr.f32.gmra.mrb[0].mxu0 %v1871
    %v1873 = vpop.f32.mrb[0].mxu0
    %v1874 = vadd.f32 0.0, %v1873
    %v1875 = vpop.f32.mrb[0].mxu0
    %1876 = vdwg.mxu0
    %1877 = vmatprep.subr.mxu0 0.0
    %1878 = vmatpush1.msra.mxu0 0.0
    %1879 = vmatprep.subr.mxu0 0.0
    %1880 = vmatpush1.msra.mxu0 0.0
    %1881 = vmatprep.subr.mxu0 0.0
    %1882 = vmatpush1.msra.mxu0 0.0
    %1883 = vmatprep.subr.mxu0 0.0
    %1884 = vmatpush1.msra.mxu0 0.0
    %1885 = vmatprep.subr.mxu0 0.0
    %1886 = vmatpush1.msra.mxu0 0.0
    %1887 = vmatprep.subr.mxu0 0.0
    %1888 = vmatpush1.msra.mxu0 0.0
    %1889 = vmatprep.subr.mxu0 0.0
    %1890 = vmatpush1.msra.mxu0 0.0
    %1891 = vmatprep.subr.mxu0 0.0
    %1892 = vmatpush1.msra.mxu0 0.0
    %1893 = vmatprep.subr.mxu0 0.0
    %1894 = vmatpush1.msra.mxu0 0.0
    %1895 = vmatprep.subr.mxu0 0.0
    %1896 = vmatpush1.msra.mxu0 0.0
    %1897 = vmatprep.subr.mxu0 0.0
    %1898 = vmatpush1.msra.mxu0 0.0
    %1899 = vmatprep.subr.mxu0 0.0
    %1900 = vmatpush1.msra.mxu0 0.0
    %1901 = vmatprep.subr.mxu0 0.0
    %1902 = vmatpush1.msra.mxu0 0.0
    %1903 = vmatprep.subr.mxu0 0.0
    %1904 = vmatpush1.msra.mxu0 0.0
    %1905 = vmatprep.subr.mxu0 0.0
    %1906 = vmatpush1.msra.mxu0 0.0
    %1907 = vmatprep.subr.mxu0 0.0
    %1908 = vmatpush1.msra.mxu0 0.0
    %1909 = vmatprep.subr.mxu0 0.0
    %1910 = vmatpush1.msra.mxu0 0.0
    %1911 = vmatprep.subr.mxu0 0.0
    %1912 = vmatpush1.msra.mxu0 0.0
    %1913 = vmatprep.subr.mxu0 0.0
    %1914 = vmatpush1.msra.mxu0 0.0
    %1915 = vmatprep.subr.mxu0 0.0
    %1916 = vmatpush1.msra.mxu0 0.0
    %1917 = vmatprep.subr.mxu0 0.0
    %1918 = vmatpush1.msra.mxu0 0.0
    %1919 = vmatprep.subr.mxu0 0.0
    %1920 = vmatpush1.msra.mxu0 0.0
    %1921 = vmatprep.subr.mxu0 0.0
    %1922 = vmatpush1.msra.mxu0 0.0
    %1923 = vmatprep.subr.mxu0 0.0
    %1924 = vmatpush1.msra.mxu0 0.0
    %1925 = vmatprep.subr.mxu0 0.0
    %1926 = vmatpush1.msra.mxu0 0.0
    %1927 = vmatprep.subr.mxu0 0.0
    %1928 = vmatpush1.msra.mxu0 0.0
    %1929 = vmatprep.subr.mxu0 0.0
    %1930 = vmatpush1.msra.mxu0 0.0
    %1931 = vmatprep.subr.mxu0 0.0
    %1932 = vmatpush1.msra.mxu0 0.0
    %1933 = vmatprep.subr.mxu0 0.0
    %1934 = vmatpush1.msra.mxu0 0.0
    %1935 = vmatprep.subr.mxu0 0.0
    %1936 = vmatpush1.msra.mxu0 0.0
    %1937 = vmatprep.subr.mxu0 0.0
    %1938 = vmatpush1.msra.mxu0 0.0
    %1939 = vmatprep.subr.mxu0 0.0
    %1940 = vmatpush1.msra.mxu0 0.0
    %v1941 = vand.u32 %v1694, 4294901760
    %1942 = vmatprep.mubr.f32.mxu0 %v1941
    %v1943 = vand.u32 %v1693, 4294901760
    %1944 = vmatmul.mubr.f32.gmra.mrb[0].mxu0 %v1943
    %v1945 = vpop.f32.mrb[0].mxu0
    %v1946 = vadd.f32 %v1784, %v1945
    %v1947 = vpop.f32.mrb[0].mxu0
    %v1948 = vand.u32 %v1696, 4294901760
    %1949 = vmatprep.mubr.f32.mxu0 %v1948
    %v1950 = vand.u32 %v1695, 4294901760
    %1951 = vmatmul.mubr.f32.gmra.mrb[0].mxu0 %v1950
    %v1952 = vpop.f32.mrb[0].mxu0
    %v1953 = vadd.f32 %v1799, %v1952
    %v1954 = vpop.f32.mrb[0].mxu0
    %v1955 = vand.u32 %v1698, 4294901760
    %1956 = vmatprep.mubr.f32.mxu0 %v1955
    %v1957 = vand.u32 %v1697, 4294901760
    %1958 = vmatmul.mubr.f32.gmra.mrb[0].mxu0 %v1957
    %v1959 = vpop.f32.mrb[0].mxu0
    %v1960 = vadd.f32 %v1814, %v1959
    %v1961 = vpop.f32.mrb[0].mxu0
    %v1962 = vand.u32 %v1700, 4294901760
    %1963 = vmatprep.mubr.f32.mxu0 %v1962
    %v1964 = vand.u32 %v1699, 4294901760
    %1965 = vmatmul.mubr.f32.gmra.mrb[0].mxu0 %v1964
    %v1966 = vpop.f32.mrb[0].mxu0
    %v1967 = vadd.f32 %v1829, %v1966
    %v1968 = vpop.f32.mrb[0].mxu0
    %v1969 = vand.u32 %v1702, 4294901760
    %1970 = vmatprep.mubr.f32.mxu0 %v1969
    %v1971 = vand.u32 %v1701, 4294901760
    %1972 = vmatmul.mubr.f32.gmra.mrb[0].mxu0 %v1971
    %v1973 = vpop.f32.mrb[0].mxu0
    %v1974 = vadd.f32 %v1844, %v1973
    %v1975 = vpop.f32.mrb[0].mxu0
    %v1976 = vand.u32 %v1704, 4294901760
    %1977 = vmatprep.mubr.f32.mxu0 %v1976
    %v1978 = vand.u32 %v1703, 4294901760
    %1979 = vmatmul.mubr.f32.gmra.mrb[0].mxu0 %v1978
    %v1980 = vpop.f32.mrb[0].mxu0
    %v1981 = vadd.f32 %v1859, %v1980
    %v1982 = vpop.f32.mrb[0].mxu0
    %v1983 = vand.u32 %v1706, 4294901760
    %1984 = vmatprep.mubr.f32.mxu0 %v1983
    %v1985 = vand.u32 %v1705, 4294901760
    %1986 = vmatmul.mubr.f32.gmra.mrb[0].mxu0 %v1985
    %v1987 = vpop.f32.mrb[0].mxu0
    %v1988 = vadd.f32 %v1874, %v1987
    %v1989 = vpop.f32.mrb[0].mxu0
    %1990 = vdwg.mxu0
    %1991 = vmatprep.subr.mxu0 0.0
    %1992 = vmatpush1.msra.mxu0 0.0
    %1993 = vmatprep.subr.mxu0 0.0
    %1994 = vmatpush1.msra.mxu0 0.0
    %1995 = vmatprep.subr.mxu0 0.0
    %1996 = vmatpush1.msra.mxu0 0.0
    %1997 = vmatprep.subr.mxu0 0.0
    %1998 = vmatpush1.msra.mxu0 0.0
    %1999 = vmatprep.subr.mxu0 0.0
    %2000 = vmatpush1.msra.mxu0 0.0
    %2001 = vmatprep.subr.mxu0 0.0
    %2002 = vmatpush1.msra.mxu0 0.0
    %2003 = vmatprep.subr.mxu0 0.0
    %2004 = vmatpush1.msra.mxu0 0.0
    %2005 = vmatprep.subr.mxu0 0.0
    %2006 = vmatpush1.msra.mxu0 0.0
    %2007 = vmatprep.subr.mxu0 0.0
    %2008 = vmatpush1.msra.mxu0 0.0
    %2009 = vmatprep.subr.mxu0 0.0
    %2010 = vmatpush1.msra.mxu0 0.0
    %2011 = vmatprep.subr.mxu0 0.0
    %2012 = vmatpush1.msra.mxu0 0.0
    %2013 = vmatprep.subr.mxu0 0.0
    %2014 = vmatpush1.msra.mxu0 0.0
    %2015 = vmatprep.subr.mxu0 0.0
    %2016 = vmatpush1.msra.mxu0 0.0
    %2017 = vmatprep.subr.mxu0 0.0
    %2018 = vmatpush1.msra.mxu0 0.0
    %2019 = vmatprep.subr.mxu0 0.0
    %2020 = vmatpush1.msra.mxu0 0.0
    %2021 = vmatprep.subr.mxu0 0.0
    %2022 = vmatpush1.msra.mxu0 0.0
    %2023 = vmatprep.subr.mxu0 0.0
    %2024 = vmatpush1.msra.mxu0 0.0
    %2025 = vmatprep.subr.mxu0 0.0
    %2026 = vmatpush1.msra.mxu0 0.0
    %2027 = vmatprep.subr.mxu0 0.0
    %2028 = vmatpush1.msra.mxu0 0.0
    %2029 = vmatprep.subr.mxu0 0.0
    %2030 = vmatpush1.msra.mxu0 0.0
    %2031 = vmatprep.subr.mxu0 0.0
    %2032 = vmatpush1.msra.mxu0 0.0
    %2033 = vmatprep.subr.mxu0 0.0
    %2034 = vmatpush1.msra.mxu0 0.0
    %2035 = vmatprep.subr.mxu0 0.0
    %2036 = vmatpush1.msra.mxu0 0.0
    %2037 = vmatprep.subr.mxu0 0.0
    %2038 = vmatpush1.msra.mxu0 0.0
    %2039 = vmatprep.subr.mxu0 0.0
    %2040 = vmatpush1.msra.mxu0 0.0
    %2041 = vmatprep.subr.mxu0 0.0
    %2042 = vmatpush1.msra.mxu0 0.0
    %2043 = vmatprep.subr.mxu0 0.0
    %2044 = vmatpush1.msra.mxu0 0.0
    %2045 = vmatprep.subr.mxu0 0.0
    %2046 = vmatpush1.msra.mxu0 0.0
    %2047 = vmatprep.subr.mxu0 0.0
    %2048 = vmatpush1.msra.mxu0 0.0
    %2049 = vmatprep.subr.mxu0 0.0
    %2050 = vmatpush1.msra.mxu0 0.0
    %2051 = vmatprep.subr.mxu0 0.0
    %2052 = vmatpush1.msra.mxu0 0.0
    %2053 = vmatprep.subr.mxu0 0.0
    %2054 = vmatpush1.msra.mxu0 0.0
    %v2055 = vand.u32 %v1694, 4294901760
    %v2056 = vsub.f32 %v1694, %v2055
    %2057 = vmatprep.mubr.f32.mxu0 %v2056
    %v2058 = vand.u32 %v1693, 4294901760
    %v2059 = vsub.f32 %v1693, %v2058
    %2060 = vmatmul.mubr.f32.gmra.mrb[0].mxu0 %v2059
    %v2061 = vpop.f32.mrb[0].mxu0
    %v2062 = vadd.f32 %v1946, %v2061
    %v2063 = vpop.f32.mrb[0].mxu0
    %v2064 = vand.u32 %v1696, 4294901760
    %v2065 = vsub.f32 %v1696, %v2064
    %2066 = vmatprep.mubr.f32.mxu0 %v2065
    %v2067 = vand.u32 %v1695, 4294901760
    %v2068 = vsub.f32 %v1695, %v2067
    %2069 = vmatmul.mubr.f32.gmra.mrb[0].mxu0 %v2068
    %v2070 = vpop.f32.mrb[0].mxu0
    %v2071 = vadd.f32 %v1953, %v2070
    %v2072 = vpop.f32.mrb[0].mxu0
    %v2073 = vand.u32 %v1698, 4294901760
    %v2074 = vsub.f32 %v1698, %v2073
    %2075 = vmatprep.mubr.f32.mxu0 %v2074
    %v2076 = vand.u32 %v1697, 4294901760
    %v2077 = vsub.f32 %v1697, %v2076
    %2078 = vmatmul.mubr.f32.gmra.mrb[0].mxu0 %v2077
    %v2079 = vpop.f32.mrb[0].mxu0
    %v2080 = vadd.f32 %v1960, %v2079
    %v2081 = vpop.f32.mrb[0].mxu0
    %v2082 = vand.u32 %v1700, 4294901760
    %v2083 = vsub.f32 %v1700, %v2082
    %2084 = vmatprep.mubr.f32.mxu0 %v2083
    %v2085 = vand.u32 %v1699, 4294901760
    %v2086 = vsub.f32 %v1699, %v2085
    %2087 = vmatmul.mubr.f32.gmra.mrb[0].mxu0 %v2086
    %v2088 = vpop.f32.mrb[0].mxu0
    %v2089 = vadd.f32 %v1967, %v2088
    %v2090 = vpop.f32.mrb[0].mxu0
    %v2091 = vand.u32 %v1702, 4294901760
    %v2092 = vsub.f32 %v1702, %v2091
    %2093 = vmatprep.mubr.f32.mxu0 %v2092
    %v2094 = vand.u32 %v1701, 4294901760
    %v2095 = vsub.f32 %v1701, %v2094
    %2096 = vmatmul.mubr.f32.gmra.mrb[0].mxu0 %v2095
    %v2097 = vpop.f32.mrb[0].mxu0
    %v2098 = vadd.f32 %v1974, %v2097
    %v2099 = vpop.f32.mrb[0].mxu0
    %v2100 = vand.u32 %v1704, 4294901760
    %v2101 = vsub.f32 %v1704, %v2100
    %2102 = vmatprep.mubr.f32.mxu0 %v2101
    %v2103 = vand.u32 %v1703, 4294901760
    %v2104 = vsub.f32 %v1703, %v2103
    %2105 = vmatmul.mubr.f32.gmra.mrb[0].mxu0 %v2104
    %v2106 = vpop.f32.mrb[0].mxu0
    %v2107 = vadd.f32 %v1981, %v2106
    %v2108 = vpop.f32.mrb[0].mxu0
    %v2109 = vand.u32 %v1706, 4294901760
    %v2110 = vsub.f32 %v1706, %v2109
    %2111 = vmatprep.mubr.f32.mxu0 %v2110
    %v2112 = vand.u32 %v1705, 4294901760
    %v2113 = vsub.f32 %v1705, %v2112
    %2114 = vmatmul.mubr.f32.gmra.mrb[0].mxu0 %v2113
    %v2115 = vpop.f32.mrb[0].mxu0
    %v2116 = vadd.f32 %v1988, %v2115
    %v2117 = vpop.f32.mrb[0].mxu0
    %2118 = vdwg.mxu0
    %2119 = vmatprep.subr.mxu0 0.0
    %2120 = vmatpush1.msra.mxu0 1.0
    %2121 = vmatprep.subr.mxu0 0.0
    %2122 = vmatpush1.msra.mxu0 1.0
    %2123 = vmatprep.subr.mxu0 0.0
    %2124 = vmatpush1.msra.mxu0 1.0
    %2125 = vmatprep.subr.mxu0 0.0
    %2126 = vmatpush1.msra.mxu0 1.0
    %2127 = vmatprep.subr.mxu0 0.0
    %2128 = vmatpush1.msra.mxu0 1.0
    %2129 = vmatprep.subr.mxu0 0.0
    %2130 = vmatpush1.msra.mxu0 1.0
    %2131 = vmatprep.subr.mxu0 0.0
    %2132 = vmatpush1.msra.mxu0 1.0
    %2133 = vmatprep.subr.mxu0 0.0
    %2134 = vmatpush1.msra.mxu0 1.0
    %2135 = vmatprep.subr.mxu0 0.0
    %2136 = vmatpush1.msra.mxu0 1.0
    %2137 = vmatprep.subr.mxu0 0.0
    %2138 = vmatpush1.msra.mxu0 1.0
    %2139 = vmatprep.subr.mxu0 0.0
    %2140 = vmatpush1.msra.mxu0 1.0
    %2141 = vmatprep.subr.mxu0 0.0
    %2142 = vmatpush1.msra.mxu0 1.0
    %2143 = vmatprep.subr.mxu0 0.0
    %2144 = vmatpush1.msra.mxu0 1.0
    %2145 = vmatprep.subr.mxu0 0.0
    %2146 = vmatpush1.msra.mxu0 1.0
    %2147 = vmatprep.subr.mxu0 0.0
    %2148 = vmatpush1.msra.mxu0 1.0
    %2149 = vmatprep.subr.mxu0 0.0
    %2150 = vmatpush1.msra.mxu0 1.0
    %2151 = vmatprep.subr.mxu0 0.0
    %2152 = vmatpush1.msra.mxu0 1.0
    %2153 = vmatprep.subr.mxu0 0.0
    %2154 = vmatpush1.msra.mxu0 1.0
    %2155 = vmatprep.subr.mxu0 0.0
    %2156 = vmatpush1.msra.mxu0 1.0
    %2157 = vmatprep.subr.mxu0 0.0
    %2158 = vmatpush1.msra.mxu0 1.0
    %2159 = vmatprep.subr.mxu0 0.0
    %2160 = vmatpush1.msra.mxu0 1.0
    %2161 = vmatprep.subr.mxu0 0.0
    %2162 = vmatpush1.msra.mxu0 1.0
    %2163 = vmatprep.subr.mxu0 0.0
    %2164 = vmatpush1.msra.mxu0 1.0
    %2165 = vmatprep.subr.mxu0 0.0
    %2166 = vmatpush1.msra.mxu0 1.0
    %2167 = vmatprep.subr.mxu0 0.0
    %2168 = vmatpush1.msra.mxu0 1.0
    %2169 = vmatprep.subr.mxu0 0.0
    %2170 = vmatpush1.msra.mxu0 1.0
    %2171 = vmatprep.subr.mxu0 0.0
    %2172 = vmatpush1.msra.mxu0 1.0
    %2173 = vmatprep.subr.mxu0 0.0
    %2174 = vmatpush1.msra.mxu0 1.0
    %2175 = vmatprep.subr.mxu0 0.0
    %2176 = vmatpush1.msra.mxu0 1.0
    %2177 = vmatprep.subr.mxu0 0.0
    %2178 = vmatpush1.msra.mxu0 1.0
    %2179 = vmatprep.subr.mxu0 0.0
    %2180 = vmatpush1.msra.mxu0 1.0
    %2181 = vmatprep.subr.mxu0 0.0
    %2182 = vmatpush1.msra.mxu0 1.0
    %v2183 = vand.u32 %v1694, 4294901760
    %v2184 = vsub.f32 %v1694, %v2183
    %v2185 = vand.u32 %v2184, 4294901760
    %2186 = vmatprep.mubr.f32.mxu0 %v2185
    %v2187 = vand.u32 %v1693, 4294901760
    %v2188 = vsub.f32 %v1693, %v2187
    %v2189 = vand.u32 %v2188, 4294901760
    %2190 = vmatmul.mubr.f32.gmra.mrb[0].mxu0 %v2189
    %v2191 = vpop.f32.mrb[0].mxu0
    %v2192 = vadd.f32 %v2062, %v2191
    %v2193 = vpop.f32.mrb[0].mxu0
    %v2194 = vand.u32 %v1696, 4294901760
    %v2195 = vsub.f32 %v1696, %v2194
    %v2196 = vand.u32 %v2195, 4294901760
    %2197 = vmatprep.mubr.f32.mxu0 %v2196
    %v2198 = vand.u32 %v1695, 4294901760
    %v2199 = vsub.f32 %v1695, %v2198
    %v2200 = vand.u32 %v2199, 4294901760
    %2201 = vmatmul.mubr.f32.gmra.mrb[0].mxu0 %v2200
    %v2202 = vpop.f32.mrb[0].mxu0
    %v2203 = vadd.f32 %v2071, %v2202
    %v2204 = vpop.f32.mrb[0].mxu0
    %v2205 = vand.u32 %v1698, 4294901760
    %v2206 = vsub.f32 %v1698, %v2205
    %v2207 = vand.u32 %v2206, 4294901760
    %2208 = vmatprep.mubr.f32.mxu0 %v2207
    %v2209 = vand.u32 %v1697, 4294901760
    %v2210 = vsub.f32 %v1697, %v2209
    %v2211 = vand.u32 %v2210, 4294901760
    %2212 = vmatmul.mubr.f32.gmra.mrb[0].mxu0 %v2211
    %v2213 = vpop.f32.mrb[0].mxu0
    %v2214 = vadd.f32 %v2080, %v2213
    %v2215 = vpop.f32.mrb[0].mxu0
    %v2216 = vand.u32 %v1700, 4294901760
    %v2217 = vsub.f32 %v1700, %v2216
    %v2218 = vand.u32 %v2217, 4294901760
    %2219 = vmatprep.mubr.f32.mxu0 %v2218
    %v2220 = vand.u32 %v1699, 4294901760
    %v2221 = vsub.f32 %v1699, %v2220
    %v2222 = vand.u32 %v2221, 4294901760
    %2223 = vmatmul.mubr.f32.gmra.mrb[0].mxu0 %v2222
    %v2224 = vpop.f32.mrb[0].mxu0
    %v2225 = vadd.f32 %v2089, %v2224
    %v2226 = vpop.f32.mrb[0].mxu0
    %v2227 = vand.u32 %v1702, 4294901760
    %v2228 = vsub.f32 %v1702, %v2227
    %v2229 = vand.u32 %v2228, 4294901760
    %2230 = vmatprep.mubr.f32.mxu0 %v2229
    %v2231 = vand.u32 %v1701, 4294901760
    %v2232 = vsub.f32 %v1701, %v2231
    %v2233 = vand.u32 %v2232, 4294901760
    %2234 = vmatmul.mubr.f32.gmra.mrb[0].mxu0 %v2233
    %v2235 = vpop.f32.mrb[0].mxu0
    %v2236 = vadd.f32 %v2098, %v2235
    %v2237 = vpop.f32.mrb[0].mxu0
    %v2238 = vand.u32 %v1704, 4294901760
    %v2239 = vsub.f32 %v1704, %v2238
    %v2240 = vand.u32 %v2239, 4294901760
    %2241 = vmatprep.mubr.f32.mxu0 %v2240
    %v2242 = vand.u32 %v1703, 4294901760
    %v2243 = vsub.f32 %v1703, %v2242
    %v2244 = vand.u32 %v2243, 4294901760
    %2245 = vmatmul.mubr.f32.gmra.mrb[0].mxu0 %v2244
    %v2246 = vpop.f32.mrb[0].mxu0
    %v2247 = vadd.f32 %v2107, %v2246
    %v2248 = vpop.f32.mrb[0].mxu0
    %v2249 = vand.u32 %v1706, 4294901760
    %v2250 = vsub.f32 %v1706, %v2249
    %v2251 = vand.u32 %v2250, 4294901760
    %2252 = vmatprep.mubr.f32.mxu0 %v2251
    %v2253 = vand.u32 %v1705, 4294901760
    %v2254 = vsub.f32 %v1705, %v2253
    %v2255 = vand.u32 %v2254, 4294901760
    %2256 = vmatmul.mubr.f32.gmra.mrb[0].mxu0 %v2255
    %v2257 = vpop.f32.mrb[0].mxu0
    %v2258 = vadd.f32 %v2116, %v2257
    %v2259 = vpop.f32.mrb[0].mxu0
    %2260 = vdwg.mxu0
    %2261 = vmatprep.subr.mxu0 0.0
    %2262 = vmatpush1.msra.mxu0 0.0
    %2263 = vmatprep.subr.mxu0 0.0
    %2264 = vmatpush1.msra.mxu0 0.0
    %2265 = vmatprep.subr.mxu0 0.0
    %2266 = vmatpush1.msra.mxu0 0.0
    %2267 = vmatprep.subr.mxu0 0.0
    %2268 = vmatpush1.msra.mxu0 0.0
    %2269 = vmatprep.subr.mxu0 0.0
    %2270 = vmatpush1.msra.mxu0 0.0
    %2271 = vmatprep.subr.mxu0 0.0
    %2272 = vmatpush1.msra.mxu0 0.0
    %2273 = vmatprep.subr.mxu0 0.0
    %2274 = vmatpush1.msra.mxu0 0.0
    %2275 = vmatprep.subr.mxu0 0.0
    %2276 = vmatpush1.msra.mxu0 0.0
    %2277 = vmatprep.subr.mxu0 0.0
    %2278 = vmatpush1.msra.mxu0 0.0
    %2279 = vmatprep.subr.mxu0 0.0
    %2280 = vmatpush1.msra.mxu0 0.0
    %2281 = vmatprep.subr.mxu0 0.0
    %2282 = vmatpush1.msra.mxu0 0.0
    %2283 = vmatprep.subr.mxu0 0.0
    %2284 = vmatpush1.msra.mxu0 0.0
    %2285 = vmatprep.subr.mxu0 0.0
    %2286 = vmatpush1.msra.mxu0 0.0
    %2287 = vmatprep.subr.mxu0 0.0
    %2288 = vmatpush1.msra.mxu0 0.0
    %2289 = vmatprep.subr.mxu0 0.0
    %2290 = vmatpush1.msra.mxu0 0.0
    %2291 = vmatprep.subr.mxu0 0.0
    %2292 = vmatpush1.msra.mxu0 0.0
    %2293 = vmatprep.subr.mxu0 0.0
    %2294 = vmatpush1.msra.mxu0 0.0
    %2295 = vmatprep.subr.mxu0 0.0
    %2296 = vmatpush1.msra.mxu0 0.0
    %2297 = vmatprep.subr.mxu0 0.0
    %2298 = vmatpush1.msra.mxu0 0.0
    %2299 = vmatprep.subr.mxu0 0.0
    %2300 = vmatpush1.msra.mxu0 0.0
    %2301 = vmatprep.subr.mxu0 0.0
    %2302 = vmatpush1.msra.mxu0 0.0
    %2303 = vmatprep.subr.mxu0 0.0
    %2304 = vmatpush1.msra.mxu0 0.0
    %2305 = vmatprep.subr.mxu0 0.0
    %2306 = vmatpush1.msra.mxu0 0.0
    %2307 = vmatprep.subr.mxu0 0.0
    %2308 = vmatpush1.msra.mxu0 0.0
    %2309 = vmatprep.subr.mxu0 0.0
    %2310 = vmatpush1.msra.mxu0 0.0
    %2311 = vmatprep.subr.mxu0 0.0
    %2312 = vmatpush1.msra.mxu0 0.0
    %2313 = vmatprep.subr.mxu0 0.0
    %2314 = vmatpush1.msra.mxu0 0.0
    %2315 = vmatprep.subr.mxu0 0.0
    %2316 = vmatpush1.msra.mxu0 0.0
    %2317 = vmatprep.subr.mxu0 0.0
    %2318 = vmatpush1.msra.mxu0 0.0
    %2319 = vmatprep.subr.mxu0 0.0
    %2320 = vmatpush1.msra.mxu0 0.0
    %2321 = vmatprep.subr.mxu0 0.0
    %2322 = vmatpush1.msra.mxu0 0.0
    %2323 = vmatprep.subr.mxu0 0.0
    %2324 = vmatpush1.msra.mxu0 0.0
    %v2325 = vand.u32 %v1694, 4294901760
    %2326 = vmatprep.mubr.f32.mxu0 %v2325
    %v2327 = vand.u32 %v1693, 4294901760
    %2328 = vmatmul.mubr.f32.gmra.mrb[0].mxu0 %v2327
    %v2329 = vpop.f32.mrb[0].mxu0
    %v2330 = vadd.f32 %v2192, %v2329
    %v2331 = vpop.f32.mrb[0].mxu0
    %v2332 = vand.u32 %v1696, 4294901760
    %2333 = vmatprep.mubr.f32.mxu0 %v2332
    %v2334 = vand.u32 %v1695, 4294901760
    %2335 = vmatmul.mubr.f32.gmra.mrb[0].mxu0 %v2334
    %v2336 = vpop.f32.mrb[0].mxu0
    %v2337 = vadd.f32 %v2203, %v2336
    %v2338 = vpop.f32.mrb[0].mxu0
    %v2339 = vand.u32 %v1698, 4294901760
    %2340 = vmatprep.mubr.f32.mxu0 %v2339
    %v2341 = vand.u32 %v1697, 4294901760
    %2342 = vmatmul.mubr.f32.gmra.mrb[0].mxu0 %v2341
    %v2343 = vpop.f32.mrb[0].mxu0
    %v2344 = vadd.f32 %v2214, %v2343
    %v2345 = vpop.f32.mrb[0].mxu0
    %v2346 = vand.u32 %v1700, 4294901760
    %2347 = vmatprep.mubr.f32.mxu0 %v2346
    %v2348 = vand.u32 %v1699, 4294901760
    %2349 = vmatmul.mubr.f32.gmra.mrb[0].mxu0 %v2348
    %v2350 = vpop.f32.mrb[0].mxu0
    %v2351 = vadd.f32 %v2225, %v2350
    %v2352 = vpop.f32.mrb[0].mxu0
    %v2353 = vand.u32 %v1702, 4294901760
    %2354 = vmatprep.mubr.f32.mxu0 %v2353
    %v2355 = vand.u32 %v1701, 4294901760
    %2356 = vmatmul.mubr.f32.gmra.mrb[0].mxu0 %v2355
    %v2357 = vpop.f32.mrb[0].mxu0
    %v2358 = vadd.f32 %v2236, %v2357
    %v2359 = vpop.f32.mrb[0].mxu0
    %v2360 = vand.u32 %v1704, 4294901760
    %2361 = vmatprep.mubr.f32.mxu0 %v2360
    %v2362 = vand.u32 %v1703, 4294901760
    %2363 = vmatmul.mubr.f32.gmra.mrb[0].mxu0 %v2362
    %v2364 = vpop.f32.mrb[0].mxu0
    %v2365 = vadd.f32 %v2247, %v2364
    %v2366 = vpop.f32.mrb[0].mxu0
    %v2367 = vand.u32 %v1706, 4294901760
    %2368 = vmatprep.mubr.f32.mxu0 %v2367
    %v2369 = vand.u32 %v1705, 4294901760
    %2370 = vmatmul.mubr.f32.gmra.mrb[0].mxu0 %v2369
    %v2371 = vpop.f32.mrb[0].mxu0
    %v2372 = vadd.f32 %v2258, %v2371
    %v2373 = vpop.f32.mrb[0].mxu0
    %2374 = vdwg.mxu0
    %2375 = vmatprep.subr.mxu0 0.0
    %2376 = vmatpush1.msra.mxu0 1.0
    %2377 = vmatprep.subr.mxu0 0.0
    %2378 = vmatpush1.msra.mxu0 1.0
    %2379 = vmatprep.subr.mxu0 0.0
    %2380 = vmatpush1.msra.mxu0 1.0
    %2381 = vmatprep.subr.mxu0 0.0
    %2382 = vmatpush1.msra.mxu0 1.0
    %2383 = vmatprep.subr.mxu0 0.0
    %2384 = vmatpush1.msra.mxu0 1.0
    %2385 = vmatprep.subr.mxu0 0.0
    %2386 = vmatpush1.msra.mxu0 1.0
    %2387 = vmatprep.subr.mxu0 0.0
    %2388 = vmatpush1.msra.mxu0 1.0
    %2389 = vmatprep.subr.mxu0 0.0
    %2390 = vmatpush1.msra.mxu0 1.0
    %2391 = vmatprep.subr.mxu0 0.0
    %2392 = vmatpush1.msra.mxu0 1.0
    %2393 = vmatprep.subr.mxu0 0.0
    %2394 = vmatpush1.msra.mxu0 1.0
    %2395 = vmatprep.subr.mxu0 0.0
    %2396 = vmatpush1.msra.mxu0 1.0
    %2397 = vmatprep.subr.mxu0 0.0
    %2398 = vmatpush1.msra.mxu0 1.0
    %2399 = vmatprep.subr.mxu0 0.0
    %2400 = vmatpush1.msra.mxu0 1.0
    %2401 = vmatprep.subr.mxu0 0.0
    %2402 = vmatpush1.msra.mxu0 1.0
    %2403 = vmatprep.subr.mxu0 0.0
    %2404 = vmatpush1.msra.mxu0 1.0
    %2405 = vmatprep.subr.mxu0 0.0
    %2406 = vmatpush1.msra.mxu0 1.0
    %2407 = vmatprep.subr.mxu0 0.0
    %2408 = vmatpush1.msra.mxu0 1.0
    %2409 = vmatprep.subr.mxu0 0.0
    %2410 = vmatpush1.msra.mxu0 1.0
    %2411 = vmatprep.subr.mxu0 0.0
    %2412 = vmatpush1.msra.mxu0 1.0
    %2413 = vmatprep.subr.mxu0 0.0
    %2414 = vmatpush1.msra.mxu0 1.0
    %2415 = vmatprep.subr.mxu0 0.0
    %2416 = vmatpush1.msra.mxu0 1.0
    %2417 = vmatprep.subr.mxu0 0.0
    %2418 = vmatpush1.msra.mxu0 1.0
    %2419 = vmatprep.subr.mxu0 0.0
    %2420 = vmatpush1.msra.mxu0 1.0
    %2421 = vmatprep.subr.mxu0 0.0
    %2422 = vmatpush1.msra.mxu0 1.0
    %2423 = vmatprep.subr.mxu0 0.0
    %2424 = vmatpush1.msra.mxu0 1.0
    %2425 = vmatprep.subr.mxu0 0.0
    %2426 = vmatpush1.msra.mxu0 1.0
    %2427 = vmatprep.subr.mxu0 0.0
    %2428 = vmatpush1.msra.mxu0 1.0
    %2429 = vmatprep.subr.mxu0 0.0
    %2430 = vmatpush1.msra.mxu0 1.0
    %2431 = vmatprep.subr.mxu0 0.0
    %2432 = vmatpush1.msra.mxu0 1.0
    %2433 = vmatprep.subr.mxu0 0.0
    %2434 = vmatpush1.msra.mxu0 1.0
    %2435 = vmatprep.subr.mxu0 0.0
    %2436 = vmatpush1.msra.mxu0 1.0
    %2437 = vmatprep.subr.mxu0 0.0
    %2438 = vmatpush1.msra.mxu0 1.0
    %v2439 = vand.u32 %v1694, 4294901760
    %2440 = vmatprep.mubr.f32.mxu0 %v2439
    %v2441 = vand.u32 %v1693, 4294901760
    %2442 = vmatmul.mubr.f32.gmra.mrb[0].mxu0 %v2441
    %v2443 = vpop.f32.mrb[0].mxu0
    %v2444 = vadd.f32 %v2330, %v2443
    %v2445 = vpop.f32.mrb[0].mxu0
    %v2446 = vand.u32 %v1696, 4294901760
    %2447 = vmatprep.mubr.f32.mxu0 %v2446
    %v2448 = vand.u32 %v1695, 4294901760
    %2449 = vmatmul.mubr.f32.gmra.mrb[0].mxu0 %v2448
    %v2450 = vpop.f32.mrb[0].mxu0
    %v2451 = vadd.f32 %v2337, %v2450
    %v2452 = vpop.f32.mrb[0].mxu0
    %v2453 = vand.u32 %v1698, 4294901760
    %2454 = vmatprep.mubr.f32.mxu0 %v2453
    %v2455 = vand.u32 %v1697, 4294901760
    %2456 = vmatmul.mubr.f32.gmra.mrb[0].mxu0 %v2455
    %v2457 = vpop.f32.mrb[0].mxu0
    %v2458 = vadd.f32 %v2344, %v2457
    %v2459 = vpop.f32.mrb[0].mxu0
    %v2460 = vand.u32 %v1700, 4294901760
    %2461 = vmatprep.mubr.f32.mxu0 %v2460
    %v2462 = vand.u32 %v1699, 4294901760
    %2463 = vmatmul.mubr.f32.gmra.mrb[0].mxu0 %v2462
    %v2464 = vpop.f32.mrb[0].mxu0
    %v2465 = vadd.f32 %v2351, %v2464
    %v2466 = vpop.f32.mrb[0].mxu0
    %v2467 = vand.u32 %v1702, 4294901760
    %2468 = vmatprep.mubr.f32.mxu0 %v2467
    %v2469 = vand.u32 %v1701, 4294901760
    %2470 = vmatmul.mubr.f32.gmra.mrb[0].mxu0 %v2469
    %v2471 = vpop.f32.mrb[0].mxu0
    %v2472 = vadd.f32 %v2358, %v2471
    %v2473 = vpop.f32.mrb[0].mxu0
    %v2474 = vand.u32 %v1704, 4294901760
    %2475 = vmatprep.mubr.f32.mxu0 %v2474
    %v2476 = vand.u32 %v1703, 4294901760
    %2477 = vmatmul.mubr.f32.gmra.mrb[0].mxu0 %v2476
    %v2478 = vpop.f32.mrb[0].mxu0
    %v2479 = vadd.f32 %v2365, %v2478
    %v2480 = vpop.f32.mrb[0].mxu0
    %v2481 = vand.u32 %v1706, 4294901760
    %2482 = vmatprep.mubr.f32.mxu0 %v2481
    %v2483 = vand.u32 %v1705, 4294901760
    %2484 = vmatmul.mubr.f32.gmra.mrb[0].mxu0 %v2483
    %v2485 = vpop.f32.mrb[0].mxu0
    %v2486 = vadd.f32 %v2372, %v2485
    %v2487 = vpop.f32.mrb[0].mxu0
    %2488 = vdwg.mxu0
    %v2489 = vmul.f32 %v1648, %v2444
    %v2490 = vmul.f32 %v1655, %v2451
    %v2491 = vmul.f32 %v1662, %v2458
    %v2492 = vmul.f32 %v1669, %v2465
    %v2493 = vmul.f32 %v1676, %v2472
    %v2494 = vmul.f32 %v1683, %v2479
    %v2495 = vmul.f32 %v1690, %v2486
    %v2496 = vmax.f32 %v2489, 1e-16
    %v2497 = vmax.f32 %v2490, 1e-16
    %v2498 = vmax.f32 %v2491, 1e-16
    %v2499 = vmax.f32 %v2492, 1e-16
    %v2500 = vmax.f32 %v2493, 1e-16
    %v2501 = vmax.f32 %v2494, 1e-16
    %v2502 = vmax.f32 %v2495, 1e-16
    %v2503 = vrsqrt.pop %v2496
    %v2504 = vrsqrt.pop %v2497
    %v2505 = vrsqrt.pop %v2498
    %v2506 = vrsqrt.pop %v2499
    %v2507 = vrsqrt.pop %v2500
    %v2508 = vrsqrt.pop %v2501
    %v2509 = vrsqrt.pop %v2502
    %v2510 = vmul.f32 %v852, %v2503
    %v2511 = vmul.f32 %v859, %v2504
    %v2512 = vmul.f32 %v866, %v2505
    %v2513 = vmul.f32 %v873, %v2506
    %v2514 = vmul.f32 %v880, %v2507
    %v2515 = vmul.f32 %v887, %v2508
    %v2516 = vmul.f32 %v894, %v2509
    %vm2517 = vcmask 7168
    %v2518 = vsel %vm2517, %v2510, 0.0
    %v2519 = vsel %vm2517, %v2511, 0.0
    %v2520 = vadd.f32 %v2518, %v2519
    %v2521 = vsel %vm2517, %v2512, 0.0
    %v2522 = vadd.f32 %v2520, %v2521
    %v2523 = vsel %vm2517, %v2513, 0.0
    %v2524 = vadd.f32 %v2522, %v2523
    %v2525 = vsel %vm2517, %v2514, 0.0
    %v2526 = vadd.f32 %v2524, %v2525
    %v2527 = vsel %vm2517, %v2515, 0.0
    %v2528 = vadd.f32 %v2526, %v2527
    %v2529 = vsel %vm2517, %v2516, 0.0
    %v2530 = vadd.f32 %v2528, %v2529
    %2531 = vadd.xlane.f32.xlu0 %v2530
    %v2532 = vpop.xlane.xlu0 %2531
    %v2533 = vrot.slane %v2532, 4
    %v2534 = vadd.f32 %v2532, %v2533
    %v2535 = vrot.slane %v2534, 2
    %v2536 = vadd.f32 %v2534, %v2535
    %v2537 = vrot.slane %v2536, 1
    %v2538 = vadd.f32 %v2536, %v2537
    %s2539 = vtos %v2538
    %v2540 = vld [vmem:[#allocation7] sm:$0xff]
    %v2541 = vld [vmem:[#allocation7 + $0x8] sm:$0xff]
    %v2542 = vld [vmem:[#allocation7 + $0x10] sm:$0xff]
    %v2543 = vld [vmem:[#allocation7 + $0x18] sm:$0xff]
    %v2544 = vld [vmem:[#allocation7 + $0x20] sm:$0xff]
    %v2545 = vld [vmem:[#allocation7 + $0x28] sm:$0xff]
    %v2546 = vld [vmem:[#allocation7 + $0x30] sm:$0xff]
    %v2547 = vld [vmem:[#allocation7 + $0x38] sm:$0xff]
    %v2548 = vld [vmem:[#allocation7 + $0x40] sm:$0xff]
    %v2549 = vld [vmem:[#allocation7 + $0x48] sm:$0xff]
    %v2550 = vld [vmem:[#allocation7 + $0x50] sm:$0xff]
    %v2551 = vld [vmem:[#allocation7 + $0x58] sm:$0xff]
    %v2552 = vld [vmem:[#allocation7 + $0x60] sm:$0xff]
    %v2553 = vld [vmem:[#allocation7 + $0x68] sm:$0xff]
    %v2554 = vld [vmem:[#allocation8] sm:$0xff]
    %v2555 = vld [vmem:[#allocation8 + $0x8] sm:$0xff]
    %v2556 = vld [vmem:[#allocation8 + $0x10] sm:$0xff]
    %v2557 = vld [vmem:[#allocation8 + $0x18] sm:$0xff]
    %v2558 = vld [vmem:[#allocation8 + $0x20] sm:$0xff]
    %v2559 = vld [vmem:[#allocation8 + $0x28] sm:$0xff]
    %v2560 = vld [vmem:[#allocation8 + $0x30] sm:$0xff]
    %v2561 = vld [vmem:[#allocation8 + $0x38] sm:$0xff]
    %v2562 = vld [vmem:[#allocation8 + $0x40] sm:$0xff]
    %v2563 = vld [vmem:[#allocation8 + $0x48] sm:$0xff]
    %v2564 = vld [vmem:[#allocation8 + $0x50] sm:$0xff]
    %v2565 = vld [vmem:[#allocation8 + $0x58] sm:$0xff]
    %v2566 = vld [vmem:[#allocation8 + $0x60] sm:$0xff]
    %v2567 = vld [vmem:[#allocation8 + $0x68] sm:$0xff]
    %v2568 = vmul.f32 %v2540, %v2554
    %v2569 = vmul.f32 %v2541, %v2555
    %v2570 = vmul.f32 %v2542, %v2556
    %v2571 = vmul.f32 %v2543, %v2557
    %v2572 = vmul.f32 %v2544, %v2558
    %v2573 = vmul.f32 %v2545, %v2559
    %v2574 = vmul.f32 %v2546, %v2560
    %v2575 = vmul.f32 %v2547, %v2561
    %v2576 = vmul.f32 %v2548, %v2562
    %v2577 = vmul.f32 %v2549, %v2563
    %v2578 = vmul.f32 %v2550, %v2564
    %v2579 = vmul.f32 %v2551, %v2565
    %v2580 = vmul.f32 %v2552, %v2566
    %v2581 = vmul.f32 %v2553, %v2567
    %2582 = vmatprep.subr.mxu0 0.0
    %2583 = vmatpush1.msra.mxu0 1.0
    %2584 = vmatprep.subr.mxu0 0.0
    %2585 = vmatpush1.msra.mxu0 1.0
    %2586 = vmatprep.subr.mxu0 0.0
    %2587 = vmatpush1.msra.mxu0 1.0
    %2588 = vmatprep.subr.mxu0 0.0
    %2589 = vmatpush1.msra.mxu0 1.0
    %2590 = vmatprep.subr.mxu0 0.0
    %2591 = vmatpush1.msra.mxu0 1.0
    %2592 = vmatprep.subr.mxu0 0.0
    %2593 = vmatpush1.msra.mxu0 1.0
    %2594 = vmatprep.subr.mxu0 0.0
    %2595 = vmatpush1.msra.mxu0 1.0
    %2596 = vmatprep.subr.mxu0 0.0
    %2597 = vmatpush1.msra.mxu0 1.0
    %2598 = vmatprep.subr.mxu0 0.0
    %2599 = vmatpush1.msra.mxu0 1.0
    %2600 = vmatprep.subr.mxu0 0.0
    %2601 = vmatpush1.msra.mxu0 1.0
    %2602 = vmatprep.subr.mxu0 0.0
    %2603 = vmatpush1.msra.mxu0 1.0
    %2604 = vmatprep.subr.mxu0 0.0
    %2605 = vmatpush1.msra.mxu0 1.0
    %2606 = vmatprep.subr.mxu0 0.0
    %2607 = vmatpush1.msra.mxu0 1.0
    %2608 = vmatprep.subr.mxu0 0.0
    %2609 = vmatpush1.msra.mxu0 1.0
    %2610 = vmatprep.subr.mxu0 0.0
    %2611 = vmatpush1.msra.mxu0 1.0
    %2612 = vmatprep.subr.mxu0 0.0
    %2613 = vmatpush1.msra.mxu0 1.0
    %2614 = vmatprep.subr.mxu0 0.0
    %2615 = vmatpush1.msra.mxu0 1.0
    %2616 = vmatprep.subr.mxu0 0.0
    %2617 = vmatpush1.msra.mxu0 1.0
    %2618 = vmatprep.subr.mxu0 0.0
    %2619 = vmatpush1.msra.mxu0 1.0
    %2620 = vmatprep.subr.mxu0 0.0
    %2621 = vmatpush1.msra.mxu0 1.0
    %2622 = vmatprep.subr.mxu0 0.0
    %2623 = vmatpush1.msra.mxu0 1.0
    %2624 = vmatprep.subr.mxu0 0.0
    %2625 = vmatpush1.msra.mxu0 1.0
    %2626 = vmatprep.subr.mxu0 0.0
    %2627 = vmatpush1.msra.mxu0 1.0
    %2628 = vmatprep.subr.mxu0 0.0
    %2629 = vmatpush1.msra.mxu0 1.0
    %2630 = vmatprep.subr.mxu0 0.0
    %2631 = vmatpush1.msra.mxu0 1.0
    %2632 = vmatprep.subr.mxu0 0.0
    %2633 = vmatpush1.msra.mxu0 1.0
    %2634 = vmatprep.subr.mxu0 0.0
    %2635 = vmatpush1.msra.mxu0 1.0
    %2636 = vmatprep.subr.mxu0 0.0
    %2637 = vmatpush1.msra.mxu0 1.0
    %2638 = vmatprep.subr.mxu0 0.0
    %2639 = vmatpush1.msra.mxu0 1.0
    %2640 = vmatprep.subr.mxu0 0.0
    %2641 = vmatpush1.msra.mxu0 1.0
    %2642 = vmatprep.subr.mxu0 0.0
    %2643 = vmatpush1.msra.mxu0 1.0
    %2644 = vmatprep.subr.mxu0 0.0
    %2645 = vmatpush1.msra.mxu0 1.0
    %v2646 = vand.u32 %v2569, 4294901760
    %v2647 = vsub.f32 %v2569, %v2646
    %v2648 = vand.u32 %v2647, 4294901760
    %v2649 = vsub.f32 %v2647, %v2648
    %v2650 = vand.u32 %v2649, 4294901760
    %2651 = vmatprep.mubr.f32.mxu0 %v2650
    %v2652 = vand.u32 %v2568, 4294901760
    %v2653 = vsub.f32 %v2568, %v2652
    %v2654 = vand.u32 %v2653, 4294901760
    %v2655 = vsub.f32 %v2653, %v2654
    %v2656 = vand.u32 %v2655, 4294901760
    %2657 = vmatmul.mubr.f32.gmra.mrb[0].mxu0 %v2656
    %v2658 = vpop.f32.mrb[0].mxu0
    %v2659 = vadd.f32 0.0, %v2658
    %v2660 = vpop.f32.mrb[0].mxu0
    %v2661 = vand.u32 %v2571, 4294901760
    %v2662 = vsub.f32 %v2571, %v2661
    %v2663 = vand.u32 %v2662, 4294901760
    %v2664 = vsub.f32 %v2662, %v2663
    %v2665 = vand.u32 %v2664, 4294901760
    %2666 = vmatprep.mubr.f32.mxu0 %v2665
    %v2667 = vand.u32 %v2570, 4294901760
    %v2668 = vsub.f32 %v2570, %v2667
    %v2669 = vand.u32 %v2668, 4294901760
    %v2670 = vsub.f32 %v2668, %v2669
    %v2671 = vand.u32 %v2670, 4294901760
    %2672 = vmatmul.mubr.f32.gmra.mrb[0].mxu0 %v2671
    %v2673 = vpop.f32.mrb[0].mxu0
    %v2674 = vadd.f32 0.0, %v2673
    %v2675 = vpop.f32.mrb[0].mxu0
    %v2676 = vand.u32 %v2573, 4294901760
    %v2677 = vsub.f32 %v2573, %v2676
    %v2678 = vand.u32 %v2677, 4294901760
    %v2679 = vsub.f32 %v2677, %v2678
    %v2680 = vand.u32 %v2679, 4294901760
    %2681 = vmatprep.mubr.f32.mxu0 %v2680
    %v2682 = vand.u32 %v2572, 4294901760
    %v2683 = vsub.f32 %v2572, %v2682
    %v2684 = vand.u32 %v2683, 4294901760
    %v2685 = vsub.f32 %v2683, %v2684
    %v2686 = vand.u32 %v2685, 4294901760
    %2687 = vmatmul.mubr.f32.gmra.mrb[0].mxu0 %v2686
    %v2688 = vpop.f32.mrb[0].mxu0
    %v2689 = vadd.f32 0.0, %v2688
    %v2690 = vpop.f32.mrb[0].mxu0
    %v2691 = vand.u32 %v2575, 4294901760
    %v2692 = vsub.f32 %v2575, %v2691
    %v2693 = vand.u32 %v2692, 4294901760
    %v2694 = vsub.f32 %v2692, %v2693
    %v2695 = vand.u32 %v2694, 4294901760
    %2696 = vmatprep.mubr.f32.mxu0 %v2695
    %v2697 = vand.u32 %v2574, 4294901760
    %v2698 = vsub.f32 %v2574, %v2697
    %v2699 = vand.u32 %v2698, 4294901760
    %v2700 = vsub.f32 %v2698, %v2699
    %v2701 = vand.u32 %v2700, 4294901760
    %2702 = vmatmul.mubr.f32.gmra.mrb[0].mxu0 %v2701
    %v2703 = vpop.f32.mrb[0].mxu0
    %v2704 = vadd.f32 0.0, %v2703
    %v2705 = vpop.f32.mrb[0].mxu0
    %v2706 = vand.u32 %v2577, 4294901760
    %v2707 = vsub.f32 %v2577, %v2706
    %v2708 = vand.u32 %v2707, 4294901760
    %v2709 = vsub.f32 %v2707, %v2708
    %v2710 = vand.u32 %v2709, 4294901760
    %2711 = vmatprep.mubr.f32.mxu0 %v2710
    %v2712 = vand.u32 %v2576, 4294901760
    %v2713 = vsub.f32 %v2576, %v2712
    %v2714 = vand.u32 %v2713, 4294901760
    %v2715 = vsub.f32 %v2713, %v2714
    %v2716 = vand.u32 %v2715, 4294901760
    %2717 = vmatmul.mubr.f32.gmra.mrb[0].mxu0 %v2716
    %v2718 = vpop.f32.mrb[0].mxu0
    %v2719 = vadd.f32 0.0, %v2718
    %v2720 = vpop.f32.mrb[0].mxu0
    %v2721 = vand.u32 %v2579, 4294901760
    %v2722 = vsub.f32 %v2579, %v2721
    %v2723 = vand.u32 %v2722, 4294901760
    %v2724 = vsub.f32 %v2722, %v2723
    %v2725 = vand.u32 %v2724, 4294901760
    %2726 = vmatprep.mubr.f32.mxu0 %v2725
    %v2727 = vand.u32 %v2578, 4294901760
    %v2728 = vsub.f32 %v2578, %v2727
    %v2729 = vand.u32 %v2728, 4294901760
    %v2730 = vsub.f32 %v2728, %v2729
    %v2731 = vand.u32 %v2730, 4294901760
    %2732 = vmatmul.mubr.f32.gmra.mrb[0].mxu0 %v2731
    %v2733 = vpop.f32.mrb[0].mxu0
    %v2734 = vadd.f32 0.0, %v2733
    %v2735 = vpop.f32.mrb[0].mxu0
    %v2736 = vand.u32 %v2581, 4294901760
    %v2737 = vsub.f32 %v2581, %v2736
    %v2738 = vand.u32 %v2737, 4294901760
    %v2739 = vsub.f32 %v2737, %v2738
    %v2740 = vand.u32 %v2739, 4294901760
    %2741 = vmatprep.mubr.f32.mxu0 %v2740
    %v2742 = vand.u32 %v2580, 4294901760
    %v2743 = vsub.f32 %v2580, %v2742
    %v2744 = vand.u32 %v2743, 4294901760
    %v2745 = vsub.f32 %v2743, %v2744
    %v2746 = vand.u32 %v2745, 4294901760
    %2747 = vmatmul.mubr.f32.gmra.mrb[0].mxu0 %v2746
    %v2748 = vpop.f32.mrb[0].mxu0
    %v2749 = vadd.f32 0.0, %v2748
    %v2750 = vpop.f32.mrb[0].mxu0
    %2751 = vdwg.mxu0
    %2752 = vmatprep.subr.mxu0 0.0
    %2753 = vmatpush1.msra.mxu0 0.0
    %2754 = vmatprep.subr.mxu0 0.0
    %2755 = vmatpush1.msra.mxu0 0.0
    %2756 = vmatprep.subr.mxu0 0.0
    %2757 = vmatpush1.msra.mxu0 0.0
    %2758 = vmatprep.subr.mxu0 0.0
    %2759 = vmatpush1.msra.mxu0 0.0
    %2760 = vmatprep.subr.mxu0 0.0
    %2761 = vmatpush1.msra.mxu0 0.0
    %2762 = vmatprep.subr.mxu0 0.0
    %2763 = vmatpush1.msra.mxu0 0.0
    %2764 = vmatprep.subr.mxu0 0.0
    %2765 = vmatpush1.msra.mxu0 0.0
    %2766 = vmatprep.subr.mxu0 0.0
    %2767 = vmatpush1.msra.mxu0 0.0
    %2768 = vmatprep.subr.mxu0 0.0
    %2769 = vmatpush1.msra.mxu0 0.0
    %2770 = vmatprep.subr.mxu0 0.0
    %2771 = vmatpush1.msra.mxu0 0.0
    %2772 = vmatprep.subr.mxu0 0.0
    %2773 = vmatpush1.msra.mxu0 0.0
    %2774 = vmatprep.subr.mxu0 0.0
    %2775 = vmatpush1.msra.mxu0 0.0
    %2776 = vmatprep.subr.mxu0 0.0
    %2777 = vmatpush1.msra.mxu0 0.0
    %2778 = vmatprep.subr.mxu0 0.0
    %2779 = vmatpush1.msra.mxu0 0.0
    %2780 = vmatprep.subr.mxu0 0.0
    %2781 = vmatpush1.msra.mxu0 0.0
    %2782 = vmatprep.subr.mxu0 0.0
    %2783 = vmatpush1.msra.mxu0 0.0
    %2784 = vmatprep.subr.mxu0 0.0
    %2785 = vmatpush1.msra.mxu0 0.0
    %2786 = vmatprep.subr.mxu0 0.0
    %2787 = vmatpush1.msra.mxu0 0.0
    %2788 = vmatprep.subr.mxu0 0.0
    %2789 = vmatpush1.msra.mxu0 0.0
    %2790 = vmatprep.subr.mxu0 0.0
    %2791 = vmatpush1.msra.mxu0 0.0
    %2792 = vmatprep.subr.mxu0 0.0
    %2793 = vmatpush1.msra.mxu0 0.0
    %2794 = vmatprep.subr.mxu0 0.0
    %2795 = vmatpush1.msra.mxu0 0.0
    %2796 = vmatprep.subr.mxu0 0.0
    %2797 = vmatpush1.msra.mxu0 0.0
    %2798 = vmatprep.subr.mxu0 0.0
    %2799 = vmatpush1.msra.mxu0 0.0
    %2800 = vmatprep.subr.mxu0 0.0
    %2801 = vmatpush1.msra.mxu0 0.0
    %2802 = vmatprep.subr.mxu0 0.0
    %2803 = vmatpush1.msra.mxu0 0.0
    %2804 = vmatprep.subr.mxu0 0.0
    %2805 = vmatpush1.msra.mxu0 0.0
    %2806 = vmatprep.subr.mxu0 0.0
    %2807 = vmatpush1.msra.mxu0 0.0
    %2808 = vmatprep.subr.mxu0 0.0
    %2809 = vmatpush1.msra.mxu0 0.0
    %2810 = vmatprep.subr.mxu0 0.0
    %2811 = vmatpush1.msra.mxu0 0.0
    %2812 = vmatprep.subr.mxu0 0.0
    %2813 = vmatpush1.msra.mxu0 0.0
    %2814 = vmatprep.subr.mxu0 0.0
    %2815 = vmatpush1.msra.mxu0 0.0
    %v2816 = vand.u32 %v2569, 4294901760
    %2817 = vmatprep.mubr.f32.mxu0 %v2816
    %v2818 = vand.u32 %v2568, 4294901760
    %2819 = vmatmul.mubr.f32.gmra.mrb[0].mxu0 %v2818
    %v2820 = vpop.f32.mrb[0].mxu0
    %v2821 = vadd.f32 %v2659, %v2820
    %v2822 = vpop.f32.mrb[0].mxu0
    %v2823 = vand.u32 %v2571, 4294901760
    %2824 = vmatprep.mubr.f32.mxu0 %v2823
    %v2825 = vand.u32 %v2570, 4294901760
    %2826 = vmatmul.mubr.f32.gmra.mrb[0].mxu0 %v2825
    %v2827 = vpop.f32.mrb[0].mxu0
    %v2828 = vadd.f32 %v2674, %v2827
    %v2829 = vpop.f32.mrb[0].mxu0
    %v2830 = vand.u32 %v2573, 4294901760
    %2831 = vmatprep.mubr.f32.mxu0 %v2830
    %v2832 = vand.u32 %v2572, 4294901760
    %2833 = vmatmul.mubr.f32.gmra.mrb[0].mxu0 %v2832
    %v2834 = vpop.f32.mrb[0].mxu0
    %v2835 = vadd.f32 %v2689, %v2834
    %v2836 = vpop.f32.mrb[0].mxu0
    %v2837 = vand.u32 %v2575, 4294901760
    %2838 = vmatprep.mubr.f32.mxu0 %v2837
    %v2839 = vand.u32 %v2574, 4294901760
    %2840 = vmatmul.mubr.f32.gmra.mrb[0].mxu0 %v2839
    %v2841 = vpop.f32.mrb[0].mxu0
    %v2842 = vadd.f32 %v2704, %v2841
    %v2843 = vpop.f32.mrb[0].mxu0
    %v2844 = vand.u32 %v2577, 4294901760
    %2845 = vmatprep.mubr.f32.mxu0 %v2844
    %v2846 = vand.u32 %v2576, 4294901760
    %2847 = vmatmul.mubr.f32.gmra.mrb[0].mxu0 %v2846
    %v2848 = vpop.f32.mrb[0].mxu0
    %v2849 = vadd.f32 %v2719, %v2848
    %v2850 = vpop.f32.mrb[0].mxu0
    %v2851 = vand.u32 %v2579, 4294901760
    %2852 = vmatprep.mubr.f32.mxu0 %v2851
    %v2853 = vand.u32 %v2578, 4294901760
    %2854 = vmatmul.mubr.f32.gmra.mrb[0].mxu0 %v2853
    %v2855 = vpop.f32.mrb[0].mxu0
    %v2856 = vadd.f32 %v2734, %v2855
    %v2857 = vpop.f32.mrb[0].mxu0
    %v2858 = vand.u32 %v2581, 4294901760
    %2859 = vmatprep.mubr.f32.mxu0 %v2858
    %v2860 = vand.u32 %v2580, 4294901760
    %2861 = vmatmul.mubr.f32.gmra.mrb[0].mxu0 %v2860
    %v2862 = vpop.f32.mrb[0].mxu0
    %v2863 = vadd.f32 %v2749, %v2862
    %v2864 = vpop.f32.mrb[0].mxu0
    %2865 = vdwg.mxu0
    %2866 = vmatprep.subr.mxu0 0.0
    %2867 = vmatpush1.msra.mxu0 0.0
    %2868 = vmatprep.subr.mxu0 0.0
    %2869 = vmatpush1.msra.mxu0 0.0
    %2870 = vmatprep.subr.mxu0 0.0
    %2871 = vmatpush1.msra.mxu0 0.0
    %2872 = vmatprep.subr.mxu0 0.0
    %2873 = vmatpush1.msra.mxu0 0.0
    %2874 = vmatprep.subr.mxu0 0.0
    %2875 = vmatpush1.msra.mxu0 0.0
    %2876 = vmatprep.subr.mxu0 0.0
    %2877 = vmatpush1.msra.mxu0 0.0
    %2878 = vmatprep.subr.mxu0 0.0
    %2879 = vmatpush1.msra.mxu0 0.0
    %2880 = vmatprep.subr.mxu0 0.0
    %2881 = vmatpush1.msra.mxu0 0.0
    %2882 = vmatprep.subr.mxu0 0.0
    %2883 = vmatpush1.msra.mxu0 0.0
    %2884 = vmatprep.subr.mxu0 0.0
    %2885 = vmatpush1.msra.mxu0 0.0
    %2886 = vmatprep.subr.mxu0 0.0
    %2887 = vmatpush1.msra.mxu0 0.0
    %2888 = vmatprep.subr.mxu0 0.0
    %2889 = vmatpush1.msra.mxu0 0.0
    %2890 = vmatprep.subr.mxu0 0.0
    %2891 = vmatpush1.msra.mxu0 0.0
    %2892 = vmatprep.subr.mxu0 0.0
    %2893 = vmatpush1.msra.mxu0 0.0
    %2894 = vmatprep.subr.mxu0 0.0
    %2895 = vmatpush1.msra.mxu0 0.0
    %2896 = vmatprep.subr.mxu0 0.0
    %2897 = vmatpush1.msra.mxu0 0.0
    %2898 = vmatprep.subr.mxu0 0.0
    %2899 = vmatpush1.msra.mxu0 0.0
    %2900 = vmatprep.subr.mxu0 0.0
    %2901 = vmatpush1.msra.mxu0 0.0
    %2902 = vmatprep.subr.mxu0 0.0
    %2903 = vmatpush1.msra.mxu0 0.0
    %2904 = vmatprep.subr.mxu0 0.0
    %2905 = vmatpush1.msra.mxu0 0.0
    %2906 = vmatprep.subr.mxu0 0.0
    %2907 = vmatpush1.msra.mxu0 0.0
    %2908 = vmatprep.subr.mxu0 0.0
    %2909 = vmatpush1.msra.mxu0 0.0
    %2910 = vmatprep.subr.mxu0 0.0
    %2911 = vmatpush1.msra.mxu0 0.0
    %2912 = vmatprep.subr.mxu0 0.0
    %2913 = vmatpush1.msra.mxu0 0.0
    %2914 = vmatprep.subr.mxu0 0.0
    %2915 = vmatpush1.msra.mxu0 0.0
    %2916 = vmatprep.subr.mxu0 0.0
    %2917 = vmatpush1.msra.mxu0 0.0
    %2918 = vmatprep.subr.mxu0 0.0
    %2919 = vmatpush1.msra.mxu0 0.0
    %2920 = vmatprep.subr.mxu0 0.0
    %2921 = vmatpush1.msra.mxu0 0.0
    %2922 = vmatprep.subr.mxu0 0.0
    %2923 = vmatpush1.msra.mxu0 0.0
    %2924 = vmatprep.subr.mxu0 0.0
    %2925 = vmatpush1.msra.mxu0 0.0
    %2926 = vmatprep.subr.mxu0 0.0
    %2927 = vmatpush1.msra.mxu0 0.0
    %2928 = vmatprep.subr.mxu0 0.0
    %2929 = vmatpush1.msra.mxu0 0.0
    %v2930 = vand.u32 %v2569, 4294901760
    %v2931 = vsub.f32 %v2569, %v2930
    %2932 = vmatprep.mubr.f32.mxu0 %v2931
    %v2933 = vand.u32 %v2568, 4294901760
    %v2934 = vsub.f32 %v2568, %v2933
    %2935 = vmatmul.mubr.f32.gmra.mrb[0].mxu0 %v2934
    %v2936 = vpop.f32.mrb[0].mxu0
    %v2937 = vadd.f32 %v2821, %v2936
    %v2938 = vpop.f32.mrb[0].mxu0
    %v2939 = vand.u32 %v2571, 4294901760
    %v2940 = vsub.f32 %v2571, %v2939
    %2941 = vmatprep.mubr.f32.mxu0 %v2940
    %v2942 = vand.u32 %v2570, 4294901760
    %v2943 = vsub.f32 %v2570, %v2942
    %2944 = vmatmul.mubr.f32.gmra.mrb[0].mxu0 %v2943
    %v2945 = vpop.f32.mrb[0].mxu0
    %v2946 = vadd.f32 %v2828, %v2945
    %v2947 = vpop.f32.mrb[0].mxu0
    %v2948 = vand.u32 %v2573, 4294901760
    %v2949 = vsub.f32 %v2573, %v2948
    %2950 = vmatprep.mubr.f32.mxu0 %v2949
    %v2951 = vand.u32 %v2572, 4294901760
    %v2952 = vsub.f32 %v2572, %v2951
    %2953 = vmatmul.mubr.f32.gmra.mrb[0].mxu0 %v2952
    %v2954 = vpop.f32.mrb[0].mxu0
    %v2955 = vadd.f32 %v2835, %v2954
    %v2956 = vpop.f32.mrb[0].mxu0
    %v2957 = vand.u32 %v2575, 4294901760
    %v2958 = vsub.f32 %v2575, %v2957
    %2959 = vmatprep.mubr.f32.mxu0 %v2958
    %v2960 = vand.u32 %v2574, 4294901760
    %v2961 = vsub.f32 %v2574, %v2960
    %2962 = vmatmul.mubr.f32.gmra.mrb[0].mxu0 %v2961
    %v2963 = vpop.f32.mrb[0].mxu0
    %v2964 = vadd.f32 %v2842, %v2963
    %v2965 = vpop.f32.mrb[0].mxu0
    %v2966 = vand.u32 %v2577, 4294901760
    %v2967 = vsub.f32 %v2577, %v2966
    %2968 = vmatprep.mubr.f32.mxu0 %v2967
    %v2969 = vand.u32 %v2576, 4294901760
    %v2970 = vsub.f32 %v2576, %v2969
    %2971 = vmatmul.mubr.f32.gmra.mrb[0].mxu0 %v2970
    %v2972 = vpop.f32.mrb[0].mxu0
    %v2973 = vadd.f32 %v2849, %v2972
    %v2974 = vpop.f32.mrb[0].mxu0
    %v2975 = vand.u32 %v2579, 4294901760
    %v2976 = vsub.f32 %v2579, %v2975
    %2977 = vmatprep.mubr.f32.mxu0 %v2976
    %v2978 = vand.u32 %v2578, 4294901760
    %v2979 = vsub.f32 %v2578, %v2978
    %2980 = vmatmul.mubr.f32.gmra.mrb[0].mxu0 %v2979
    %v2981 = vpop.f32.mrb[0].mxu0
    %v2982 = vadd.f32 %v2856, %v2981
    %v2983 = vpop.f32.mrb[0].mxu0
    %v2984 = vand.u32 %v2581, 4294901760
    %v2985 = vsub.f32 %v2581, %v2984
    %2986 = vmatprep.mubr.f32.mxu0 %v2985
    %v2987 = vand.u32 %v2580, 4294901760
    %v2988 = vsub.f32 %v2580, %v2987
    %2989 = vmatmul.mubr.f32.gmra.mrb[0].mxu0 %v2988
    %v2990 = vpop.f32.mrb[0].mxu0
    %v2991 = vadd.f32 %v2863, %v2990
    %v2992 = vpop.f32.mrb[0].mxu0
    %2993 = vdwg.mxu0
    %2994 = vmatprep.subr.mxu0 0.0
    %2995 = vmatpush1.msra.mxu0 1.0
    %2996 = vmatprep.subr.mxu0 0.0
    %2997 = vmatpush1.msra.mxu0 1.0
    %2998 = vmatprep.subr.mxu0 0.0
    %2999 = vmatpush1.msra.mxu0 1.0
    %3000 = vmatprep.subr.mxu0 0.0
    %3001 = vmatpush1.msra.mxu0 1.0
    %3002 = vmatprep.subr.mxu0 0.0
    %3003 = vmatpush1.msra.mxu0 1.0
    %3004 = vmatprep.subr.mxu0 0.0
    %3005 = vmatpush1.msra.mxu0 1.0
    %3006 = vmatprep.subr.mxu0 0.0
    %3007 = vmatpush1.msra.mxu0 1.0
    %3008 = vmatprep.subr.mxu0 0.0
    %3009 = vmatpush1.msra.mxu0 1.0
    %3010 = vmatprep.subr.mxu0 0.0
    %3011 = vmatpush1.msra.mxu0 1.0
    %3012 = vmatprep.subr.mxu0 0.0
    %3013 = vmatpush1.msra.mxu0 1.0
    %3014 = vmatprep.subr.mxu0 0.0
    %3015 = vmatpush1.msra.mxu0 1.0
    %3016 = vmatprep.subr.mxu0 0.0
    %3017 = vmatpush1.msra.mxu0 1.0
    %3018 = vmatprep.subr.mxu0 0.0
    %3019 = vmatpush1.msra.mxu0 1.0
    %3020 = vmatprep.subr.mxu0 0.0
    %3021 = vmatpush1.msra.mxu0 1.0
    %3022 = vmatprep.subr.mxu0 0.0
    %3023 = vmatpush1.msra.mxu0 1.0
    %3024 = vmatprep.subr.mxu0 0.0
    %3025 = vmatpush1.msra.mxu0 1.0
    %3026 = vmatprep.subr.mxu0 0.0
    %3027 = vmatpush1.msra.mxu0 1.0
    %3028 = vmatprep.subr.mxu0 0.0
    %3029 = vmatpush1.msra.mxu0 1.0
    %3030 = vmatprep.subr.mxu0 0.0
    %3031 = vmatpush1.msra.mxu0 1.0
    %3032 = vmatprep.subr.mxu0 0.0
    %3033 = vmatpush1.msra.mxu0 1.0
    %3034 = vmatprep.subr.mxu0 0.0
    %3035 = vmatpush1.msra.mxu0 1.0
    %3036 = vmatprep.subr.mxu0 0.0
    %3037 = vmatpush1.msra.mxu0 1.0
    %3038 = vmatprep.subr.mxu0 0.0
    %3039 = vmatpush1.msra.mxu0 1.0
    %3040 = vmatprep.subr.mxu0 0.0
    %3041 = vmatpush1.msra.mxu0 1.0
    %3042 = vmatprep.subr.mxu0 0.0
    %3043 = vmatpush1.msra.mxu0 1.0
    %3044 = vmatprep.subr.mxu0 0.0
    %3045 = vmatpush1.msra.mxu0 1.0
    %3046 = vmatprep.subr.mxu0 0.0
    %3047 = vmatpush1.msra.mxu0 1.0
    %3048 = vmatprep.subr.mxu0 0.0
    %3049 = vmatpush1.msra.mxu0 1.0
    %3050 = vmatprep.subr.mxu0 0.0
    %3051 = vmatpush1.msra.mxu0 1.0
    %3052 = vmatprep.subr.mxu0 0.0
    %3053 = vmatpush1.msra.mxu0 1.0
    %3054 = vmatprep.subr.mxu0 0.0
    %3055 = vmatpush1.msra.mxu0 1.0
    %3056 = vmatprep.subr.mxu0 0.0
    %3057 = vmatpush1.msra.mxu0 1.0
    %v3058 = vand.u32 %v2569, 4294901760
    %v3059 = vsub.f32 %v2569, %v3058
    %v3060 = vand.u32 %v3059, 4294901760
    %3061 = vmatprep.mubr.f32.mxu0 %v3060
    %v3062 = vand.u32 %v2568, 4294901760
    %v3063 = vsub.f32 %v2568, %v3062
    %v3064 = vand.u32 %v3063, 4294901760
    %3065 = vmatmul.mubr.f32.gmra.mrb[0].mxu0 %v3064
    %v3066 = vpop.f32.mrb[0].mxu0
    %v3067 = vadd.f32 %v2937, %v3066
    %v3068 = vpop.f32.mrb[0].mxu0
    %v3069 = vand.u32 %v2571, 4294901760
    %v3070 = vsub.f32 %v2571, %v3069
    %v3071 = vand.u32 %v3070, 4294901760
    %3072 = vmatprep.mubr.f32.mxu0 %v3071
    %v3073 = vand.u32 %v2570, 4294901760
    %v3074 = vsub.f32 %v2570, %v3073
    %v3075 = vand.u32 %v3074, 4294901760
    %3076 = vmatmul.mubr.f32.gmra.mrb[0].mxu0 %v3075
    %v3077 = vpop.f32.mrb[0].mxu0
    %v3078 = vadd.f32 %v2946, %v3077
    %v3079 = vpop.f32.mrb[0].mxu0
    %v3080 = vand.u32 %v2573, 4294901760
    %v3081 = vsub.f32 %v2573, %v3080
    %v3082 = vand.u32 %v3081, 4294901760
    %3083 = vmatprep.mubr.f32.mxu0 %v3082
    %v3084 = vand.u32 %v2572, 4294901760
    %v3085 = vsub.f32 %v2572, %v3084
    %v3086 = vand.u32 %v3085, 4294901760
    %3087 = vmatmul.mubr.f32.gmra.mrb[0].mxu0 %v3086
    %v3088 = vpop.f32.mrb[0].mxu0
    %v3089 = vadd.f32 %v2955, %v3088
    %v3090 = vpop.f32.mrb[0].mxu0
    %v3091 = vand.u32 %v2575, 4294901760
    %v3092 = vsub.f32 %v2575, %v3091
    %v3093 = vand.u32 %v3092, 4294901760
    %3094 = vmatprep.mubr.f32.mxu0 %v3093
    %v3095 = vand.u32 %v2574, 4294901760
    %v3096 = vsub.f32 %v2574, %v3095
    %v3097 = vand.u32 %v3096, 4294901760
    %3098 = vmatmul.mubr.f32.gmra.mrb[0].mxu0 %v3097
    %v3099 = vpop.f32.mrb[0].mxu0
    %v3100 = vadd.f32 %v2964, %v3099
    %v3101 = vpop.f32.mrb[0].mxu0
    %v3102 = vand.u32 %v2577, 4294901760
    %v3103 = vsub.f32 %v2577, %v3102
    %v3104 = vand.u32 %v3103, 4294901760
    %3105 = vmatprep.mubr.f32.mxu0 %v3104
    %v3106 = vand.u32 %v2576, 4294901760
    %v3107 = vsub.f32 %v2576, %v3106
    %v3108 = vand.u32 %v3107, 4294901760
    %3109 = vmatmul.mubr.f32.gmra.mrb[0].mxu0 %v3108
    %v3110 = vpop.f32.mrb[0].mxu0
    %v3111 = vadd.f32 %v2973, %v3110
    %v3112 = vpop.f32.mrb[0].mxu0
    %v3113 = vand.u32 %v2579, 4294901760
    %v3114 = vsub.f32 %v2579, %v3113
    %v3115 = vand.u32 %v3114, 4294901760
    %3116 = vmatprep.mubr.f32.mxu0 %v3115
    %v3117 = vand.u32 %v2578, 4294901760
    %v3118 = vsub.f32 %v2578, %v3117
    %v3119 = vand.u32 %v3118, 4294901760
    %3120 = vmatmul.mubr.f32.gmra.mrb[0].mxu0 %v3119
    %v3121 = vpop.f32.mrb[0].mxu0
    %v3122 = vadd.f32 %v2982, %v3121
    %v3123 = vpop.f32.mrb[0].mxu0
    %v3124 = vand.u32 %v2581, 4294901760
    %v3125 = vsub.f32 %v2581, %v3124
    %v3126 = vand.u32 %v3125, 4294901760
    %3127 = vmatprep.mubr.f32.mxu0 %v3126
    %v3128 = vand.u32 %v2580, 4294901760
    %v3129 = vsub.f32 %v2580, %v3128
    %v3130 = vand.u32 %v3129, 4294901760
    %3131 = vmatmul.mubr.f32.gmra.mrb[0].mxu0 %v3130
    %v3132 = vpop.f32.mrb[0].mxu0
    %v3133 = vadd.f32 %v2991, %v3132
    %v3134 = vpop.f32.mrb[0].mxu0
    %3135 = vdwg.mxu0
    %3136 = vmatprep.subr.mxu0 0.0
    %3137 = vmatpush1.msra.mxu0 0.0
    %3138 = vmatprep.subr.mxu0 0.0
    %3139 = vmatpush1.msra.mxu0 0.0
    %3140 = vmatprep.subr.mxu0 0.0
    %3141 = vmatpush1.msra.mxu0 0.0
    %3142 = vmatprep.subr.mxu0 0.0
    %3143 = vmatpush1.msra.mxu0 0.0
    %3144 = vmatprep.subr.mxu0 0.0
    %3145 = vmatpush1.msra.mxu0 0.0
    %3146 = vmatprep.subr.mxu0 0.0
    %3147 = vmatpush1.msra.mxu0 0.0
    %3148 = vmatprep.subr.mxu0 0.0
    %3149 = vmatpush1.msra.mxu0 0.0
    %3150 = vmatprep.subr.mxu0 0.0
    %3151 = vmatpush1.msra.mxu0 0.0
    %3152 = vmatprep.subr.mxu0 0.0
    %3153 = vmatpush1.msra.mxu0 0.0
    %3154 = vmatprep.subr.mxu0 0.0
    %3155 = vmatpush1.msra.mxu0 0.0
    %3156 = vmatprep.subr.mxu0 0.0
    %3157 = vmatpush1.msra.mxu0 0.0
    %3158 = vmatprep.subr.mxu0 0.0
    %3159 = vmatpush1.msra.mxu0 0.0
    %3160 = vmatprep.subr.mxu0 0.0
    %3161 = vmatpush1.msra.mxu0 0.0
    %3162 = vmatprep.subr.mxu0 0.0
    %3163 = vmatpush1.msra.mxu0 0.0
    %3164 = vmatprep.subr.mxu0 0.0
    %3165 = vmatpush1.msra.mxu0 0.0
    %3166 = vmatprep.subr.mxu0 0.0
    %3167 = vmatpush1.msra.mxu0 0.0
    %3168 = vmatprep.subr.mxu0 0.0
    %3169 = vmatpush1.msra.mxu0 0.0
    %3170 = vmatprep.subr.mxu0 0.0
    %3171 = vmatpush1.msra.mxu0 0.0
    %3172 = vmatprep.subr.mxu0 0.0
    %3173 = vmatpush1.msra.mxu0 0.0
    %3174 = vmatprep.subr.mxu0 0.0
    %3175 = vmatpush1.msra.mxu0 0.0
    %3176 = vmatprep.subr.mxu0 0.0
    %3177 = vmatpush1.msra.mxu0 0.0
    %3178 = vmatprep.subr.mxu0 0.0
    %3179 = vmatpush1.msra.mxu0 0.0
    %3180 = vmatprep.subr.mxu0 0.0
    %3181 = vmatpush1.msra.mxu0 0.0
    %3182 = vmatprep.subr.mxu0 0.0
    %3183 = vmatpush1.msra.mxu0 0.0
    %3184 = vmatprep.subr.mxu0 0.0
    %3185 = vmatpush1.msra.mxu0 0.0
    %3186 = vmatprep.subr.mxu0 0.0
    %3187 = vmatpush1.msra.mxu0 0.0
    %3188 = vmatprep.subr.mxu0 0.0
    %3189 = vmatpush1.msra.mxu0 0.0
    %3190 = vmatprep.subr.mxu0 0.0
    %3191 = vmatpush1.msra.mxu0 0.0
    %3192 = vmatprep.subr.mxu0 0.0
    %3193 = vmatpush1.msra.mxu0 0.0
    %3194 = vmatprep.subr.mxu0 0.0
    %3195 = vmatpush1.msra.mxu0 0.0
    %3196 = vmatprep.subr.mxu0 0.0
    %3197 = vmatpush1.msra.mxu0 0.0
    %3198 = vmatprep.subr.mxu0 0.0
    %3199 = vmatpush1.msra.mxu0 0.0
    %v3200 = vand.u32 %v2569, 4294901760
    %3201 = vmatprep.mubr.f32.mxu0 %v3200
    %v3202 = vand.u32 %v2568, 4294901760
    %3203 = vmatmul.mubr.f32.gmra.mrb[0].mxu0 %v3202
    %v3204 = vpop.f32.mrb[0].mxu0
    %v3205 = vadd.f32 %v3067, %v3204
    %v3206 = vpop.f32.mrb[0].mxu0
    %v3207 = vand.u32 %v2571, 4294901760
    %3208 = vmatprep.mubr.f32.mxu0 %v3207
    %v3209 = vand.u32 %v2570, 4294901760
    %3210 = vmatmul.mubr.f32.gmra.mrb[0].mxu0 %v3209
    %v3211 = vpop.f32.mrb[0].mxu0
    %v3212 = vadd.f32 %v3078, %v3211
    %v3213 = vpop.f32.mrb[0].mxu0
    %v3214 = vand.u32 %v2573, 4294901760
    %3215 = vmatprep.mubr.f32.mxu0 %v3214
    %v3216 = vand.u32 %v2572, 4294901760
    %3217 = vmatmul.mubr.f32.gmra.mrb[0].mxu0 %v3216
    %v3218 = vpop.f32.mrb[0].mxu0
    %v3219 = vadd.f32 %v3089, %v3218
    %v3220 = vpop.f32.mrb[0].mxu0
    %v3221 = vand.u32 %v2575, 4294901760
    %3222 = vmatprep.mubr.f32.mxu0 %v3221
    %v3223 = vand.u32 %v2574, 4294901760
    %3224 = vmatmul.mubr.f32.gmra.mrb[0].mxu0 %v3223
    %v3225 = vpop.f32.mrb[0].mxu0
    %v3226 = vadd.f32 %v3100, %v3225
    %v3227 = vpop.f32.mrb[0].mxu0
    %v3228 = vand.u32 %v2577, 4294901760
    %3229 = vmatprep.mubr.f32.mxu0 %v3228
    %v3230 = vand.u32 %v2576, 4294901760
    %3231 = vmatmul.mubr.f32.gmra.mrb[0].mxu0 %v3230
    %v3232 = vpop.f32.mrb[0].mxu0
    %v3233 = vadd.f32 %v3111, %v3232
    %v3234 = vpop.f32.mrb[0].mxu0
    %v3235 = vand.u32 %v2579, 4294901760
    %3236 = vmatprep.mubr.f32.mxu0 %v3235
    %v3237 = vand.u32 %v2578, 4294901760
    %3238 = vmatmul.mubr.f32.gmra.mrb[0].mxu0 %v3237
    %v3239 = vpop.f32.mrb[0].mxu0
    %v3240 = vadd.f32 %v3122, %v3239
    %v3241 = vpop.f32.mrb[0].mxu0
    %v3242 = vand.u32 %v2581, 4294901760
    %3243 = vmatprep.mubr.f32.mxu0 %v3242
    %v3244 = vand.u32 %v2580, 4294901760
    %3245 = vmatmul.mubr.f32.gmra.mrb[0].mxu0 %v3244
    %v3246 = vpop.f32.mrb[0].mxu0
    %v3247 = vadd.f32 %v3133, %v3246
    %v3248 = vpop.f32.mrb[0].mxu0
    %3249 = vdwg.mxu0
    %3250 = vmatprep.subr.mxu0 0.0
    %3251 = vmatpush1.msra.mxu0 1.0
    %3252 = vmatprep.subr.mxu0 0.0
    %3253 = vmatpush1.msra.mxu0 1.0
    %3254 = vmatprep.subr.mxu0 0.0
    %3255 = vmatpush1.msra.mxu0 1.0
    %3256 = vmatprep.subr.mxu0 0.0
    %3257 = vmatpush1.msra.mxu0 1.0
    %3258 = vmatprep.subr.mxu0 0.0
    %3259 = vmatpush1.msra.mxu0 1.0
    %3260 = vmatprep.subr.mxu0 0.0
    %3261 = vmatpush1.msra.mxu0 1.0
    %3262 = vmatprep.subr.mxu0 0.0
    %3263 = vmatpush1.msra.mxu0 1.0
    %3264 = vmatprep.subr.mxu0 0.0
    %3265 = vmatpush1.msra.mxu0 1.0
    %3266 = vmatprep.subr.mxu0 0.0
    %3267 = vmatpush1.msra.mxu0 1.0
    %3268 = vmatprep.subr.mxu0 0.0
    %3269 = vmatpush1.msra.mxu0 1.0
    %3270 = vmatprep.subr.mxu0 0.0
    %3271 = vmatpush1.msra.mxu0 1.0
    %3272 = vmatprep.subr.mxu0 0.0
    %3273 = vmatpush1.msra.mxu0 1.0
    %3274 = vmatprep.subr.mxu0 0.0
    %3275 = vmatpush1.msra.mxu0 1.0
    %3276 = vmatprep.subr.mxu0 0.0
    %3277 = vmatpush1.msra.mxu0 1.0
    %3278 = vmatprep.subr.mxu0 0.0
    %3279 = vmatpush1.msra.mxu0 1.0
    %3280 = vmatprep.subr.mxu0 0.0
    %3281 = vmatpush1.msra.mxu0 1.0
    %3282 = vmatprep.subr.mxu0 0.0
    %3283 = vmatpush1.msra.mxu0 1.0
    %3284 = vmatprep.subr.mxu0 0.0
    %3285 = vmatpush1.msra.mxu0 1.0
    %3286 = vmatprep.subr.mxu0 0.0
    %3287 = vmatpush1.msra.mxu0 1.0
    %3288 = vmatprep.subr.mxu0 0.0
    %3289 = vmatpush1.msra.mxu0 1.0
    %3290 = vmatprep.subr.mxu0 0.0
    %3291 = vmatpush1.msra.mxu0 1.0
    %3292 = vmatprep.subr.mxu0 0.0
    %3293 = vmatpush1.msra.mxu0 1.0
    %3294 = vmatprep.subr.mxu0 0.0
    %3295 = vmatpush1.msra.mxu0 1.0
    %3296 = vmatprep.subr.mxu0 0.0
    %3297 = vmatpush1.msra.mxu0 1.0
    %3298 = vmatprep.subr.mxu0 0.0
    %3299 = vmatpush1.msra.mxu0 1.0
    %3300 = vmatprep.subr.mxu0 0.0
    %3301 = vmatpush1.msra.mxu0 1.0
    %3302 = vmatprep.subr.mxu0 0.0
    %3303 = vmatpush1.msra.mxu0 1.0
    %3304 = vmatprep.subr.mxu0 0.0
    %3305 = vmatpush1.msra.mxu0 1.0
    %3306 = vmatprep.subr.mxu0 0.0
    %3307 = vmatpush1.msra.mxu0 1.0
    %3308 = vmatprep.subr.mxu0 0.0
    %3309 = vmatpush1.msra.mxu0 1.0
    %3310 = vmatprep.subr.mxu0 0.0
    %3311 = vmatpush1.msra.mxu0 1.0
    %3312 = vmatprep.subr.mxu0 0.0
    %3313 = vmatpush1.msra.mxu0 1.0
    %v3314 = vand.u32 %v2569, 4294901760
    %3315 = vmatprep.mubr.f32.mxu0 %v3314
    %v3316 = vand.u32 %v2568, 4294901760
    %3317 = vmatmul.mubr.f32.gmra.mrb[0].mxu0 %v3316
    %v3318 = vpop.f32.mrb[0].mxu0
    %v3319 = vadd.f32 %v3205, %v3318
    %v3320 = vpop.f32.mrb[0].mxu0
    %v3321 = vand.u32 %v2571, 4294901760
    %3322 = vmatprep.mubr.f32.mxu0 %v3321
    %v3323 = vand.u32 %v2570, 4294901760
    %3324 = vmatmul.mubr.f32.gmra.mrb[0].mxu0 %v3323
    %v3325 = vpop.f32.mrb[0].mxu0
    %v3326 = vadd.f32 %v3212, %v3325
    %v3327 = vpop.f32.mrb[0].mxu0
    %v3328 = vand.u32 %v2573, 4294901760
    %3329 = vmatprep.mubr.f32.mxu0 %v3328
    %v3330 = vand.u32 %v2572, 4294901760
    %3331 = vmatmul.mubr.f32.gmra.mrb[0].mxu0 %v3330
    %v3332 = vpop.f32.mrb[0].mxu0
    %v3333 = vadd.f32 %v3219, %v3332
    %v3334 = vpop.f32.mrb[0].mxu0
    %v3335 = vand.u32 %v2575, 4294901760
    %3336 = vmatprep.mubr.f32.mxu0 %v3335
    %v3337 = vand.u32 %v2574, 4294901760
    %3338 = vmatmul.mubr.f32.gmra.mrb[0].mxu0 %v3337
    %v3339 = vpop.f32.mrb[0].mxu0
    %v3340 = vadd.f32 %v3226, %v3339
    %v3341 = vpop.f32.mrb[0].mxu0
    %v3342 = vand.u32 %v2577, 4294901760
    %3343 = vmatprep.mubr.f32.mxu0 %v3342
    %v3344 = vand.u32 %v2576, 4294901760
    %3345 = vmatmul.mubr.f32.gmra.mrb[0].mxu0 %v3344
    %v3346 = vpop.f32.mrb[0].mxu0
    %v3347 = vadd.f32 %v3233, %v3346
    %v3348 = vpop.f32.mrb[0].mxu0
    %v3349 = vand.u32 %v2579, 4294901760
    %3350 = vmatprep.mubr.f32.mxu0 %v3349
    %v3351 = vand.u32 %v2578, 4294901760
    %3352 = vmatmul.mubr.f32.gmra.mrb[0].mxu0 %v3351
    %v3353 = vpop.f32.mrb[0].mxu0
    %v3354 = vadd.f32 %v3240, %v3353
    %v3355 = vpop.f32.mrb[0].mxu0
    %v3356 = vand.u32 %v2581, 4294901760
    %3357 = vmatprep.mubr.f32.mxu0 %v3356
    %v3358 = vand.u32 %v2580, 4294901760
    %3359 = vmatmul.mubr.f32.gmra.mrb[0].mxu0 %v3358
    %v3360 = vpop.f32.mrb[0].mxu0
    %v3361 = vadd.f32 %v3247, %v3360
    %v3362 = vpop.f32.mrb[0].mxu0
    %3363 = vdwg.mxu0
    %v3364 = vmul.f32 %v2540, %v2540
    %v3365 = vmul.f32 %v2541, %v2541
    %v3366 = vmul.f32 %v2542, %v2542
    %v3367 = vmul.f32 %v2543, %v2543
    %v3368 = vmul.f32 %v2544, %v2544
    %v3369 = vmul.f32 %v2545, %v2545
    %v3370 = vmul.f32 %v2546, %v2546
    %v3371 = vmul.f32 %v2547, %v2547
    %v3372 = vmul.f32 %v2548, %v2548
    %v3373 = vmul.f32 %v2549, %v2549
    %v3374 = vmul.f32 %v2550, %v2550
    %v3375 = vmul.f32 %v2551, %v2551
    %v3376 = vmul.f32 %v2552, %v2552
    %v3377 = vmul.f32 %v2553, %v2553
    %3378 = vmatprep.subr.mxu0 0.0
    %3379 = vmatpush1.msra.mxu0 1.0
    %3380 = vmatprep.subr.mxu0 0.0
    %3381 = vmatpush1.msra.mxu0 1.0
    %3382 = vmatprep.subr.mxu0 0.0
    %3383 = vmatpush1.msra.mxu0 1.0
    %3384 = vmatprep.subr.mxu0 0.0
    %3385 = vmatpush1.msra.mxu0 1.0
    %3386 = vmatprep.subr.mxu0 0.0
    %3387 = vmatpush1.msra.mxu0 1.0
    %3388 = vmatprep.subr.mxu0 0.0
    %3389 = vmatpush1.msra.mxu0 1.0
    %3390 = vmatprep.subr.mxu0 0.0
    %3391 = vmatpush1.msra.mxu0 1.0
    %3392 = vmatprep.subr.mxu0 0.0
    %3393 = vmatpush1.msra.mxu0 1.0
    %3394 = vmatprep.subr.mxu0 0.0
    %3395 = vmatpush1.msra.mxu0 1.0
    %3396 = vmatprep.subr.mxu0 0.0
    %3397 = vmatpush1.msra.mxu0 1.0
    %3398 = vmatprep.subr.mxu0 0.0
    %3399 = vmatpush1.msra.mxu0 1.0
    %3400 = vmatprep.subr.mxu0 0.0
    %3401 = vmatpush1.msra.mxu0 1.0
    %3402 = vmatprep.subr.mxu0 0.0
    %3403 = vmatpush1.msra.mxu0 1.0
    %3404 = vmatprep.subr.mxu0 0.0
    %3405 = vmatpush1.msra.mxu0 1.0
    %3406 = vmatprep.subr.mxu0 0.0
    %3407 = vmatpush1.msra.mxu0 1.0
    %3408 = vmatprep.subr.mxu0 0.0
    %3409 = vmatpush1.msra.mxu0 1.0
    %3410 = vmatprep.subr.mxu0 0.0
    %3411 = vmatpush1.msra.mxu0 1.0
    %3412 = vmatprep.subr.mxu0 0.0
    %3413 = vmatpush1.msra.mxu0 1.0
    %3414 = vmatprep.subr.mxu0 0.0
    %3415 = vmatpush1.msra.mxu0 1.0
    %3416 = vmatprep.subr.mxu0 0.0
    %3417 = vmatpush1.msra.mxu0 1.0
    %3418 = vmatprep.subr.mxu0 0.0
    %3419 = vmatpush1.msra.mxu0 1.0
    %3420 = vmatprep.subr.mxu0 0.0
    %3421 = vmatpush1.msra.mxu0 1.0
    %3422 = vmatprep.subr.mxu0 0.0
    %3423 = vmatpush1.msra.mxu0 1.0
    %3424 = vmatprep.subr.mxu0 0.0
    %3425 = vmatpush1.msra.mxu0 1.0
    %3426 = vmatprep.subr.mxu0 0.0
    %3427 = vmatpush1.msra.mxu0 1.0
    %3428 = vmatprep.subr.mxu0 0.0
    %3429 = vmatpush1.msra.mxu0 1.0
    %3430 = vmatprep.subr.mxu0 0.0
    %3431 = vmatpush1.msra.mxu0 1.0
    %3432 = vmatprep.subr.mxu0 0.0
    %3433 = vmatpush1.msra.mxu0 1.0
    %3434 = vmatprep.subr.mxu0 0.0
    %3435 = vmatpush1.msra.mxu0 1.0
    %3436 = vmatprep.subr.mxu0 0.0
    %3437 = vmatpush1.msra.mxu0 1.0
    %3438 = vmatprep.subr.mxu0 0.0
    %3439 = vmatpush1.msra.mxu0 1.0
    %3440 = vmatprep.subr.mxu0 0.0
    %3441 = vmatpush1.msra.mxu0 1.0
    %v3442 = vand.u32 %v3365, 4294901760
    %v3443 = vsub.f32 %v3365, %v3442
    %v3444 = vand.u32 %v3443, 4294901760
    %v3445 = vsub.f32 %v3443, %v3444
    %v3446 = vand.u32 %v3445, 4294901760
    %3447 = vmatprep.mubr.f32.mxu0 %v3446
    %v3448 = vand.u32 %v3364, 4294901760
    %v3449 = vsub.f32 %v3364, %v3448
    %v3450 = vand.u32 %v3449, 4294901760
    %v3451 = vsub.f32 %v3449, %v3450
    %v3452 = vand.u32 %v3451, 4294901760
    %3453 = vmatmul.mubr.f32.gmra.mrb[0].mxu0 %v3452
    %v3454 = vpop.f32.mrb[0].mxu0
    %v3455 = vadd.f32 0.0, %v3454
    %v3456 = vpop.f32.mrb[0].mxu0
    %v3457 = vand.u32 %v3367, 4294901760
    %v3458 = vsub.f32 %v3367, %v3457
    %v3459 = vand.u32 %v3458, 4294901760
    %v3460 = vsub.f32 %v3458, %v3459
    %v3461 = vand.u32 %v3460, 4294901760
    %3462 = vmatprep.mubr.f32.mxu0 %v3461
    %v3463 = vand.u32 %v3366, 4294901760
    %v3464 = vsub.f32 %v3366, %v3463
    %v3465 = vand.u32 %v3464, 4294901760
    %v3466 = vsub.f32 %v3464, %v3465
    %v3467 = vand.u32 %v3466, 4294901760
    %3468 = vmatmul.mubr.f32.gmra.mrb[0].mxu0 %v3467
    %v3469 = vpop.f32.mrb[0].mxu0
    %v3470 = vadd.f32 0.0, %v3469
    %v3471 = vpop.f32.mrb[0].mxu0
    %v3472 = vand.u32 %v3369, 4294901760
    %v3473 = vsub.f32 %v3369, %v3472
    %v3474 = vand.u32 %v3473, 4294901760
    %v3475 = vsub.f32 %v3473, %v3474
    %v3476 = vand.u32 %v3475, 4294901760
    %3477 = vmatprep.mubr.f32.mxu0 %v3476
    %v3478 = vand.u32 %v3368, 4294901760
    %v3479 = vsub.f32 %v3368, %v3478
    %v3480 = vand.u32 %v3479, 4294901760
    %v3481 = vsub.f32 %v3479, %v3480
    %v3482 = vand.u32 %v3481, 4294901760
    %3483 = vmatmul.mubr.f32.gmra.mrb[0].mxu0 %v3482
    %v3484 = vpop.f32.mrb[0].mxu0
    %v3485 = vadd.f32 0.0, %v3484
    %v3486 = vpop.f32.mrb[0].mxu0
    %v3487 = vand.u32 %v3371, 4294901760
    %v3488 = vsub.f32 %v3371, %v3487
    %v3489 = vand.u32 %v3488, 4294901760
    %v3490 = vsub.f32 %v3488, %v3489
    %v3491 = vand.u32 %v3490, 4294901760
    %3492 = vmatprep.mubr.f32.mxu0 %v3491
    %v3493 = vand.u32 %v3370, 4294901760
    %v3494 = vsub.f32 %v3370, %v3493
    %v3495 = vand.u32 %v3494, 4294901760
    %v3496 = vsub.f32 %v3494, %v3495
    %v3497 = vand.u32 %v3496, 4294901760
    %3498 = vmatmul.mubr.f32.gmra.mrb[0].mxu0 %v3497
    %v3499 = vpop.f32.mrb[0].mxu0
    %v3500 = vadd.f32 0.0, %v3499
    %v3501 = vpop.f32.mrb[0].mxu0
    %v3502 = vand.u32 %v3373, 4294901760
    %v3503 = vsub.f32 %v3373, %v3502
    %v3504 = vand.u32 %v3503, 4294901760
    %v3505 = vsub.f32 %v3503, %v3504
    %v3506 = vand.u32 %v3505, 4294901760
    %3507 = vmatprep.mubr.f32.mxu0 %v3506
    %v3508 = vand.u32 %v3372, 4294901760
    %v3509 = vsub.f32 %v3372, %v3508
    %v3510 = vand.u32 %v3509, 4294901760
    %v3511 = vsub.f32 %v3509, %v3510
    %v3512 = vand.u32 %v3511, 4294901760
    %3513 = vmatmul.mubr.f32.gmra.mrb[0].mxu0 %v3512
    %v3514 = vpop.f32.mrb[0].mxu0
    %v3515 = vadd.f32 0.0, %v3514
    %v3516 = vpop.f32.mrb[0].mxu0
    %v3517 = vand.u32 %v3375, 4294901760
    %v3518 = vsub.f32 %v3375, %v3517
    %v3519 = vand.u32 %v3518, 4294901760
    %v3520 = vsub.f32 %v3518, %v3519
    %v3521 = vand.u32 %v3520, 4294901760
    %3522 = vmatprep.mubr.f32.mxu0 %v3521
    %v3523 = vand.u32 %v3374, 4294901760
    %v3524 = vsub.f32 %v3374, %v3523
    %v3525 = vand.u32 %v3524, 4294901760
    %v3526 = vsub.f32 %v3524, %v3525
    %v3527 = vand.u32 %v3526, 4294901760
    %3528 = vmatmul.mubr.f32.gmra.mrb[0].mxu0 %v3527
    %v3529 = vpop.f32.mrb[0].mxu0
    %v3530 = vadd.f32 0.0, %v3529
    %v3531 = vpop.f32.mrb[0].mxu0
    %v3532 = vand.u32 %v3377, 4294901760
    %v3533 = vsub.f32 %v3377, %v3532
    %v3534 = vand.u32 %v3533, 4294901760
    %v3535 = vsub.f32 %v3533, %v3534
    %v3536 = vand.u32 %v3535, 4294901760
    %3537 = vmatprep.mubr.f32.mxu0 %v3536
    %v3538 = vand.u32 %v3376, 4294901760
    %v3539 = vsub.f32 %v3376, %v3538
    %v3540 = vand.u32 %v3539, 4294901760
    %v3541 = vsub.f32 %v3539, %v3540
    %v3542 = vand.u32 %v3541, 4294901760
    %3543 = vmatmul.mubr.f32.gmra.mrb[0].mxu0 %v3542
    %v3544 = vpop.f32.mrb[0].mxu0
    %v3545 = vadd.f32 0.0, %v3544
    %v3546 = vpop.f32.mrb[0].mxu0
    %3547 = vdwg.mxu0
    %3548 = vmatprep.subr.mxu0 0.0
    %3549 = vmatpush1.msra.mxu0 0.0
    %3550 = vmatprep.subr.mxu0 0.0
    %3551 = vmatpush1.msra.mxu0 0.0
    %3552 = vmatprep.subr.mxu0 0.0
    %3553 = vmatpush1.msra.mxu0 0.0
    %3554 = vmatprep.subr.mxu0 0.0
    %3555 = vmatpush1.msra.mxu0 0.0
    %3556 = vmatprep.subr.mxu0 0.0
    %3557 = vmatpush1.msra.mxu0 0.0
    %3558 = vmatprep.subr.mxu0 0.0
    %3559 = vmatpush1.msra.mxu0 0.0
    %3560 = vmatprep.subr.mxu0 0.0
    %3561 = vmatpush1.msra.mxu0 0.0
    %3562 = vmatprep.subr.mxu0 0.0
    %3563 = vmatpush1.msra.mxu0 0.0
    %3564 = vmatprep.subr.mxu0 0.0
    %3565 = vmatpush1.msra.mxu0 0.0
    %3566 = vmatprep.subr.mxu0 0.0
    %3567 = vmatpush1.msra.mxu0 0.0
    %3568 = vmatprep.subr.mxu0 0.0
    %3569 = vmatpush1.msra.mxu0 0.0
    %3570 = vmatprep.subr.mxu0 0.0
    %3571 = vmatpush1.msra.mxu0 0.0
    %3572 = vmatprep.subr.mxu0 0.0
    %3573 = vmatpush1.msra.mxu0 0.0
    %3574 = vmatprep.subr.mxu0 0.0
    %3575 = vmatpush1.msra.mxu0 0.0
    %3576 = vmatprep.subr.mxu0 0.0
    %3577 = vmatpush1.msra.mxu0 0.0
    %3578 = vmatprep.subr.mxu0 0.0
    %3579 = vmatpush1.msra.mxu0 0.0
    %3580 = vmatprep.subr.mxu0 0.0
    %3581 = vmatpush1.msra.mxu0 0.0
    %3582 = vmatprep.subr.mxu0 0.0
    %3583 = vmatpush1.msra.mxu0 0.0
    %3584 = vmatprep.subr.mxu0 0.0
    %3585 = vmatpush1.msra.mxu0 0.0
    %3586 = vmatprep.subr.mxu0 0.0
    %3587 = vmatpush1.msra.mxu0 0.0
    %3588 = vmatprep.subr.mxu0 0.0
    %3589 = vmatpush1.msra.mxu0 0.0
    %3590 = vmatprep.subr.mxu0 0.0
    %3591 = vmatpush1.msra.mxu0 0.0
    %3592 = vmatprep.subr.mxu0 0.0
    %3593 = vmatpush1.msra.mxu0 0.0
    %3594 = vmatprep.subr.mxu0 0.0
    %3595 = vmatpush1.msra.mxu0 0.0
    %3596 = vmatprep.subr.mxu0 0.0
    %3597 = vmatpush1.msra.mxu0 0.0
    %3598 = vmatprep.subr.mxu0 0.0
    %3599 = vmatpush1.msra.mxu0 0.0
    %3600 = vmatprep.subr.mxu0 0.0
    %3601 = vmatpush1.msra.mxu0 0.0
    %3602 = vmatprep.subr.mxu0 0.0
    %3603 = vmatpush1.msra.mxu0 0.0
    %3604 = vmatprep.subr.mxu0 0.0
    %3605 = vmatpush1.msra.mxu0 0.0
    %3606 = vmatprep.subr.mxu0 0.0
    %3607 = vmatpush1.msra.mxu0 0.0
    %3608 = vmatprep.subr.mxu0 0.0
    %3609 = vmatpush1.msra.mxu0 0.0
    %3610 = vmatprep.subr.mxu0 0.0
    %3611 = vmatpush1.msra.mxu0 0.0
    %v3612 = vand.u32 %v3365, 4294901760
    %3613 = vmatprep.mubr.f32.mxu0 %v3612
    %v3614 = vand.u32 %v3364, 4294901760
    %3615 = vmatmul.mubr.f32.gmra.mrb[0].mxu0 %v3614
    %v3616 = vpop.f32.mrb[0].mxu0
    %v3617 = vadd.f32 %v3455, %v3616
    %v3618 = vpop.f32.mrb[0].mxu0
    %v3619 = vand.u32 %v3367, 4294901760
    %3620 = vmatprep.mubr.f32.mxu0 %v3619
    %v3621 = vand.u32 %v3366, 4294901760
    %3622 = vmatmul.mubr.f32.gmra.mrb[0].mxu0 %v3621
    %v3623 = vpop.f32.mrb[0].mxu0
    %v3624 = vadd.f32 %v3470, %v3623
    %v3625 = vpop.f32.mrb[0].mxu0
    %v3626 = vand.u32 %v3369, 4294901760
    %3627 = vmatprep.mubr.f32.mxu0 %v3626
    %v3628 = vand.u32 %v3368, 4294901760
    %3629 = vmatmul.mubr.f32.gmra.mrb[0].mxu0 %v3628
    %v3630 = vpop.f32.mrb[0].mxu0
    %v3631 = vadd.f32 %v3485, %v3630
    %v3632 = vpop.f32.mrb[0].mxu0
    %v3633 = vand.u32 %v3371, 4294901760
    %3634 = vmatprep.mubr.f32.mxu0 %v3633
    %v3635 = vand.u32 %v3370, 4294901760
    %3636 = vmatmul.mubr.f32.gmra.mrb[0].mxu0 %v3635
    %v3637 = vpop.f32.mrb[0].mxu0
    %v3638 = vadd.f32 %v3500, %v3637
    %v3639 = vpop.f32.mrb[0].mxu0
    %v3640 = vand.u32 %v3373, 4294901760
    %3641 = vmatprep.mubr.f32.mxu0 %v3640
    %v3642 = vand.u32 %v3372, 4294901760
    %3643 = vmatmul.mubr.f32.gmra.mrb[0].mxu0 %v3642
    %v3644 = vpop.f32.mrb[0].mxu0
    %v3645 = vadd.f32 %v3515, %v3644
    %v3646 = vpop.f32.mrb[0].mxu0
    %v3647 = vand.u32 %v3375, 4294901760
    %3648 = vmatprep.mubr.f32.mxu0 %v3647
    %v3649 = vand.u32 %v3374, 4294901760
    %3650 = vmatmul.mubr.f32.gmra.mrb[0].mxu0 %v3649
    %v3651 = vpop.f32.mrb[0].mxu0
    %v3652 = vadd.f32 %v3530, %v3651
    %v3653 = vpop.f32.mrb[0].mxu0
    %v3654 = vand.u32 %v3377, 4294901760
    %3655 = vmatprep.mubr.f32.mxu0 %v3654
    %v3656 = vand.u32 %v3376, 4294901760
    %3657 = vmatmul.mubr.f32.gmra.mrb[0].mxu0 %v3656
    %v3658 = vpop.f32.mrb[0].mxu0
    %v3659 = vadd.f32 %v3545, %v3658
    %v3660 = vpop.f32.mrb[0].mxu0
    %3661 = vdwg.mxu0
    %3662 = vmatprep.subr.mxu0 0.0
    %3663 = vmatpush1.msra.mxu0 0.0
    %3664 = vmatprep.subr.mxu0 0.0
    %3665 = vmatpush1.msra.mxu0 0.0
    %3666 = vmatprep.subr.mxu0 0.0
    %3667 = vmatpush1.msra.mxu0 0.0
    %3668 = vmatprep.subr.mxu0 0.0
    %3669 = vmatpush1.msra.mxu0 0.0
    %3670 = vmatprep.subr.mxu0 0.0
    %3671 = vmatpush1.msra.mxu0 0.0
    %3672 = vmatprep.subr.mxu0 0.0
    %3673 = vmatpush1.msra.mxu0 0.0
    %3674 = vmatprep.subr.mxu0 0.0
    %3675 = vmatpush1.msra.mxu0 0.0
    %3676 = vmatprep.subr.mxu0 0.0
    %3677 = vmatpush1.msra.mxu0 0.0
    %3678 = vmatprep.subr.mxu0 0.0
    %3679 = vmatpush1.msra.mxu0 0.0
    %3680 = vmatprep.subr.mxu0 0.0
    %3681 = vmatpush1.msra.mxu0 0.0
    %3682 = vmatprep.subr.mxu0 0.0
    %3683 = vmatpush1.msra.mxu0 0.0
    %3684 = vmatprep.subr.mxu0 0.0
    %3685 = vmatpush1.msra.mxu0 0.0
    %3686 = vmatprep.subr.mxu0 0.0
    %3687 = vmatpush1.msra.mxu0 0.0
    %3688 = vmatprep.subr.mxu0 0.0
    %3689 = vmatpush1.msra.mxu0 0.0
    %3690 = vmatprep.subr.mxu0 0.0
    %3691 = vmatpush1.msra.mxu0 0.0
    %3692 = vmatprep.subr.mxu0 0.0
    %3693 = vmatpush1.msra.mxu0 0.0
    %3694 = vmatprep.subr.mxu0 0.0
    %3695 = vmatpush1.msra.mxu0 0.0
    %3696 = vmatprep.subr.mxu0 0.0
    %3697 = vmatpush1.msra.mxu0 0.0
    %3698 = vmatprep.subr.mxu0 0.0
    %3699 = vmatpush1.msra.mxu0 0.0
    %3700 = vmatprep.subr.mxu0 0.0
    %3701 = vmatpush1.msra.mxu0 0.0
    %3702 = vmatprep.subr.mxu0 0.0
    %3703 = vmatpush1.msra.mxu0 0.0
    %3704 = vmatprep.subr.mxu0 0.0
    %3705 = vmatpush1.msra.mxu0 0.0
    %3706 = vmatprep.subr.mxu0 0.0
    %3707 = vmatpush1.msra.mxu0 0.0
    %3708 = vmatprep.subr.mxu0 0.0
    %3709 = vmatpush1.msra.mxu0 0.0
    %3710 = vmatprep.subr.mxu0 0.0
    %3711 = vmatpush1.msra.mxu0 0.0
    %3712 = vmatprep.subr.mxu0 0.0
    %3713 = vmatpush1.msra.mxu0 0.0
    %3714 = vmatprep.subr.mxu0 0.0
    %3715 = vmatpush1.msra.mxu0 0.0
    %3716 = vmatprep.subr.mxu0 0.0
    %3717 = vmatpush1.msra.mxu0 0.0
    %3718 = vmatprep.subr.mxu0 0.0
    %3719 = vmatpush1.msra.mxu0 0.0
    %3720 = vmatprep.subr.mxu0 0.0
    %3721 = vmatpush1.msra.mxu0 0.0
    %3722 = vmatprep.subr.mxu0 0.0
    %3723 = vmatpush1.msra.mxu0 0.0
    %3724 = vmatprep.subr.mxu0 0.0
    %3725 = vmatpush1.msra.mxu0 0.0
    %v3726 = vand.u32 %v3365, 4294901760
    %v3727 = vsub.f32 %v3365, %v3726
    %3728 = vmatprep.mubr.f32.mxu0 %v3727
    %v3729 = vand.u32 %v3364, 4294901760
    %v3730 = vsub.f32 %v3364, %v3729
    %3731 = vmatmul.mubr.f32.gmra.mrb[0].mxu0 %v3730
    %v3732 = vpop.f32.mrb[0].mxu0
    %v3733 = vadd.f32 %v3617, %v3732
    %v3734 = vpop.f32.mrb[0].mxu0
    %v3735 = vand.u32 %v3367, 4294901760
    %v3736 = vsub.f32 %v3367, %v3735
    %3737 = vmatprep.mubr.f32.mxu0 %v3736
    %v3738 = vand.u32 %v3366, 4294901760
    %v3739 = vsub.f32 %v3366, %v3738
    %3740 = vmatmul.mubr.f32.gmra.mrb[0].mxu0 %v3739
    %v3741 = vpop.f32.mrb[0].mxu0
    %v3742 = vadd.f32 %v3624, %v3741
    %v3743 = vpop.f32.mrb[0].mxu0
    %v3744 = vand.u32 %v3369, 4294901760
    %v3745 = vsub.f32 %v3369, %v3744
    %3746 = vmatprep.mubr.f32.mxu0 %v3745
    %v3747 = vand.u32 %v3368, 4294901760
    %v3748 = vsub.f32 %v3368, %v3747
    %3749 = vmatmul.mubr.f32.gmra.mrb[0].mxu0 %v3748
    %v3750 = vpop.f32.mrb[0].mxu0
    %v3751 = vadd.f32 %v3631, %v3750
    %v3752 = vpop.f32.mrb[0].mxu0
    %v3753 = vand.u32 %v3371, 4294901760
    %v3754 = vsub.f32 %v3371, %v3753
    %3755 = vmatprep.mubr.f32.mxu0 %v3754
    %v3756 = vand.u32 %v3370, 4294901760
    %v3757 = vsub.f32 %v3370, %v3756
    %3758 = vmatmul.mubr.f32.gmra.mrb[0].mxu0 %v3757
    %v3759 = vpop.f32.mrb[0].mxu0
    %v3760 = vadd.f32 %v3638, %v3759
    %v3761 = vpop.f32.mrb[0].mxu0
    %v3762 = vand.u32 %v3373, 4294901760
    %v3763 = vsub.f32 %v3373, %v3762
    %3764 = vmatprep.mubr.f32.mxu0 %v3763
    %v3765 = vand.u32 %v3372, 4294901760
    %v3766 = vsub.f32 %v3372, %v3765
    %3767 = vmatmul.mubr.f32.gmra.mrb[0].mxu0 %v3766
    %v3768 = vpop.f32.mrb[0].mxu0
    %v3769 = vadd.f32 %v3645, %v3768
    %v3770 = vpop.f32.mrb[0].mxu0
    %v3771 = vand.u32 %v3375, 4294901760
    %v3772 = vsub.f32 %v3375, %v3771
    %3773 = vmatprep.mubr.f32.mxu0 %v3772
    %v3774 = vand.u32 %v3374, 4294901760
    %v3775 = vsub.f32 %v3374, %v3774
    %3776 = vmatmul.mubr.f32.gmra.mrb[0].mxu0 %v3775
    %v3777 = vpop.f32.mrb[0].mxu0
    %v3778 = vadd.f32 %v3652, %v3777
    %v3779 = vpop.f32.mrb[0].mxu0
    %v3780 = vand.u32 %v3377, 4294901760
    %v3781 = vsub.f32 %v3377, %v3780
    %3782 = vmatprep.mubr.f32.mxu0 %v3781
    %v3783 = vand.u32 %v3376, 4294901760
    %v3784 = vsub.f32 %v3376, %v3783
    %3785 = vmatmul.mubr.f32.gmra.mrb[0].mxu0 %v3784
    %v3786 = vpop.f32.mrb[0].mxu0
    %v3787 = vadd.f32 %v3659, %v3786
    %v3788 = vpop.f32.mrb[0].mxu0
    %3789 = vdwg.mxu0
    %3790 = vmatprep.subr.mxu0 0.0
    %3791 = vmatpush1.msra.mxu0 1.0
    %3792 = vmatprep.subr.mxu0 0.0
    %3793 = vmatpush1.msra.mxu0 1.0
    %3794 = vmatprep.subr.mxu0 0.0
    %3795 = vmatpush1.msra.mxu0 1.0
    %3796 = vmatprep.subr.mxu0 0.0
    %3797 = vmatpush1.msra.mxu0 1.0
    %3798 = vmatprep.subr.mxu0 0.0
    %3799 = vmatpush1.msra.mxu0 1.0
    %3800 = vmatprep.subr.mxu0 0.0
    %3801 = vmatpush1.msra.mxu0 1.0
    %3802 = vmatprep.subr.mxu0 0.0
    %3803 = vmatpush1.msra.mxu0 1.0
    %3804 = vmatprep.subr.mxu0 0.0
    %3805 = vmatpush1.msra.mxu0 1.0
    %3806 = vmatprep.subr.mxu0 0.0
    %3807 = vmatpush1.msra.mxu0 1.0
    %3808 = vmatprep.subr.mxu0 0.0
    %3809 = vmatpush1.msra.mxu0 1.0
    %3810 = vmatprep.subr.mxu0 0.0
    %3811 = vmatpush1.msra.mxu0 1.0
    %3812 = vmatprep.subr.mxu0 0.0
    %3813 = vmatpush1.msra.mxu0 1.0
    %3814 = vmatprep.subr.mxu0 0.0
    %3815 = vmatpush1.msra.mxu0 1.0
    %3816 = vmatprep.subr.mxu0 0.0
    %3817 = vmatpush1.msra.mxu0 1.0
    %3818 = vmatprep.subr.mxu0 0.0
    %3819 = vmatpush1.msra.mxu0 1.0
    %3820 = vmatprep.subr.mxu0 0.0
    %3821 = vmatpush1.msra.mxu0 1.0
    %3822 = vmatprep.subr.mxu0 0.0
    %3823 = vmatpush1.msra.mxu0 1.0
    %3824 = vmatprep.subr.mxu0 0.0
    %3825 = vmatpush1.msra.mxu0 1.0
    %3826 = vmatprep.subr.mxu0 0.0
    %3827 = vmatpush1.msra.mxu0 1.0
    %3828 = vmatprep.subr.mxu0 0.0
    %3829 = vmatpush1.msra.mxu0 1.0
    %3830 = vmatprep.subr.mxu0 0.0
    %3831 = vmatpush1.msra.mxu0 1.0
    %3832 = vmatprep.subr.mxu0 0.0
    %3833 = vmatpush1.msra.mxu0 1.0
    %3834 = vmatprep.subr.mxu0 0.0
    %3835 = vmatpush1.msra.mxu0 1.0
    %3836 = vmatprep.subr.mxu0 0.0
    %3837 = vmatpush1.msra.mxu0 1.0
    %3838 = vmatprep.subr.mxu0 0.0
    %3839 = vmatpush1.msra.mxu0 1.0
    %3840 = vmatprep.subr.mxu0 0.0
    %3841 = vmatpush1.msra.mxu0 1.0
    %3842 = vmatprep.subr.mxu0 0.0
    %3843 = vmatpush1.msra.mxu0 1.0
    %3844 = vmatprep.subr.mxu0 0.0
    %3845 = vmatpush1.msra.mxu0 1.0
    %3846 = vmatprep.subr.mxu0 0.0
    %3847 = vmatpush1.msra.mxu0 1.0
    %3848 = vmatprep.subr.mxu0 0.0
    %3849 = vmatpush1.msra.mxu0 1.0
    %3850 = vmatprep.subr.mxu0 0.0
    %3851 = vmatpush1.msra.mxu0 1.0
    %3852 = vmatprep.subr.mxu0 0.0
    %3853 = vmatpush1.msra.mxu0 1.0
    %v3854 = vand.u32 %v3365, 4294901760
    %v3855 = vsub.f32 %v3365, %v3854
    %v3856 = vand.u32 %v3855, 4294901760
    %3857 = vmatprep.mubr.f32.mxu0 %v3856
    %v3858 = vand.u32 %v3364, 4294901760
    %v3859 = vsub.f32 %v3364, %v3858
    %v3860 = vand.u32 %v3859, 4294901760
    %3861 = vmatmul.mubr.f32.gmra.mrb[0].mxu0 %v3860
    %v3862 = vpop.f32.mrb[0].mxu0
    %v3863 = vadd.f32 %v3733, %v3862
    %v3864 = vpop.f32.mrb[0].mxu0
    %v3865 = vand.u32 %v3367, 4294901760
    %v3866 = vsub.f32 %v3367, %v3865
    %v3867 = vand.u32 %v3866, 4294901760
    %3868 = vmatprep.mubr.f32.mxu0 %v3867
    %v3869 = vand.u32 %v3366, 4294901760
    %v3870 = vsub.f32 %v3366, %v3869
    %v3871 = vand.u32 %v3870, 4294901760
    %3872 = vmatmul.mubr.f32.gmra.mrb[0].mxu0 %v3871
    %v3873 = vpop.f32.mrb[0].mxu0
    %v3874 = vadd.f32 %v3742, %v3873
    %v3875 = vpop.f32.mrb[0].mxu0
    %v3876 = vand.u32 %v3369, 4294901760
    %v3877 = vsub.f32 %v3369, %v3876
    %v3878 = vand.u32 %v3877, 4294901760
    %3879 = vmatprep.mubr.f32.mxu0 %v3878
    %v3880 = vand.u32 %v3368, 4294901760
    %v3881 = vsub.f32 %v3368, %v3880
    %v3882 = vand.u32 %v3881, 4294901760
    %3883 = vmatmul.mubr.f32.gmra.mrb[0].mxu0 %v3882
    %v3884 = vpop.f32.mrb[0].mxu0
    %v3885 = vadd.f32 %v3751, %v3884
    %v3886 = vpop.f32.mrb[0].mxu0
    %v3887 = vand.u32 %v3371, 4294901760
    %v3888 = vsub.f32 %v3371, %v3887
    %v3889 = vand.u32 %v3888, 4294901760
    %3890 = vmatprep.mubr.f32.mxu0 %v3889
    %v3891 = vand.u32 %v3370, 4294901760
    %v3892 = vsub.f32 %v3370, %v3891
    %v3893 = vand.u32 %v3892, 4294901760
    %3894 = vmatmul.mubr.f32.gmra.mrb[0].mxu0 %v3893
    %v3895 = vpop.f32.mrb[0].mxu0
    %v3896 = vadd.f32 %v3760, %v3895
    %v3897 = vpop.f32.mrb[0].mxu0
    %v3898 = vand.u32 %v3373, 4294901760
    %v3899 = vsub.f32 %v3373, %v3898
    %v3900 = vand.u32 %v3899, 4294901760
    %3901 = vmatprep.mubr.f32.mxu0 %v3900
    %v3902 = vand.u32 %v3372, 4294901760
    %v3903 = vsub.f32 %v3372, %v3902
    %v3904 = vand.u32 %v3903, 4294901760
    %3905 = vmatmul.mubr.f32.gmra.mrb[0].mxu0 %v3904
    %v3906 = vpop.f32.mrb[0].mxu0
    %v3907 = vadd.f32 %v3769, %v3906
    %v3908 = vpop.f32.mrb[0].mxu0
    %v3909 = vand.u32 %v3375, 4294901760
    %v3910 = vsub.f32 %v3375, %v3909
    %v3911 = vand.u32 %v3910, 4294901760
    %3912 = vmatprep.mubr.f32.mxu0 %v3911
    %v3913 = vand.u32 %v3374, 4294901760
    %v3914 = vsub.f32 %v3374, %v3913
    %v3915 = vand.u32 %v3914, 4294901760
    %3916 = vmatmul.mubr.f32.gmra.mrb[0].mxu0 %v3915
    %v3917 = vpop.f32.mrb[0].mxu0
    %v3918 = vadd.f32 %v3778, %v3917
    %v3919 = vpop.f32.mrb[0].mxu0
    %v3920 = vand.u32 %v3377, 4294901760
    %v3921 = vsub.f32 %v3377, %v3920
    %v3922 = vand.u32 %v3921, 4294901760
    %3923 = vmatprep.mubr.f32.mxu0 %v3922
    %v3924 = vand.u32 %v3376, 4294901760
    %v3925 = vsub.f32 %v3376, %v3924
    %v3926 = vand.u32 %v3925, 4294901760
    %3927 = vmatmul.mubr.f32.gmra.mrb[0].mxu0 %v3926
    %v3928 = vpop.f32.mrb[0].mxu0
    %v3929 = vadd.f32 %v3787, %v3928
    %v3930 = vpop.f32.mrb[0].mxu0
    %3931 = vdwg.mxu0
    %3932 = vmatprep.subr.mxu0 0.0
    %3933 = vmatpush1.msra.mxu0 0.0
    %3934 = vmatprep.subr.mxu0 0.0
    %3935 = vmatpush1.msra.mxu0 0.0
    %3936 = vmatprep.subr.mxu0 0.0
    %3937 = vmatpush1.msra.mxu0 0.0
    %3938 = vmatprep.subr.mxu0 0.0
    %3939 = vmatpush1.msra.mxu0 0.0
    %3940 = vmatprep.subr.mxu0 0.0
    %3941 = vmatpush1.msra.mxu0 0.0
    %3942 = vmatprep.subr.mxu0 0.0
    %3943 = vmatpush1.msra.mxu0 0.0
    %3944 = vmatprep.subr.mxu0 0.0
    %3945 = vmatpush1.msra.mxu0 0.0
    %3946 = vmatprep.subr.mxu0 0.0
    %3947 = vmatpush1.msra.mxu0 0.0
    %3948 = vmatprep.subr.mxu0 0.0
    %3949 = vmatpush1.msra.mxu0 0.0
    %3950 = vmatprep.subr.mxu0 0.0
    %3951 = vmatpush1.msra.mxu0 0.0
    %3952 = vmatprep.subr.mxu0 0.0
    %3953 = vmatpush1.msra.mxu0 0.0
    %3954 = vmatprep.subr.mxu0 0.0
    %3955 = vmatpush1.msra.mxu0 0.0
    %3956 = vmatprep.subr.mxu0 0.0
    %3957 = vmatpush1.msra.mxu0 0.0
    %3958 = vmatprep.subr.mxu0 0.0
    %3959 = vmatpush1.msra.mxu0 0.0
    %3960 = vmatprep.subr.mxu0 0.0
    %3961 = vmatpush1.msra.mxu0 0.0
    %3962 = vmatprep.subr.mxu0 0.0
    %3963 = vmatpush1.msra.mxu0 0.0
    %3964 = vmatprep.subr.mxu0 0.0
    %3965 = vmatpush1.msra.mxu0 0.0
    %3966 = vmatprep.subr.mxu0 0.0
    %3967 = vmatpush1.msra.mxu0 0.0
    %3968 = vmatprep.subr.mxu0 0.0
    %3969 = vmatpush1.msra.mxu0 0.0
    %3970 = vmatprep.subr.mxu0 0.0
    %3971 = vmatpush1.msra.mxu0 0.0
    %3972 = vmatprep.subr.mxu0 0.0
    %3973 = vmatpush1.msra.mxu0 0.0
    %3974 = vmatprep.subr.mxu0 0.0
    %3975 = vmatpush1.msra.mxu0 0.0
    %3976 = vmatprep.subr.mxu0 0.0
    %3977 = vmatpush1.msra.mxu0 0.0
    %3978 = vmatprep.subr.mxu0 0.0
    %3979 = vmatpush1.msra.mxu0 0.0
    %3980 = vmatprep.subr.mxu0 0.0
    %3981 = vmatpush1.msra.mxu0 0.0
    %3982 = vmatprep.subr.mxu0 0.0
    %3983 = vmatpush1.msra.mxu0 0.0
    %3984 = vmatprep.subr.mxu0 0.0
    %3985 = vmatpush1.msra.mxu0 0.0
    %3986 = vmatprep.subr.mxu0 0.0
    %3987 = vmatpush1.msra.mxu0 0.0
    %3988 = vmatprep.subr.mxu0 0.0
    %3989 = vmatpush1.msra.mxu0 0.0
    %3990 = vmatprep.subr.mxu0 0.0
    %3991 = vmatpush1.msra.mxu0 0.0
    %3992 = vmatprep.subr.mxu0 0.0
    %3993 = vmatpush1.msra.mxu0 0.0
    %3994 = vmatprep.subr.mxu0 0.0
    %3995 = vmatpush1.msra.mxu0 0.0
    %v3996 = vand.u32 %v3365, 4294901760
    %3997 = vmatprep.mubr.f32.mxu0 %v3996
    %v3998 = vand.u32 %v3364, 4294901760
    %3999 = vmatmul.mubr.f32.gmra.mrb[0].mxu0 %v3998
    %v4000 = vpop.f32.mrb[0].mxu0
    %v4001 = vadd.f32 %v3863, %v4000
    %v4002 = vpop.f32.mrb[0].mxu0
    %v4003 = vand.u32 %v3367, 4294901760
    %4004 = vmatprep.mubr.f32.mxu0 %v4003
    %v4005 = vand.u32 %v3366, 4294901760
    %4006 = vmatmul.mubr.f32.gmra.mrb[0].mxu0 %v4005
    %v4007 = vpop.f32.mrb[0].mxu0
    %v4008 = vadd.f32 %v3874, %v4007
    %v4009 = vpop.f32.mrb[0].mxu0
    %v4010 = vand.u32 %v3369, 4294901760
    %4011 = vmatprep.mubr.f32.mxu0 %v4010
    %v4012 = vand.u32 %v3368, 4294901760
    %4013 = vmatmul.mubr.f32.gmra.mrb[0].mxu0 %v4012
    %v4014 = vpop.f32.mrb[0].mxu0
    %v4015 = vadd.f32 %v3885, %v4014
    %v4016 = vpop.f32.mrb[0].mxu0
    %v4017 = vand.u32 %v3371, 4294901760
    %4018 = vmatprep.mubr.f32.mxu0 %v4017
    %v4019 = vand.u32 %v3370, 4294901760
    %4020 = vmatmul.mubr.f32.gmra.mrb[0].mxu0 %v4019
    %v4021 = vpop.f32.mrb[0].mxu0
    %v4022 = vadd.f32 %v3896, %v4021
    %v4023 = vpop.f32.mrb[0].mxu0
    %v4024 = vand.u32 %v3373, 4294901760
    %4025 = vmatprep.mubr.f32.mxu0 %v4024
    %v4026 = vand.u32 %v3372, 4294901760
    %4027 = vmatmul.mubr.f32.gmra.mrb[0].mxu0 %v4026
    %v4028 = vpop.f32.mrb[0].mxu0
    %v4029 = vadd.f32 %v3907, %v4028
    %v4030 = vpop.f32.mrb[0].mxu0
    %v4031 = vand.u32 %v3375, 4294901760
    %4032 = vmatprep.mubr.f32.mxu0 %v4031
    %v4033 = vand.u32 %v3374, 4294901760
    %4034 = vmatmul.mubr.f32.gmra.mrb[0].mxu0 %v4033
    %v4035 = vpop.f32.mrb[0].mxu0
    %v4036 = vadd.f32 %v3918, %v4035
    %v4037 = vpop.f32.mrb[0].mxu0
    %v4038 = vand.u32 %v3377, 4294901760
    %4039 = vmatprep.mubr.f32.mxu0 %v4038
    %v4040 = vand.u32 %v3376, 4294901760
    %4041 = vmatmul.mubr.f32.gmra.mrb[0].mxu0 %v4040
    %v4042 = vpop.f32.mrb[0].mxu0
    %v4043 = vadd.f32 %v3929, %v4042
    %v4044 = vpop.f32.mrb[0].mxu0
    %4045 = vdwg.mxu0
    %4046 = vmatprep.subr.mxu0 0.0
    %4047 = vmatpush1.msra.mxu0 1.0
    %4048 = vmatprep.subr.mxu0 0.0
    %4049 = vmatpush1.msra.mxu0 1.0
    %4050 = vmatprep.subr.mxu0 0.0
    %4051 = vmatpush1.msra.mxu0 1.0
    %4052 = vmatprep.subr.mxu0 0.0
    %4053 = vmatpush1.msra.mxu0 1.0
    %4054 = vmatprep.subr.mxu0 0.0
    %4055 = vmatpush1.msra.mxu0 1.0
    %4056 = vmatprep.subr.mxu0 0.0
    %4057 = vmatpush1.msra.mxu0 1.0
    %4058 = vmatprep.subr.mxu0 0.0
    %4059 = vmatpush1.msra.mxu0 1.0
    %4060 = vmatprep.subr.mxu0 0.0
    %4061 = vmatpush1.msra.mxu0 1.0
    %4062 = vmatprep.subr.mxu0 0.0
    %4063 = vmatpush1.msra.mxu0 1.0
    %4064 = vmatprep.subr.mxu0 0.0
    %4065 = vmatpush1.msra.mxu0 1.0
    %4066 = vmatprep.subr.mxu0 0.0
    %4067 = vmatpush1.msra.mxu0 1.0
    %4068 = vmatprep.subr.mxu0 0.0
    %4069 = vmatpush1.msra.mxu0 1.0
    %4070 = vmatprep.subr.mxu0 0.0
    %4071 = vmatpush1.msra.mxu0 1.0
    %4072 = vmatprep.subr.mxu0 0.0
    %4073 = vmatpush1.msra.mxu0 1.0
    %4074 = vmatprep.subr.mxu0 0.0
    %4075 = vmatpush1.msra.mxu0 1.0
    %4076 = vmatprep.subr.mxu0 0.0
    %4077 = vmatpush1.msra.mxu0 1.0
    %4078 = vmatprep.subr.mxu0 0.0
    %4079 = vmatpush1.msra.mxu0 1.0
    %4080 = vmatprep.subr.mxu0 0.0
    %4081 = vmatpush1.msra.mxu0 1.0
    %4082 = vmatprep.subr.mxu0 0.0
    %4083 = vmatpush1.msra.mxu0 1.0
    %4084 = vmatprep.subr.mxu0 0.0
    %4085 = vmatpush1.msra.mxu0 1.0
    %4086 = vmatprep.subr.mxu0 0.0
    %4087 = vmatpush1.msra.mxu0 1.0
    %4088 = vmatprep.subr.mxu0 0.0
    %4089 = vmatpush1.msra.mxu0 1.0
    %4090 = vmatprep.subr.mxu0 0.0
    %4091 = vmatpush1.msra.mxu0 1.0
    %4092 = vmatprep.subr.mxu0 0.0
    %4093 = vmatpush1.msra.mxu0 1.0
    %4094 = vmatprep.subr.mxu0 0.0
    %4095 = vmatpush1.msra.mxu0 1.0
    %4096 = vmatprep.subr.mxu0 0.0
    %4097 = vmatpush1.msra.mxu0 1.0
    %4098 = vmatprep.subr.mxu0 0.0
    %4099 = vmatpush1.msra.mxu0 1.0
    %4100 = vmatprep.subr.mxu0 0.0
    %4101 = vmatpush1.msra.mxu0 1.0
    %4102 = vmatprep.subr.mxu0 0.0
    %4103 = vmatpush1.msra.mxu0 1.0
    %4104 = vmatprep.subr.mxu0 0.0
    %4105 = vmatpush1.msra.mxu0 1.0
    %4106 = vmatprep.subr.mxu0 0.0
    %4107 = vmatpush1.msra.mxu0 1.0
    %4108 = vmatprep.subr.mxu0 0.0
    %4109 = vmatpush1.msra.mxu0 1.0
    %v4110 = vand.u32 %v3365, 4294901760
    %4111 = vmatprep.mubr.f32.mxu0 %v4110
    %v4112 = vand.u32 %v3364, 4294901760
    %4113 = vmatmul.mubr.f32.gmra.mrb[0].mxu0 %v4112
    %v4114 = vpop.f32.mrb[0].mxu0
    %v4115 = vadd.f32 %v4001, %v4114
    %v4116 = vpop.f32.mrb[0].mxu0
    %v4117 = vand.u32 %v3367, 4294901760
    %4118 = vmatprep.mubr.f32.mxu0 %v4117
    %v4119 = vand.u32 %v3366, 4294901760
    %4120 = vmatmul.mubr.f32.gmra.mrb[0].mxu0 %v4119
    %v4121 = vpop.f32.mrb[0].mxu0
    %v4122 = vadd.f32 %v4008, %v4121
    %v4123 = vpop.f32.mrb[0].mxu0
    %v4124 = vand.u32 %v3369, 4294901760
    %4125 = vmatprep.mubr.f32.mxu0 %v4124
    %v4126 = vand.u32 %v3368, 4294901760
    %4127 = vmatmul.mubr.f32.gmra.mrb[0].mxu0 %v4126
    %v4128 = vpop.f32.mrb[0].mxu0
    %v4129 = vadd.f32 %v4015, %v4128
    %v4130 = vpop.f32.mrb[0].mxu0
    %v4131 = vand.u32 %v3371, 4294901760
    %4132 = vmatprep.mubr.f32.mxu0 %v4131
    %v4133 = vand.u32 %v3370, 4294901760
    %4134 = vmatmul.mubr.f32.gmra.mrb[0].mxu0 %v4133
    %v4135 = vpop.f32.mrb[0].mxu0
    %v4136 = vadd.f32 %v4022, %v4135
    %v4137 = vpop.f32.mrb[0].mxu0
    %v4138 = vand.u32 %v3373, 4294901760
    %4139 = vmatprep.mubr.f32.mxu0 %v4138
    %v4140 = vand.u32 %v3372, 4294901760
    %4141 = vmatmul.mubr.f32.gmra.mrb[0].mxu0 %v4140
    %v4142 = vpop.f32.mrb[0].mxu0
    %v4143 = vadd.f32 %v4029, %v4142
    %v4144 = vpop.f32.mrb[0].mxu0
    %v4145 = vand.u32 %v3375, 4294901760
    %4146 = vmatprep.mubr.f32.mxu0 %v4145
    %v4147 = vand.u32 %v3374, 4294901760
    %4148 = vmatmul.mubr.f32.gmra.mrb[0].mxu0 %v4147
    %v4149 = vpop.f32.mrb[0].mxu0
    %v4150 = vadd.f32 %v4036, %v4149
    %v4151 = vpop.f32.mrb[0].mxu0
    %v4152 = vand.u32 %v3377, 4294901760
    %4153 = vmatprep.mubr.f32.mxu0 %v4152
    %v4154 = vand.u32 %v3376, 4294901760
    %4155 = vmatmul.mubr.f32.gmra.mrb[0].mxu0 %v4154
    %v4156 = vpop.f32.mrb[0].mxu0
    %v4157 = vadd.f32 %v4043, %v4156
    %v4158 = vpop.f32.mrb[0].mxu0
    %4159 = vdwg.mxu0
    %v4160 = vmul.f32 %v2554, %v2554
    %v4161 = vmul.f32 %v2555, %v2555
    %v4162 = vmul.f32 %v2556, %v2556
    %v4163 = vmul.f32 %v2557, %v2557
    %v4164 = vmul.f32 %v2558, %v2558
    %v4165 = vmul.f32 %v2559, %v2559
    %v4166 = vmul.f32 %v2560, %v2560
    %v4167 = vmul.f32 %v2561, %v2561
    %v4168 = vmul.f32 %v2562, %v2562
    %v4169 = vmul.f32 %v2563, %v2563
    %v4170 = vmul.f32 %v2564, %v2564
    %v4171 = vmul.f32 %v2565, %v2565
    %v4172 = vmul.f32 %v2566, %v2566
    %v4173 = vmul.f32 %v2567, %v2567
    %4174 = vmatprep.subr.mxu0 0.0
    %4175 = vmatpush1.msra.mxu0 1.0
    %4176 = vmatprep.subr.mxu0 0.0
    %4177 = vmatpush1.msra.mxu0 1.0
    %4178 = vmatprep.subr.mxu0 0.0
    %4179 = vmatpush1.msra.mxu0 1.0
    %4180 = vmatprep.subr.mxu0 0.0
    %4181 = vmatpush1.msra.mxu0 1.0
    %4182 = vmatprep.subr.mxu0 0.0
    %4183 = vmatpush1.msra.mxu0 1.0
    %4184 = vmatprep.subr.mxu0 0.0
    %4185 = vmatpush1.msra.mxu0 1.0
    %4186 = vmatprep.subr.mxu0 0.0
    %4187 = vmatpush1.msra.mxu0 1.0
    %4188 = vmatprep.subr.mxu0 0.0
    %4189 = vmatpush1.msra.mxu0 1.0
    %4190 = vmatprep.subr.mxu0 0.0
    %4191 = vmatpush1.msra.mxu0 1.0
    %4192 = vmatprep.subr.mxu0 0.0
    %4193 = vmatpush1.msra.mxu0 1.0
    %4194 = vmatprep.subr.mxu0 0.0
    %4195 = vmatpush1.msra.mxu0 1.0
    %4196 = vmatprep.subr.mxu0 0.0
    %4197 = vmatpush1.msra.mxu0 1.0
    %4198 = vmatprep.subr.mxu0 0.0
    %4199 = vmatpush1.msra.mxu0 1.0
    %4200 = vmatprep.subr.mxu0 0.0
    %4201 = vmatpush1.msra.mxu0 1.0
    %4202 = vmatprep.subr.mxu0 0.0
    %4203 = vmatpush1.msra.mxu0 1.0
    %4204 = vmatprep.subr.mxu0 0.0
    %4205 = vmatpush1.msra.mxu0 1.0
    %4206 = vmatprep.subr.mxu0 0.0
    %4207 = vmatpush1.msra.mxu0 1.0
    %4208 = vmatprep.subr.mxu0 0.0
    %4209 = vmatpush1.msra.mxu0 1.0
    %4210 = vmatprep.subr.mxu0 0.0
    %4211 = vmatpush1.msra.mxu0 1.0
    %4212 = vmatprep.subr.mxu0 0.0
    %4213 = vmatpush1.msra.mxu0 1.0
    %4214 = vmatprep.subr.mxu0 0.0
    %4215 = vmatpush1.msra.mxu0 1.0
    %4216 = vmatprep.subr.mxu0 0.0
    %4217 = vmatpush1.msra.mxu0 1.0
    %4218 = vmatprep.subr.mxu0 0.0
    %4219 = vmatpush1.msra.mxu0 1.0
    %4220 = vmatprep.subr.mxu0 0.0
    %4221 = vmatpush1.msra.mxu0 1.0
    %4222 = vmatprep.subr.mxu0 0.0
    %4223 = vmatpush1.msra.mxu0 1.0
    %4224 = vmatprep.subr.mxu0 0.0
    %4225 = vmatpush1.msra.mxu0 1.0
    %4226 = vmatprep.subr.mxu0 0.0
    %4227 = vmatpush1.msra.mxu0 1.0
    %4228 = vmatprep.subr.mxu0 0.0
    %4229 = vmatpush1.msra.mxu0 1.0
    %4230 = vmatprep.subr.mxu0 0.0
    %4231 = vmatpush1.msra.mxu0 1.0
    %4232 = vmatprep.subr.mxu0 0.0
    %4233 = vmatpush1.msra.mxu0 1.0
    %4234 = vmatprep.subr.mxu0 0.0
    %4235 = vmatpush1.msra.mxu0 1.0
    %4236 = vmatprep.subr.mxu0 0.0
    %4237 = vmatpush1.msra.mxu0 1.0
    %v4238 = vand.u32 %v4161, 4294901760
    %v4239 = vsub.f32 %v4161, %v4238
    %v4240 = vand.u32 %v4239, 4294901760
    %v4241 = vsub.f32 %v4239, %v4240
    %v4242 = vand.u32 %v4241, 4294901760
    %4243 = vmatprep.mubr.f32.mxu0 %v4242
    %v4244 = vand.u32 %v4160, 4294901760
    %v4245 = vsub.f32 %v4160, %v4244
    %v4246 = vand.u32 %v4245, 4294901760
    %v4247 = vsub.f32 %v4245, %v4246
    %v4248 = vand.u32 %v4247, 4294901760
    %4249 = vmatmul.mubr.f32.gmra.mrb[0].mxu0 %v4248
    %v4250 = vpop.f32.mrb[0].mxu0
    %v4251 = vadd.f32 0.0, %v4250
    %v4252 = vpop.f32.mrb[0].mxu0
    %v4253 = vand.u32 %v4163, 4294901760
    %v4254 = vsub.f32 %v4163, %v4253
    %v4255 = vand.u32 %v4254, 4294901760
    %v4256 = vsub.f32 %v4254, %v4255
    %v4257 = vand.u32 %v4256, 4294901760
    %4258 = vmatprep.mubr.f32.mxu0 %v4257
    %v4259 = vand.u32 %v4162, 4294901760
    %v4260 = vsub.f32 %v4162, %v4259
    %v4261 = vand.u32 %v4260, 4294901760
    %v4262 = vsub.f32 %v4260, %v4261
    %v4263 = vand.u32 %v4262, 4294901760
    %4264 = vmatmul.mubr.f32.gmra.mrb[0].mxu0 %v4263
    %v4265 = vpop.f32.mrb[0].mxu0
    %v4266 = vadd.f32 0.0, %v4265
    %v4267 = vpop.f32.mrb[0].mxu0
    %v4268 = vand.u32 %v4165, 4294901760
    %v4269 = vsub.f32 %v4165, %v4268
    %v4270 = vand.u32 %v4269, 4294901760
    %v4271 = vsub.f32 %v4269, %v4270
    %v4272 = vand.u32 %v4271, 4294901760
    %4273 = vmatprep.mubr.f32.mxu0 %v4272
    %v4274 = vand.u32 %v4164, 4294901760
    %v4275 = vsub.f32 %v4164, %v4274
    %v4276 = vand.u32 %v4275, 4294901760
    %v4277 = vsub.f32 %v4275, %v4276
    %v4278 = vand.u32 %v4277, 4294901760
    %4279 = vmatmul.mubr.f32.gmra.mrb[0].mxu0 %v4278
    %v4280 = vpop.f32.mrb[0].mxu0
    %v4281 = vadd.f32 0.0, %v4280
    %v4282 = vpop.f32.mrb[0].mxu0
    %v4283 = vand.u32 %v4167, 4294901760
    %v4284 = vsub.f32 %v4167, %v4283
    %v4285 = vand.u32 %v4284, 4294901760
    %v4286 = vsub.f32 %v4284, %v4285
    %v4287 = vand.u32 %v4286, 4294901760
    %4288 = vmatprep.mubr.f32.mxu0 %v4287
    %v4289 = vand.u32 %v4166, 4294901760
    %v4290 = vsub.f32 %v4166, %v4289
    %v4291 = vand.u32 %v4290, 4294901760
    %v4292 = vsub.f32 %v4290, %v4291
    %v4293 = vand.u32 %v4292, 4294901760
    %4294 = vmatmul.mubr.f32.gmra.mrb[0].mxu0 %v4293
    %v4295 = vpop.f32.mrb[0].mxu0
    %v4296 = vadd.f32 0.0, %v4295
    %v4297 = vpop.f32.mrb[0].mxu0
    %v4298 = vand.u32 %v4169, 4294901760
    %v4299 = vsub.f32 %v4169, %v4298
    %v4300 = vand.u32 %v4299, 4294901760
    %v4301 = vsub.f32 %v4299, %v4300
    %v4302 = vand.u32 %v4301, 4294901760
    %4303 = vmatprep.mubr.f32.mxu0 %v4302
    %v4304 = vand.u32 %v4168, 4294901760
    %v4305 = vsub.f32 %v4168, %v4304
    %v4306 = vand.u32 %v4305, 4294901760
    %v4307 = vsub.f32 %v4305, %v4306
    %v4308 = vand.u32 %v4307, 4294901760
    %4309 = vmatmul.mubr.f32.gmra.mrb[0].mxu0 %v4308
    %v4310 = vpop.f32.mrb[0].mxu0
    %v4311 = vadd.f32 0.0, %v4310
    %v4312 = vpop.f32.mrb[0].mxu0
    %v4313 = vand.u32 %v4171, 4294901760
    %v4314 = vsub.f32 %v4171, %v4313
    %v4315 = vand.u32 %v4314, 4294901760
    %v4316 = vsub.f32 %v4314, %v4315
    %v4317 = vand.u32 %v4316, 4294901760
    %4318 = vmatprep.mubr.f32.mxu0 %v4317
    %v4319 = vand.u32 %v4170, 4294901760
    %v4320 = vsub.f32 %v4170, %v4319
    %v4321 = vand.u32 %v4320, 4294901760
    %v4322 = vsub.f32 %v4320, %v4321
    %v4323 = vand.u32 %v4322, 4294901760
    %4324 = vmatmul.mubr.f32.gmra.mrb[0].mxu0 %v4323
    %v4325 = vpop.f32.mrb[0].mxu0
    %v4326 = vadd.f32 0.0, %v4325
    %v4327 = vpop.f32.mrb[0].mxu0
    %v4328 = vand.u32 %v4173, 4294901760
    %v4329 = vsub.f32 %v4173, %v4328
    %v4330 = vand.u32 %v4329, 4294901760
    %v4331 = vsub.f32 %v4329, %v4330
    %v4332 = vand.u32 %v4331, 4294901760
    %4333 = vmatprep.mubr.f32.mxu0 %v4332
    %v4334 = vand.u32 %v4172, 4294901760
    %v4335 = vsub.f32 %v4172, %v4334
    %v4336 = vand.u32 %v4335, 4294901760
    %v4337 = vsub.f32 %v4335, %v4336
    %v4338 = vand.u32 %v4337, 4294901760
    %4339 = vmatmul.mubr.f32.gmra.mrb[0].mxu0 %v4338
    %v4340 = vpop.f32.mrb[0].mxu0
    %v4341 = vadd.f32 0.0, %v4340
    %v4342 = vpop.f32.mrb[0].mxu0
    %4343 = vdwg.mxu0
    %4344 = vmatprep.subr.mxu0 0.0
    %4345 = vmatpush1.msra.mxu0 0.0
    %4346 = vmatprep.subr.mxu0 0.0
    %4347 = vmatpush1.msra.mxu0 0.0
    %4348 = vmatprep.subr.mxu0 0.0
    %4349 = vmatpush1.msra.mxu0 0.0
    %4350 = vmatprep.subr.mxu0 0.0
    %4351 = vmatpush1.msra.mxu0 0.0
    %4352 = vmatprep.subr.mxu0 0.0
    %4353 = vmatpush1.msra.mxu0 0.0
    %4354 = vmatprep.subr.mxu0 0.0
    %4355 = vmatpush1.msra.mxu0 0.0
    %4356 = vmatprep.subr.mxu0 0.0
    %4357 = vmatpush1.msra.mxu0 0.0
    %4358 = vmatprep.subr.mxu0 0.0
    %4359 = vmatpush1.msra.mxu0 0.0
    %4360 = vmatprep.subr.mxu0 0.0
    %4361 = vmatpush1.msra.mxu0 0.0
    %4362 = vmatprep.subr.mxu0 0.0
    %4363 = vmatpush1.msra.mxu0 0.0
    %4364 = vmatprep.subr.mxu0 0.0
    %4365 = vmatpush1.msra.mxu0 0.0
    %4366 = vmatprep.subr.mxu0 0.0
    %4367 = vmatpush1.msra.mxu0 0.0
    %4368 = vmatprep.subr.mxu0 0.0
    %4369 = vmatpush1.msra.mxu0 0.0
    %4370 = vmatprep.subr.mxu0 0.0
    %4371 = vmatpush1.msra.mxu0 0.0
    %4372 = vmatprep.subr.mxu0 0.0
    %4373 = vmatpush1.msra.mxu0 0.0
    %4374 = vmatprep.subr.mxu0 0.0
    %4375 = vmatpush1.msra.mxu0 0.0
    %4376 = vmatprep.subr.mxu0 0.0
    %4377 = vmatpush1.msra.mxu0 0.0
    %4378 = vmatprep.subr.mxu0 0.0
    %4379 = vmatpush1.msra.mxu0 0.0
    %4380 = vmatprep.subr.mxu0 0.0
    %4381 = vmatpush1.msra.mxu0 0.0
    %4382 = vmatprep.subr.mxu0 0.0
    %4383 = vmatpush1.msra.mxu0 0.0
    %4384 = vmatprep.subr.mxu0 0.0
    %4385 = vmatpush1.msra.mxu0 0.0
    %4386 = vmatprep.subr.mxu0 0.0
    %4387 = vmatpush1.msra.mxu0 0.0
    %4388 = vmatprep.subr.mxu0 0.0
    %4389 = vmatpush1.msra.mxu0 0.0
    %4390 = vmatprep.subr.mxu0 0.0
    %4391 = vmatpush1.msra.mxu0 0.0
    %4392 = vmatprep.subr.mxu0 0.0
    %4393 = vmatpush1.msra.mxu0 0.0
    %4394 = vmatprep.subr.mxu0 0.0
    %4395 = vmatpush1.msra.mxu0 0.0
    %4396 = vmatprep.subr.mxu0 0.0
    %4397 = vmatpush1.msra.mxu0 0.0
    %4398 = vmatprep.subr.mxu0 0.0
    %4399 = vmatpush1.msra.mxu0 0.0
    %4400 = vmatprep.subr.mxu0 0.0
    %4401 = vmatpush1.msra.mxu0 0.0
    %4402 = vmatprep.subr.mxu0 0.0
    %4403 = vmatpush1.msra.mxu0 0.0
    %4404 = vmatprep.subr.mxu0 0.0
    %4405 = vmatpush1.msra.mxu0 0.0
    %4406 = vmatprep.subr.mxu0 0.0
    %4407 = vmatpush1.msra.mxu0 0.0
    %v4408 = vand.u32 %v4161, 4294901760
    %4409 = vmatprep.mubr.f32.mxu0 %v4408
    %v4410 = vand.u32 %v4160, 4294901760
    %4411 = vmatmul.mubr.f32.gmra.mrb[0].mxu0 %v4410
    %v4412 = vpop.f32.mrb[0].mxu0
    %v4413 = vadd.f32 %v4251, %v4412
    %v4414 = vpop.f32.mrb[0].mxu0
    %v4415 = vand.u32 %v4163, 4294901760
    %4416 = vmatprep.mubr.f32.mxu0 %v4415
    %v4417 = vand.u32 %v4162, 4294901760
    %4418 = vmatmul.mubr.f32.gmra.mrb[0].mxu0 %v4417
    %v4419 = vpop.f32.mrb[0].mxu0
    %v4420 = vadd.f32 %v4266, %v4419
    %v4421 = vpop.f32.mrb[0].mxu0
    %v4422 = vand.u32 %v4165, 4294901760
    %4423 = vmatprep.mubr.f32.mxu0 %v4422
    %v4424 = vand.u32 %v4164, 4294901760
    %4425 = vmatmul.mubr.f32.gmra.mrb[0].mxu0 %v4424
    %v4426 = vpop.f32.mrb[0].mxu0
    %v4427 = vadd.f32 %v4281, %v4426
    %v4428 = vpop.f32.mrb[0].mxu0
    %v4429 = vand.u32 %v4167, 4294901760
    %4430 = vmatprep.mubr.f32.mxu0 %v4429
    %v4431 = vand.u32 %v4166, 4294901760
    %4432 = vmatmul.mubr.f32.gmra.mrb[0].mxu0 %v4431
    %v4433 = vpop.f32.mrb[0].mxu0
    %v4434 = vadd.f32 %v4296, %v4433
    %v4435 = vpop.f32.mrb[0].mxu0
    %v4436 = vand.u32 %v4169, 4294901760
    %4437 = vmatprep.mubr.f32.mxu0 %v4436
    %v4438 = vand.u32 %v4168, 4294901760
    %4439 = vmatmul.mubr.f32.gmra.mrb[0].mxu0 %v4438
    %v4440 = vpop.f32.mrb[0].mxu0
    %v4441 = vadd.f32 %v4311, %v4440
    %v4442 = vpop.f32.mrb[0].mxu0
    %v4443 = vand.u32 %v4171, 4294901760
    %4444 = vmatprep.mubr.f32.mxu0 %v4443
    %v4445 = vand.u32 %v4170, 4294901760
    %4446 = vmatmul.mubr.f32.gmra.mrb[0].mxu0 %v4445
    %v4447 = vpop.f32.mrb[0].mxu0
    %v4448 = vadd.f32 %v4326, %v4447
    %v4449 = vpop.f32.mrb[0].mxu0
    %v4450 = vand.u32 %v4173, 4294901760
    %4451 = vmatprep.mubr.f32.mxu0 %v4450
    %v4452 = vand.u32 %v4172, 4294901760
    %4453 = vmatmul.mubr.f32.gmra.mrb[0].mxu0 %v4452
    %v4454 = vpop.f32.mrb[0].mxu0
    %v4455 = vadd.f32 %v4341, %v4454
    %v4456 = vpop.f32.mrb[0].mxu0
    %4457 = vdwg.mxu0
    %4458 = vmatprep.subr.mxu0 0.0
    %4459 = vmatpush1.msra.mxu0 0.0
    %4460 = vmatprep.subr.mxu0 0.0
    %4461 = vmatpush1.msra.mxu0 0.0
    %4462 = vmatprep.subr.mxu0 0.0
    %4463 = vmatpush1.msra.mxu0 0.0
    %4464 = vmatprep.subr.mxu0 0.0
    %4465 = vmatpush1.msra.mxu0 0.0
    %4466 = vmatprep.subr.mxu0 0.0
    %4467 = vmatpush1.msra.mxu0 0.0
    %4468 = vmatprep.subr.mxu0 0.0
    %4469 = vmatpush1.msra.mxu0 0.0
    %4470 = vmatprep.subr.mxu0 0.0
    %4471 = vmatpush1.msra.mxu0 0.0
    %4472 = vmatprep.subr.mxu0 0.0
    %4473 = vmatpush1.msra.mxu0 0.0
    %4474 = vmatprep.subr.mxu0 0.0
    %4475 = vmatpush1.msra.mxu0 0.0
    %4476 = vmatprep.subr.mxu0 0.0
    %4477 = vmatpush1.msra.mxu0 0.0
    %4478 = vmatprep.subr.mxu0 0.0
    %4479 = vmatpush1.msra.mxu0 0.0
    %4480 = vmatprep.subr.mxu0 0.0
    %4481 = vmatpush1.msra.mxu0 0.0
    %4482 = vmatprep.subr.mxu0 0.0
    %4483 = vmatpush1.msra.mxu0 0.0
    %4484 = vmatprep.subr.mxu0 0.0
    %4485 = vmatpush1.msra.mxu0 0.0
    %4486 = vmatprep.subr.mxu0 0.0
    %4487 = vmatpush1.msra.mxu0 0.0
    %4488 = vmatprep.subr.mxu0 0.0
    %4489 = vmatpush1.msra.mxu0 0.0
    %4490 = vmatprep.subr.mxu0 0.0
    %4491 = vmatpush1.msra.mxu0 0.0
    %4492 = vmatprep.subr.mxu0 0.0
    %4493 = vmatpush1.msra.mxu0 0.0
    %4494 = vmatprep.subr.mxu0 0.0
    %4495 = vmatpush1.msra.mxu0 0.0
    %4496 = vmatprep.subr.mxu0 0.0
    %4497 = vmatpush1.msra.mxu0 0.0
    %4498 = vmatprep.subr.mxu0 0.0
    %4499 = vmatpush1.msra.mxu0 0.0
    %4500 = vmatprep.subr.mxu0 0.0
    %4501 = vmatpush1.msra.mxu0 0.0
    %4502 = vmatprep.subr.mxu0 0.0
    %4503 = vmatpush1.msra.mxu0 0.0
    %4504 = vmatprep.subr.mxu0 0.0
    %4505 = vmatpush1.msra.mxu0 0.0
    %4506 = vmatprep.subr.mxu0 0.0
    %4507 = vmatpush1.msra.mxu0 0.0
    %4508 = vmatprep.subr.mxu0 0.0
    %4509 = vmatpush1.msra.mxu0 0.0
    %4510 = vmatprep.subr.mxu0 0.0
    %4511 = vmatpush1.msra.mxu0 0.0
    %4512 = vmatprep.subr.mxu0 0.0
    %4513 = vmatpush1.msra.mxu0 0.0
    %4514 = vmatprep.subr.mxu0 0.0
    %4515 = vmatpush1.msra.mxu0 0.0
    %4516 = vmatprep.subr.mxu0 0.0
    %4517 = vmatpush1.msra.mxu0 0.0
    %4518 = vmatprep.subr.mxu0 0.0
    %4519 = vmatpush1.msra.mxu0 0.0
    %4520 = vmatprep.subr.mxu0 0.0
    %4521 = vmatpush1.msra.mxu0 0.0
    %v4522 = vand.u32 %v4161, 4294901760
    %v4523 = vsub.f32 %v4161, %v4522
    %4524 = vmatprep.mubr.f32.mxu0 %v4523
    %v4525 = vand.u32 %v4160, 4294901760
    %v4526 = vsub.f32 %v4160, %v4525
    %4527 = vmatmul.mubr.f32.gmra.mrb[0].mxu0 %v4526
    %v4528 = vpop.f32.mrb[0].mxu0
    %v4529 = vadd.f32 %v4413, %v4528
    %v4530 = vpop.f32.mrb[0].mxu0
    %v4531 = vand.u32 %v4163, 4294901760
    %v4532 = vsub.f32 %v4163, %v4531
    %4533 = vmatprep.mubr.f32.mxu0 %v4532
    %v4534 = vand.u32 %v4162, 4294901760
    %v4535 = vsub.f32 %v4162, %v4534
    %4536 = vmatmul.mubr.f32.gmra.mrb[0].mxu0 %v4535
    %v4537 = vpop.f32.mrb[0].mxu0
    %v4538 = vadd.f32 %v4420, %v4537
    %v4539 = vpop.f32.mrb[0].mxu0
    %v4540 = vand.u32 %v4165, 4294901760
    %v4541 = vsub.f32 %v4165, %v4540
    %4542 = vmatprep.mubr.f32.mxu0 %v4541
    %v4543 = vand.u32 %v4164, 4294901760
    %v4544 = vsub.f32 %v4164, %v4543
    %4545 = vmatmul.mubr.f32.gmra.mrb[0].mxu0 %v4544
    %v4546 = vpop.f32.mrb[0].mxu0
    %v4547 = vadd.f32 %v4427, %v4546
    %v4548 = vpop.f32.mrb[0].mxu0
    %v4549 = vand.u32 %v4167, 4294901760
    %v4550 = vsub.f32 %v4167, %v4549
    %4551 = vmatprep.mubr.f32.mxu0 %v4550
    %v4552 = vand.u32 %v4166, 4294901760
    %v4553 = vsub.f32 %v4166, %v4552
    %4554 = vmatmul.mubr.f32.gmra.mrb[0].mxu0 %v4553
    %v4555 = vpop.f32.mrb[0].mxu0
    %v4556 = vadd.f32 %v4434, %v4555
    %v4557 = vpop.f32.mrb[0].mxu0
    %v4558 = vand.u32 %v4169, 4294901760
    %v4559 = vsub.f32 %v4169, %v4558
    %4560 = vmatprep.mubr.f32.mxu0 %v4559
    %v4561 = vand.u32 %v4168, 4294901760
    %v4562 = vsub.f32 %v4168, %v4561
    %4563 = vmatmul.mubr.f32.gmra.mrb[0].mxu0 %v4562
    %v4564 = vpop.f32.mrb[0].mxu0
    %v4565 = vadd.f32 %v4441, %v4564
    %v4566 = vpop.f32.mrb[0].mxu0
    %v4567 = vand.u32 %v4171, 4294901760
    %v4568 = vsub.f32 %v4171, %v4567
    %4569 = vmatprep.mubr.f32.mxu0 %v4568
    %v4570 = vand.u32 %v4170, 4294901760
    %v4571 = vsub.f32 %v4170, %v4570
    %4572 = vmatmul.mubr.f32.gmra.mrb[0].mxu0 %v4571
    %v4573 = vpop.f32.mrb[0].mxu0
    %v4574 = vadd.f32 %v4448, %v4573
    %v4575 = vpop.f32.mrb[0].mxu0
    %v4576 = vand.u32 %v4173, 4294901760
    %v4577 = vsub.f32 %v4173, %v4576
    %4578 = vmatprep.mubr.f32.mxu0 %v4577
    %v4579 = vand.u32 %v4172, 4294901760
    %v4580 = vsub.f32 %v4172, %v4579
    %4581 = vmatmul.mubr.f32.gmra.mrb[0].mxu0 %v4580
    %v4582 = vpop.f32.mrb[0].mxu0
    %v4583 = vadd.f32 %v4455, %v4582
    %v4584 = vpop.f32.mrb[0].mxu0
    %4585 = vdwg.mxu0
    %4586 = vmatprep.subr.mxu0 0.0
    %4587 = vmatpush1.msra.mxu0 1.0
    %4588 = vmatprep.subr.mxu0 0.0
    %4589 = vmatpush1.msra.mxu0 1.0
    %4590 = vmatprep.subr.mxu0 0.0
    %4591 = vmatpush1.msra.mxu0 1.0
    %4592 = vmatprep.subr.mxu0 0.0
    %4593 = vmatpush1.msra.mxu0 1.0
    %4594 = vmatprep.subr.mxu0 0.0
    %4595 = vmatpush1.msra.mxu0 1.0
    %4596 = vmatprep.subr.mxu0 0.0
    %4597 = vmatpush1.msra.mxu0 1.0
    %4598 = vmatprep.subr.mxu0 0.0
    %4599 = vmatpush1.msra.mxu0 1.0
    %4600 = vmatprep.subr.mxu0 0.0
    %4601 = vmatpush1.msra.mxu0 1.0
    %4602 = vmatprep.subr.mxu0 0.0
    %4603 = vmatpush1.msra.mxu0 1.0
    %4604 = vmatprep.subr.mxu0 0.0
    %4605 = vmatpush1.msra.mxu0 1.0
    %4606 = vmatprep.subr.mxu0 0.0
    %4607 = vmatpush1.msra.mxu0 1.0
    %4608 = vmatprep.subr.mxu0 0.0
    %4609 = vmatpush1.msra.mxu0 1.0
    %4610 = vmatprep.subr.mxu0 0.0
    %4611 = vmatpush1.msra.mxu0 1.0
    %4612 = vmatprep.subr.mxu0 0.0
    %4613 = vmatpush1.msra.mxu0 1.0
    %4614 = vmatprep.subr.mxu0 0.0
    %4615 = vmatpush1.msra.mxu0 1.0
    %4616 = vmatprep.subr.mxu0 0.0
    %4617 = vmatpush1.msra.mxu0 1.0
    %4618 = vmatprep.subr.mxu0 0.0
    %4619 = vmatpush1.msra.mxu0 1.0
    %4620 = vmatprep.subr.mxu0 0.0
    %4621 = vmatpush1.msra.mxu0 1.0
    %4622 = vmatprep.subr.mxu0 0.0
    %4623 = vmatpush1.msra.mxu0 1.0
    %4624 = vmatprep.subr.mxu0 0.0
    %4625 = vmatpush1.msra.mxu0 1.0
    %4626 = vmatprep.subr.mxu0 0.0
    %4627 = vmatpush1.msra.mxu0 1.0
    %4628 = vmatprep.subr.mxu0 0.0
    %4629 = vmatpush1.msra.mxu0 1.0
    %4630 = vmatprep.subr.mxu0 0.0
    %4631 = vmatpush1.msra.mxu0 1.0
    %4632 = vmatprep.subr.mxu0 0.0
    %4633 = vmatpush1.msra.mxu0 1.0
    %4634 = vmatprep.subr.mxu0 0.0
    %4635 = vmatpush1.msra.mxu0 1.0
    %4636 = vmatprep.subr.mxu0 0.0
    %4637 = vmatpush1.msra.mxu0 1.0
    %4638 = vmatprep.subr.mxu0 0.0
    %4639 = vmatpush1.msra.mxu0 1.0
    %4640 = vmatprep.subr.mxu0 0.0
    %4641 = vmatpush1.msra.mxu0 1.0
    %4642 = vmatprep.subr.mxu0 0.0
    %4643 = vmatpush1.msra.mxu0 1.0
    %4644 = vmatprep.subr.mxu0 0.0
    %4645 = vmatpush1.msra.mxu0 1.0
    %4646 = vmatprep.subr.mxu0 0.0
    %4647 = vmatpush1.msra.mxu0 1.0
    %4648 = vmatprep.subr.mxu0 0.0
    %4649 = vmatpush1.msra.mxu0 1.0
    %v4650 = vand.u32 %v4161, 4294901760
    %v4651 = vsub.f32 %v4161, %v4650
    %v4652 = vand.u32 %v4651, 4294901760
    %4653 = vmatprep.mubr.f32.mxu0 %v4652
    %v4654 = vand.u32 %v4160, 4294901760
    %v4655 = vsub.f32 %v4160, %v4654
    %v4656 = vand.u32 %v4655, 4294901760
    %4657 = vmatmul.mubr.f32.gmra.mrb[0].mxu0 %v4656
    %v4658 = vpop.f32.mrb[0].mxu0
    %v4659 = vadd.f32 %v4529, %v4658
    %v4660 = vpop.f32.mrb[0].mxu0
    %v4661 = vand.u32 %v4163, 4294901760
    %v4662 = vsub.f32 %v4163, %v4661
    %v4663 = vand.u32 %v4662, 4294901760
    %4664 = vmatprep.mubr.f32.mxu0 %v4663
    %v4665 = vand.u32 %v4162, 4294901760
    %v4666 = vsub.f32 %v4162, %v4665
    %v4667 = vand.u32 %v4666, 4294901760
    %4668 = vmatmul.mubr.f32.gmra.mrb[0].mxu0 %v4667
    %v4669 = vpop.f32.mrb[0].mxu0
    %v4670 = vadd.f32 %v4538, %v4669
    %v4671 = vpop.f32.mrb[0].mxu0
    %v4672 = vand.u32 %v4165, 4294901760
    %v4673 = vsub.f32 %v4165, %v4672
    %v4674 = vand.u32 %v4673, 4294901760
    %4675 = vmatprep.mubr.f32.mxu0 %v4674
    %v4676 = vand.u32 %v4164, 4294901760
    %v4677 = vsub.f32 %v4164, %v4676
    %v4678 = vand.u32 %v4677, 4294901760
    %4679 = vmatmul.mubr.f32.gmra.mrb[0].mxu0 %v4678
    %v4680 = vpop.f32.mrb[0].mxu0
    %v4681 = vadd.f32 %v4547, %v4680
    %v4682 = vpop.f32.mrb[0].mxu0
    %v4683 = vand.u32 %v4167, 4294901760
    %v4684 = vsub.f32 %v4167, %v4683
    %v4685 = vand.u32 %v4684, 4294901760
    %4686 = vmatprep.mubr.f32.mxu0 %v4685
    %v4687 = vand.u32 %v4166, 4294901760
    %v4688 = vsub.f32 %v4166, %v4687
    %v4689 = vand.u32 %v4688, 4294901760
    %4690 = vmatmul.mubr.f32.gmra.mrb[0].mxu0 %v4689
    %v4691 = vpop.f32.mrb[0].mxu0
    %v4692 = vadd.f32 %v4556, %v4691
    %v4693 = vpop.f32.mrb[0].mxu0
    %v4694 = vand.u32 %v4169, 4294901760
    %v4695 = vsub.f32 %v4169, %v4694
    %v4696 = vand.u32 %v4695, 4294901760
    %4697 = vmatprep.mubr.f32.mxu0 %v4696
    %v4698 = vand.u32 %v4168, 4294901760
    %v4699 = vsub.f32 %v4168, %v4698
    %v4700 = vand.u32 %v4699, 4294901760
    %4701 = vmatmul.mubr.f32.gmra.mrb[0].mxu0 %v4700
    %v4702 = vpop.f32.mrb[0].mxu0
    %v4703 = vadd.f32 %v4565, %v4702
    %v4704 = vpop.f32.mrb[0].mxu0
    %v4705 = vand.u32 %v4171, 4294901760
    %v4706 = vsub.f32 %v4171, %v4705
    %v4707 = vand.u32 %v4706, 4294901760
    %4708 = vmatprep.mubr.f32.mxu0 %v4707
    %v4709 = vand.u32 %v4170, 4294901760
    %v4710 = vsub.f32 %v4170, %v4709
    %v4711 = vand.u32 %v4710, 4294901760
    %4712 = vmatmul.mubr.f32.gmra.mrb[0].mxu0 %v4711
    %v4713 = vpop.f32.mrb[0].mxu0
    %v4714 = vadd.f32 %v4574, %v4713
    %v4715 = vpop.f32.mrb[0].mxu0
    %v4716 = vand.u32 %v4173, 4294901760
    %v4717 = vsub.f32 %v4173, %v4716
    %v4718 = vand.u32 %v4717, 4294901760
    %4719 = vmatprep.mubr.f32.mxu0 %v4718
    %v4720 = vand.u32 %v4172, 4294901760
    %v4721 = vsub.f32 %v4172, %v4720
    %v4722 = vand.u32 %v4721, 4294901760
    %4723 = vmatmul.mubr.f32.gmra.mrb[0].mxu0 %v4722
    %v4724 = vpop.f32.mrb[0].mxu0
    %v4725 = vadd.f32 %v4583, %v4724
    %v4726 = vpop.f32.mrb[0].mxu0
    %4727 = vdwg.mxu0
    %4728 = vmatprep.subr.mxu0 0.0
    %4729 = vmatpush1.msra.mxu0 0.0
    %4730 = vmatprep.subr.mxu0 0.0
    %4731 = vmatpush1.msra.mxu0 0.0
    %4732 = vmatprep.subr.mxu0 0.0
    %4733 = vmatpush1.msra.mxu0 0.0
    %4734 = vmatprep.subr.mxu0 0.0
    %4735 = vmatpush1.msra.mxu0 0.0
    %4736 = vmatprep.subr.mxu0 0.0
    %4737 = vmatpush1.msra.mxu0 0.0
    %4738 = vmatprep.subr.mxu0 0.0
    %4739 = vmatpush1.msra.mxu0 0.0
    %4740 = vmatprep.subr.mxu0 0.0
    %4741 = vmatpush1.msra.mxu0 0.0
    %4742 = vmatprep.subr.mxu0 0.0
    %4743 = vmatpush1.msra.mxu0 0.0
    %4744 = vmatprep.subr.mxu0 0.0
    %4745 = vmatpush1.msra.mxu0 0.0
    %4746 = vmatprep.subr.mxu0 0.0
    %4747 = vmatpush1.msra.mxu0 0.0
    %4748 = vmatprep.subr.mxu0 0.0
    %4749 = vmatpush1.msra.mxu0 0.0
    %4750 = vmatprep.subr.mxu0 0.0
    %4751 = vmatpush1.msra.mxu0 0.0
    %4752 = vmatprep.subr.mxu0 0.0
    %4753 = vmatpush1.msra.mxu0 0.0
    %4754 = vmatprep.subr.mxu0 0.0
    %4755 = vmatpush1.msra.mxu0 0.0
    %4756 = vmatprep.subr.mxu0 0.0
    %4757 = vmatpush1.msra.mxu0 0.0
    %4758 = vmatprep.subr.mxu0 0.0
    %4759 = vmatpush1.msra.mxu0 0.0
    %4760 = vmatprep.subr.mxu0 0.0
    %4761 = vmatpush1.msra.mxu0 0.0
    %4762 = vmatprep.subr.mxu0 0.0
    %4763 = vmatpush1.msra.mxu0 0.0
    %4764 = vmatprep.subr.mxu0 0.0
    %4765 = vmatpush1.msra.mxu0 0.0
    %4766 = vmatprep.subr.mxu0 0.0
    %4767 = vmatpush1.msra.mxu0 0.0
    %4768 = vmatprep.subr.mxu0 0.0
    %4769 = vmatpush1.msra.mxu0 0.0
    %4770 = vmatprep.subr.mxu0 0.0
    %4771 = vmatpush1.msra.mxu0 0.0
    %4772 = vmatprep.subr.mxu0 0.0
    %4773 = vmatpush1.msra.mxu0 0.0
    %4774 = vmatprep.subr.mxu0 0.0
    %4775 = vmatpush1.msra.mxu0 0.0
    %4776 = vmatprep.subr.mxu0 0.0
    %4777 = vmatpush1.msra.mxu0 0.0
    %4778 = vmatprep.subr.mxu0 0.0
    %4779 = vmatpush1.msra.mxu0 0.0
    %4780 = vmatprep.subr.mxu0 0.0
    %4781 = vmatpush1.msra.mxu0 0.0
    %4782 = vmatprep.subr.mxu0 0.0
    %4783 = vmatpush1.msra.mxu0 0.0
    %4784 = vmatprep.subr.mxu0 0.0
    %4785 = vmatpush1.msra.mxu0 0.0
    %4786 = vmatprep.subr.mxu0 0.0
    %4787 = vmatpush1.msra.mxu0 0.0
    %4788 = vmatprep.subr.mxu0 0.0
    %4789 = vmatpush1.msra.mxu0 0.0
    %4790 = vmatprep.subr.mxu0 0.0
    %4791 = vmatpush1.msra.mxu0 0.0
    %v4792 = vand.u32 %v4161, 4294901760
    %4793 = vmatprep.mubr.f32.mxu0 %v4792
    %v4794 = vand.u32 %v4160, 4294901760
    %4795 = vmatmul.mubr.f32.gmra.mrb[0].mxu0 %v4794
    %v4796 = vpop.f32.mrb[0].mxu0
    %v4797 = vadd.f32 %v4659, %v4796
    %v4798 = vpop.f32.mrb[0].mxu0
    %v4799 = vand.u32 %v4163, 4294901760
    %4800 = vmatprep.mubr.f32.mxu0 %v4799
    %v4801 = vand.u32 %v4162, 4294901760
    %4802 = vmatmul.mubr.f32.gmra.mrb[0].mxu0 %v4801
    %v4803 = vpop.f32.mrb[0].mxu0
    %v4804 = vadd.f32 %v4670, %v4803
    %v4805 = vpop.f32.mrb[0].mxu0
    %v4806 = vand.u32 %v4165, 4294901760
    %4807 = vmatprep.mubr.f32.mxu0 %v4806
    %v4808 = vand.u32 %v4164, 4294901760
    %4809 = vmatmul.mubr.f32.gmra.mrb[0].mxu0 %v4808
    %v4810 = vpop.f32.mrb[0].mxu0
    %v4811 = vadd.f32 %v4681, %v4810
    %v4812 = vpop.f32.mrb[0].mxu0
    %v4813 = vand.u32 %v4167, 4294901760
    %4814 = vmatprep.mubr.f32.mxu0 %v4813
    %v4815 = vand.u32 %v4166, 4294901760
    %4816 = vmatmul.mubr.f32.gmra.mrb[0].mxu0 %v4815
    %v4817 = vpop.f32.mrb[0].mxu0
    %v4818 = vadd.f32 %v4692, %v4817
    %v4819 = vpop.f32.mrb[0].mxu0
    %v4820 = vand.u32 %v4169, 4294901760
    %4821 = vmatprep.mubr.f32.mxu0 %v4820
    %v4822 = vand.u32 %v4168, 4294901760
    %4823 = vmatmul.mubr.f32.gmra.mrb[0].mxu0 %v4822
    %v4824 = vpop.f32.mrb[0].mxu0
    %v4825 = vadd.f32 %v4703, %v4824
    %v4826 = vpop.f32.mrb[0].mxu0
    %v4827 = vand.u32 %v4171, 4294901760
    %4828 = vmatprep.mubr.f32.mxu0 %v4827
    %v4829 = vand.u32 %v4170, 4294901760
    %4830 = vmatmul.mubr.f32.gmra.mrb[0].mxu0 %v4829
    %v4831 = vpop.f32.mrb[0].mxu0
    %v4832 = vadd.f32 %v4714, %v4831
    %v4833 = vpop.f32.mrb[0].mxu0
    %v4834 = vand.u32 %v4173, 4294901760
    %4835 = vmatprep.mubr.f32.mxu0 %v4834
    %v4836 = vand.u32 %v4172, 4294901760
    %4837 = vmatmul.mubr.f32.gmra.mrb[0].mxu0 %v4836
    %v4838 = vpop.f32.mrb[0].mxu0
    %v4839 = vadd.f32 %v4725, %v4838
    %v4840 = vpop.f32.mrb[0].mxu0
    %4841 = vdwg.mxu0
    %4842 = vmatprep.subr.mxu0 0.0
    %4843 = vmatpush1.msra.mxu0 1.0
    %4844 = vmatprep.subr.mxu0 0.0
    %4845 = vmatpush1.msra.mxu0 1.0
    %4846 = vmatprep.subr.mxu0 0.0
    %4847 = vmatpush1.msra.mxu0 1.0
    %4848 = vmatprep.subr.mxu0 0.0
    %4849 = vmatpush1.msra.mxu0 1.0
    %4850 = vmatprep.subr.mxu0 0.0
    %4851 = vmatpush1.msra.mxu0 1.0
    %4852 = vmatprep.subr.mxu0 0.0
    %4853 = vmatpush1.msra.mxu0 1.0
    %4854 = vmatprep.subr.mxu0 0.0
    %4855 = vmatpush1.msra.mxu0 1.0
    %4856 = vmatprep.subr.mxu0 0.0
    %4857 = vmatpush1.msra.mxu0 1.0
    %4858 = vmatprep.subr.mxu0 0.0
    %4859 = vmatpush1.msra.mxu0 1.0
    %4860 = vmatprep.subr.mxu0 0.0
    %4861 = vmatpush1.msra.mxu0 1.0
    %4862 = vmatprep.subr.mxu0 0.0
    %4863 = vmatpush1.msra.mxu0 1.0
    %4864 = vmatprep.subr.mxu0 0.0
    %4865 = vmatpush1.msra.mxu0 1.0
    %4866 = vmatprep.subr.mxu0 0.0
    %4867 = vmatpush1.msra.mxu0 1.0
    %4868 = vmatprep.subr.mxu0 0.0
    %4869 = vmatpush1.msra.mxu0 1.0
    %4870 = vmatprep.subr.mxu0 0.0
    %4871 = vmatpush1.msra.mxu0 1.0
    %4872 = vmatprep.subr.mxu0 0.0
    %4873 = vmatpush1.msra.mxu0 1.0
    %4874 = vmatprep.subr.mxu0 0.0
    %4875 = vmatpush1.msra.mxu0 1.0
    %4876 = vmatprep.subr.mxu0 0.0
    %4877 = vmatpush1.msra.mxu0 1.0
    %4878 = vmatprep.subr.mxu0 0.0
    %4879 = vmatpush1.msra.mxu0 1.0
    %4880 = vmatprep.subr.mxu0 0.0
    %4881 = vmatpush1.msra.mxu0 1.0
    %4882 = vmatprep.subr.mxu0 0.0
    %4883 = vmatpush1.msra.mxu0 1.0
    %4884 = vmatprep.subr.mxu0 0.0
    %4885 = vmatpush1.msra.mxu0 1.0
    %4886 = vmatprep.subr.mxu0 0.0
    %4887 = vmatpush1.msra.mxu0 1.0
    %4888 = vmatprep.subr.mxu0 0.0
    %4889 = vmatpush1.msra.mxu0 1.0
    %4890 = vmatprep.subr.mxu0 0.0
    %4891 = vmatpush1.msra.mxu0 1.0
    %4892 = vmatprep.subr.mxu0 0.0
    %4893 = vmatpush1.msra.mxu0 1.0
    %4894 = vmatprep.subr.mxu0 0.0
    %4895 = vmatpush1.msra.mxu0 1.0
    %4896 = vmatprep.subr.mxu0 0.0
    %4897 = vmatpush1.msra.mxu0 1.0
    %4898 = vmatprep.subr.mxu0 0.0
    %4899 = vmatpush1.msra.mxu0 1.0
    %4900 = vmatprep.subr.mxu0 0.0
    %4901 = vmatpush1.msra.mxu0 1.0
    %4902 = vmatprep.subr.mxu0 0.0
    %4903 = vmatpush1.msra.mxu0 1.0
    %4904 = vmatprep.subr.mxu0 0.0
    %4905 = vmatpush1.msra.mxu0 1.0
    %v4906 = vand.u32 %v4161, 4294901760
    %4907 = vmatprep.mubr.f32.mxu0 %v4906
    %v4908 = vand.u32 %v4160, 4294901760
    %4909 = vmatmul.mubr.f32.gmra.mrb[0].mxu0 %v4908
    %v4910 = vpop.f32.mrb[0].mxu0
    %v4911 = vadd.f32 %v4797, %v4910
    %v4912 = vpop.f32.mrb[0].mxu0
    %v4913 = vand.u32 %v4163, 4294901760
    %4914 = vmatprep.mubr.f32.mxu0 %v4913
    %v4915 = vand.u32 %v4162, 4294901760
    %4916 = vmatmul.mubr.f32.gmra.mrb[0].mxu0 %v4915
    %v4917 = vpop.f32.mrb[0].mxu0
    %v4918 = vadd.f32 %v4804, %v4917
    %v4919 = vpop.f32.mrb[0].mxu0
    %v4920 = vand.u32 %v4165, 4294901760
    %4921 = vmatprep.mubr.f32.mxu0 %v4920
    %v4922 = vand.u32 %v4164, 4294901760
    %4923 = vmatmul.mubr.f32.gmra.mrb[0].mxu0 %v4922
    %v4924 = vpop.f32.mrb[0].mxu0
    %v4925 = vadd.f32 %v4811, %v4924
    %v4926 = vpop.f32.mrb[0].mxu0
    %v4927 = vand.u32 %v4167, 4294901760
    %4928 = vmatprep.mubr.f32.mxu0 %v4927
    %v4929 = vand.u32 %v4166, 4294901760
    %4930 = vmatmul.mubr.f32.gmra.mrb[0].mxu0 %v4929
    %v4931 = vpop.f32.mrb[0].mxu0
    %v4932 = vadd.f32 %v4818, %v4931
    %v4933 = vpop.f32.mrb[0].mxu0
    %v4934 = vand.u32 %v4169, 4294901760
    %4935 = vmatprep.mubr.f32.mxu0 %v4934
    %v4936 = vand.u32 %v4168, 4294901760
    %4937 = vmatmul.mubr.f32.gmra.mrb[0].mxu0 %v4936
    %v4938 = vpop.f32.mrb[0].mxu0
    %v4939 = vadd.f32 %v4825, %v4938
    %v4940 = vpop.f32.mrb[0].mxu0
    %v4941 = vand.u32 %v4171, 4294901760
    %4942 = vmatprep.mubr.f32.mxu0 %v4941
    %v4943 = vand.u32 %v4170, 4294901760
    %4944 = vmatmul.mubr.f32.gmra.mrb[0].mxu0 %v4943
    %v4945 = vpop.f32.mrb[0].mxu0
    %v4946 = vadd.f32 %v4832, %v4945
    %v4947 = vpop.f32.mrb[0].mxu0
    %v4948 = vand.u32 %v4173, 4294901760
    %4949 = vmatprep.mubr.f32.mxu0 %v4948
    %v4950 = vand.u32 %v4172, 4294901760
    %4951 = vmatmul.mubr.f32.gmra.mrb[0].mxu0 %v4950
    %v4952 = vpop.f32.mrb[0].mxu0
    %v4953 = vadd.f32 %v4839, %v4952
    %v4954 = vpop.f32.mrb[0].mxu0
    %4955 = vdwg.mxu0
    %v4956 = vmul.f32 %v4115, %v4911
    %v4957 = vmul.f32 %v4122, %v4918
    %v4958 = vmul.f32 %v4129, %v4925
    %v4959 = vmul.f32 %v4136, %v4932
    %v4960 = vmul.f32 %v4143, %v4939
    %v4961 = vmul.f32 %v4150, %v4946
    %v4962 = vmul.f32 %v4157, %v4953
    %v4963 = vmax.f32 %v4956, 1e-16
    %v4964 = vmax.f32 %v4957, 1e-16
    %v4965 = vmax.f32 %v4958, 1e-16
    %v4966 = vmax.f32 %v4959, 1e-16
    %v4967 = vmax.f32 %v4960, 1e-16
    %v4968 = vmax.f32 %v4961, 1e-16
    %v4969 = vmax.f32 %v4962, 1e-16
    %v4970 = vrsqrt.pop %v4963
    %v4971 = vrsqrt.pop %v4964
    %v4972 = vrsqrt.pop %v4965
    %v4973 = vrsqrt.pop %v4966
    %v4974 = vrsqrt.pop %v4967
    %v4975 = vrsqrt.pop %v4968
    %v4976 = vrsqrt.pop %v4969
    %v4977 = vmul.f32 %v3319, %v4970
    %v4978 = vmul.f32 %v3326, %v4971
    %v4979 = vmul.f32 %v3333, %v4972
    %v4980 = vmul.f32 %v3340, %v4973
    %v4981 = vmul.f32 %v3347, %v4974
    %v4982 = vmul.f32 %v3354, %v4975
    %v4983 = vmul.f32 %v3361, %v4976
    %v4984 = vsel %vm2517, %v4977, 0.0
    %v4985 = vsel %vm2517, %v4978, 0.0
    %v4986 = vadd.f32 %v4984, %v4985
    %v4987 = vsel %vm2517, %v4979, 0.0
    %v4988 = vadd.f32 %v4986, %v4987
    %v4989 = vsel %vm2517, %v4980, 0.0
    %v4990 = vadd.f32 %v4988, %v4989
    %v4991 = vsel %vm2517, %v4981, 0.0
    %v4992 = vadd.f32 %v4990, %v4991
    %v4993 = vsel %vm2517, %v4982, 0.0
    %v4994 = vadd.f32 %v4992, %v4993
    %v4995 = vsel %vm2517, %v4983, 0.0
    %v4996 = vadd.f32 %v4994, %v4995
    %4997 = vadd.xlane.f32.xlu0 %v4996
    %v4998 = vpop.xlane.xlu0 %4997
    %v4999 = vrot.slane %v4998, 4
    %v5000 = vadd.f32 %v4998, %v4999
    %v5001 = vrot.slane %v5000, 2
    %v5002 = vadd.f32 %v5000, %v5001
    %v5003 = vrot.slane %v5002, 1
    %v5004 = vadd.f32 %v5002, %v5003
    %s5005 = vtos %v5004
    %s5006 = sadd.f32 %s2539, %s5005
    %v5007 = vstv %s5006
    %5008 = vst [vmem:[#allocation10] sm:$0x1] %v5007
    // Predicated region
    $region34: #{tpu_custom_call.1} parent=1 // pred_check
      _
    $region35: #{tpu_custom_call.1} parent=1 // pred_check_branch
      %5010 = sbr.rel (0) target = $region37
    $region36: #{tpu_custom_call.1} parent=1 // pred_region
      %s5012 = ssub.s32 16, 16
      %5013 = vsyncadd [#allocation4], %s5012
      %s5015 = sshll.u32 [#allocation10], 4
      %s5016 = int_to_ptr.vmem [resolvable:$true] %s5015
      %5018 = dma.vmem_to_hbm [thread:$0]  %s5016, 16, %s4, [#allocation4]
    $region37: #{tpu_custom_call.1} parent=1 // pred_fallthru
      _
    // Predicated region
    $region38: #{tpu_custom_call.1} parent=1 // pred_check
      _
    $region39: #{tpu_custom_call.1} parent=1 // pred_check_branch
      %5020 = sbr.rel (0) target = $region41
    $region40: #{tpu_custom_call.1} parent=1 // pred_region
      %5021 = dma.done [#allocation4], 16
    $region41: #{tpu_custom_call.1} parent=1 // pred_fallthru
      _
    %5022 = vsyncpa [#allocation3], 1
    %5023 = vsyncpa [#allocation6], 1
    %5024 = vsyncpa [#allocation9], 1
    %5025 = vsyncpa [#allocation4], 1

</llo_original>
